<compile_context>
chip_gen: v7x
topology: tpu7x:2x2x1
jax: 0.10.0
libtpu: 0.0.40
codegen_flags: <defaults>
</compile_context>

<pallas_src>
import math

import jax
import jax.numpy as jnp
from jax.experimental import pallas as pl
from jax.experimental.pallas import tpu as pltpu

_BN_EPS = 1e-5


def _round_up(x, m):
    return (x + m - 1) // m * m


# -----------------------------------------------------------------------------
# Fused chain of stride-1 3x3 convs (+ folded BN affine, + optional ReLU).
# -----------------------------------------------------------------------------
def _conv3x3_chain_pallas(x, layers):
    """x: (B, H, W, Cin) f32.  layers: list of (w_flat, scale, bias, relu) with
    w_flat (9*Cin_l, Cout_l), scale/bias (1, Cout_l), relu a Python bool.
    Returns (B, H, W, Cout_last).  Intermediates stay in VMEM."""
    B, H, W, Cin0 = x.shape
    n = len(layers)
    chans = [int(Cin0)] + [int(w.shape[1]) for (w, _, _, _) in layers]
    relus = tuple(bool(r) for (_, _, _, r) in layers)
    Cout = chans[-1]
    # Tap width padded to a sublane multiple so every in-kernel reshape is
    # layout preserving; the extra (zero) columns are sliced off afterwards.
    Wt = _round_up(W, 8)

    def kernel(*refs):
        x_ref = refs[0]
        layer_refs = refs[1:1 + 3 * n]
        o_ref = refs[1 + 3 * n]
        pads = refs[2 + 3 * n:]

        act = x_ref[0]                                   # (H, W, Cin0)
        for li in range(n):
            w_ref, s_ref, b_ref = layer_refs[3 * li:3 * li + 3]
            cin = chans[li]
            pad = pads[li]                               # (H+2, Wt+2, cin) VMEM
            # Zero halo + interior write (activation never leaves VMEM).
            pad[...] = jnp.zeros_like(pad)
            pad[1:H + 1, 1:W + 1, :] = act
            # im2col: 9 shifted views concatenated on the channel (lane) axis,
            # then a single (H*Wt, 9*cin) x (9*cin, cout) MXU matmul.
            taps = [pad[dy:dy + H, dx:dx + Wt, :]
                    for dy in range(3) for dx in range(3)]
            slab = jnp.concatenate(taps, axis=-1).reshape(H * Wt, 9 * cin)
            y = jnp.dot(slab, w_ref[...], preferred_element_type=jnp.float32)
            y = y * s_ref[...] + b_ref[...]              # folded BatchNorm
            if relus[li]:
                y = jnp.maximum(y, 0.0)                  # ReLU
            act = y.reshape(H, Wt, chans[li + 1])[:, :W, :]
        o_ref[...] = act[None].astype(o_ref.dtype)

    args = [x]
    in_specs = [pl.BlockSpec((1, H, W, Cin0), lambda b: (b, 0, 0, 0))]
    for (w, s, bias, _r) in layers:
        args.extend([w, s, bias])
        in_specs.extend([
            pl.BlockSpec(w.shape, lambda b: (0, 0)),
            pl.BlockSpec(s.shape, lambda b: (0, 0)),
            pl.BlockSpec(bias.shape, lambda b: (0, 0)),
        ])
    scratch = [pltpu.VMEM((H + 2, Wt + 2, chans[li]), jnp.float32)
               for li in range(n)]
    # TODO(synk): for large H/W add row tiling with halo exchange and size the
    # tiles against v7x's smaller VMEM; at these shapes whole images fit.
    return pl.pallas_call(
        kernel,
        out_shape=jax.ShapeDtypeStruct((B, H, W, Cout), x.dtype),
        grid_spec=pltpu.PrefetchScalarGridSpec(
            num_scalar_prefetch=0,
            grid=(B,),
            in_specs=in_specs,
            out_specs=pl.BlockSpec((1, H, W, Cout), lambda b: (b, 0, 0, 0)),
            scratch_shapes=scratch),
        compiler_params=pltpu.CompilerParams(
            dimension_semantics=("parallel",)),
    )(*args)


# -----------------------------------------------------------------------------
# 3x3 conv, stride 2, padding 1 (+ folded BN + ReLU) as one im2col matmul.
# -----------------------------------------------------------------------------
def _conv3x3_s2_pallas(x, layer):
    """The stride is removed by a polyphase split of the padded input done in
    the wrapper (tiny tensors), so the kernel only uses unit-stride slices."""
    w_flat, scale, bias, relu = layer
    B, H, W, Cin = x.shape
    Cout = int(w_flat.shape[1])
    Ho, Wo = H // 2, W // 2
    Wt = _round_up(Wo, 8)

    xpad = jnp.pad(x, ((0, 0), (1, 1), (1, 1), (0, 0)))
    phases = []
    for r in (0, 1):
        for s in (0, 1):
            ph = xpad[:, r::2, s::2, :]                  # (B, Ho+1, Wo+1, Cin)
            if Wt > Wo:
                ph = jnp.pad(ph, ((0, 0), (0, 0), (0, Wt - Wo), (0, 0)))
            phases.append(ph)

    def kernel(p00, p01, p10, p11, w_ref, s_ref, b_ref, o_ref):
        ph = (p00, p01, p10, p11)
        taps = []
        for dy in range(3):
            for dx in range(3):
                src = ph[(dy % 2) * 2 + (dx % 2)]
                oy, ox = dy // 2, dx // 2
                taps.append(src[0, oy:oy + Ho, ox:ox + Wt, :])
        slab = jnp.concatenate(taps, axis=-1).reshape(Ho * Wt, 9 * Cin)
        y = jnp.dot(slab, w_ref[...], preferred_element_type=jnp.float32)
        y = y * s_ref[...] + b_ref[...]
        if relu:
            y = jnp.maximum(y, 0.0)
        act = y.reshape(Ho, Wt, Cout)[:, :Wo, :]
        o_ref[...] = act[None].astype(o_ref.dtype)

    ph_spec = pl.BlockSpec((1, Ho + 1, Wt + 1, Cin), lambda b: (b, 0, 0, 0))
    return pl.pallas_call(
        kernel,
        out_shape=jax.ShapeDtypeStruct((B, Ho, Wo, Cout), x.dtype),
        grid_spec=pltpu.PrefetchScalarGridSpec(
            num_scalar_prefetch=0,
            grid=(B,),
            in_specs=[ph_spec, ph_spec, ph_spec, ph_spec,
                      pl.BlockSpec(w_flat.shape, lambda b: (0, 0)),
                      pl.BlockSpec(scale.shape, lambda b: (0, 0)),
                      pl.BlockSpec(bias.shape, lambda b: (0, 0))],
            out_specs=pl.BlockSpec((1, Ho, Wo, Cout), lambda b: (b, 0, 0, 0))),
        compiler_params=pltpu.CompilerParams(
            dimension_semantics=("parallel",)),
    )(*(phases + [w_flat, scale, bias]))


# -----------------------------------------------------------------------------
# Parameter folding / glue.
# -----------------------------------------------------------------------------
def _fold_layer(layer):
    """Fold (conv weight, eval-mode BN, relu flag) into kernel-ready tensors."""
    w = layer["w"]
    groups = layer.get("groups", 1)
    if groups > 1:
        # Grouped conv as an equivalent block-diagonal dense conv: off-group
        # weights are zero, so one im2col matmul computes all groups at once.
        kh, kw, cin_g, cout = w.shape
        cin = cin_g * groups
        cout_g = cout // groups
        wd = jnp.zeros((kh, kw, cin, cout), w.dtype)
        for g in range(groups):
            wd = wd.at[:, :, g * cin_g:(g + 1) * cin_g,
                       g * cout_g:(g + 1) * cout_g].set(
                           w[:, :, :, g * cout_g:(g + 1) * cout_g])
        w = wd
    cin, cout = int(w.shape[2]), int(w.shape[3])
    w_flat = w.reshape(9 * cin, cout)                    # tap order (dy, dx, cin)
    bn = layer["bn"]
    if bn is None:
        scale = jnp.ones((1, cout), jnp.float32)
        bias = jnp.zeros((1, cout), jnp.float32)
    else:
        s = bn["gamma"] / jnp.sqrt(bn["var"] + _BN_EPS)
        scale = s[None, :]
        bias = (bn["beta"] - bn["mean"] * s)[None, :]
    return (w_flat, scale, bias, bool(layer["relu"]))


def _pixel_shuffle_nhwc(x, r=2):
    B, H, W, C = x.shape
    c = C // (r * r)
    x = x.reshape(B, H, W, c, r, r)
    x = jnp.transpose(x, (0, 1, 4, 2, 5, 3))
    return x.reshape(B, H * r, W * r, c)


def _to_nhwc(t):
    return jnp.transpose(t, (0, 2, 3, 1))


# -----------------------------------------------------------------------------
# DenBlock forward (Pallas).
# -----------------------------------------------------------------------------
def denblock_forward(in0, in1, in2, noise_map, params):
    """in0/in1/in2: (B,3,H,W), noise_map: (B,1,H,W) NCHW -> (B,3,H,W) NCHW."""
    x_in = jnp.concatenate(
        [_to_nhwc(in0), _to_nhwc(noise_map), _to_nhwc(in1),
         _to_nhwc(noise_map), _to_nhwc(in2), _to_nhwc(noise_map)], axis=-1)
    L = {k: _fold_layer(v) for k, v in params.items()}

    # InputCvBlock: grouped conv (as block-diagonal dense) + conv, fused.
    x0 = _conv3x3_chain_pallas(x_in, [L["inc1"], L["inc2"]])
    # DownBlock 0: strided conv, then fused CvBlock.
    x1 = _conv3x3_chain_pallas(_conv3x3_s2_pallas(x0, L["d0_c0"]),
                               [L["d0_c1"], L["d0_c2"]])
    # DownBlock 1.
    x2 = _conv3x3_chain_pallas(_conv3x3_s2_pallas(x1, L["d1_c0"]),
                               [L["d1_c1"], L["d1_c2"]])
    # UpBlock 2: CvBlock + pre-shuffle conv fused into one 3-layer chain.
    x2 = _pixel_shuffle_nhwc(
        _conv3x3_chain_pallas(x2, [L["u2_c1"], L["u2_c2"], L["u2_c3"]]), 2)
    # UpBlock 1 on the skip sum.
    xu = _pixel_shuffle_nhwc(
        _conv3x3_chain_pallas(x1 + x2, [L["u1_c1"], L["u1_c2"], L["u1_c3"]]), 2)
    # OutputCvBlock on the skip sum (last conv: no BN, no ReLU).
    y = _conv3x3_chain_pallas(x0 + xu, [L["o_c1"], L["o_c2"]])
    # TODO(synk): PixelShuffle, the skip additions, the channel concat and the
    # final residual are pure layout / elementwise glue left to XLA.
    out = _to_nhwc(in1) - y
    return jnp.transpose(out, (0, 3, 1, 2))


# -----------------------------------------------------------------------------
# Pure-JAX reference (lax convolutions) for correctness checking.
# -----------------------------------------------------------------------------
def _ref_conv_bn_relu(x, layer, stride=1):
    y = jax.lax.conv_general_dilated(
        x, layer["w"], (stride, stride), ((1, 1), (1, 1)),
        dimension_numbers=("NHWC", "HWIO", "NHWC"),
        feature_group_count=layer.get("groups", 1),
        precision=jax.lax.Precision.HIGHEST)
    bn = layer["bn"]
    if bn is not None:
        y = (y - bn["mean"]) / jnp.sqrt(bn["var"] + _BN_EPS) * bn["gamma"] + bn["beta"]
    if layer["relu"]:
        y = jnp.maximum(y, 0.0)
    return y


def denblock_reference(in0, in1, in2, noise_map, p):
    x = jnp.concatenate(
        [_to_nhwc(in0), _to_nhwc(noise_map), _to_nhwc(in1),
         _to_nhwc(noise_map), _to_nhwc(in2), _to_nhwc(noise_map)], axis=-1)
    x0 = _ref_conv_bn_relu(_ref_conv_bn_relu(x, p["inc1"]), p["inc2"])
    x1 = _ref_conv_bn_relu(
        _ref_conv_bn_relu(_ref_conv_bn_relu(x0, p["d0_c0"], 2), p["d0_c1"]),
        p["d0_c2"])
    x2 = _ref_conv_bn_relu(
        _ref_conv_bn_relu(_ref_conv_bn_relu(x1, p["d1_c0"], 2), p["d1_c1"]),
        p["d1_c2"])
    x2 = _ref_conv_bn_relu(
        _ref_conv_bn_relu(_ref_conv_bn_relu(x2, p["u2_c1"]), p["u2_c2"]),
        p["u2_c3"])
    x2 = _pixel_shuffle_nhwc(x2, 2)
    xu = _ref_conv_bn_relu(
        _ref_conv_bn_relu(_ref_conv_bn_relu(x1 + x2, p["u1_c1"]), p["u1_c2"]),
        p["u1_c3"])
    xu = _pixel_shuffle_nhwc(xu, 2)
    y = _ref_conv_bn_relu(_ref_conv_bn_relu(x0 + xu, p["o_c1"]), p["o_c2"])
    out = _to_nhwc(in1) - y
    return jnp.transpose(out, (0, 3, 1, 2))


# -----------------------------------------------------------------------------
# Deterministic parameters (eval-mode DenBlock, num_input_frames=3).
# -----------------------------------------------------------------------------
def make_denblock_params(key, num_input_frames=3):
    chs0, chs1, chs2 = 32, 64, 128
    interm = 30
    it = iter(jax.random.split(key, 128))

    def conv_w(cin, cout):
        std = math.sqrt(2.0 / (9 * cin))                 # kaiming (relu)
        return std * jax.random.normal(next(it), (3, 3, cin, cout), jnp.float32)

    def bn(c):
        return {
            "gamma": 1.0 + 0.1 * jax.random.normal(next(it), (c,), jnp.float32),
            "beta": 0.1 * jax.random.normal(next(it), (c,), jnp.float32),
            "mean": 0.1 * jax.random.normal(next(it), (c,), jnp.float32),
            "var": 1.0 + 0.5 * jax.random.uniform(next(it), (c,), jnp.float32),
        }

    def layer(cin, cout, use_bn=True, relu=True, groups=1):
        return {"w": conv_w(cin, cout), "bn": bn(cout) if use_bn else None,
                "relu": relu, "groups": groups}

    p = {}
    # InputCvBlock: grouped conv (per-group 4 -> 30), then (3*30) -> 32.
    p["inc1"] = layer(4, num_input_frames * interm, groups=num_input_frames)
    p["inc2"] = layer(num_input_frames * interm, chs0)
    # DownBlock 0: 32 -> 64 (stride 2) + CvBlock(64, 64).
    p["d0_c0"] = layer(chs0, chs1)
    p["d0_c1"] = layer(chs1, chs1)
    p["d0_c2"] = layer(chs1, chs1)
    # DownBlock 1: 64 -> 128 (stride 2) + CvBlock(128, 128).
    p["d1_c0"] = layer(chs1, chs2)
    p["d1_c1"] = layer(chs2, chs2)
    p["d1_c2"] = layer(chs2, chs2)
    # UpBlock 2: CvBlock(128, 128) + conv 128 -> 64*4 (no BN/ReLU) + PixelShuffle.
    p["u2_c1"] = layer(chs2, chs2)
    p["u2_c2"] = layer(chs2, chs2)
    p["u2_c3"] = layer(chs2, chs1 * 4, use_bn=False, relu=False)
    # UpBlock 1: CvBlock(64, 64) + conv 64 -> 32*4 (no BN/ReLU) + PixelShuffle.
    p["u1_c1"] = layer(chs1, chs1)
    p["u1_c2"] = layer(chs1, chs1)
    p["u1_c3"] = layer(chs1, chs0 * 4, use_bn=False, relu=False)
    # OutputCvBlock: conv 32 -> 32 (BN + ReLU) + conv 32 -> 3 (plain).
    p["o_c1"] = layer(chs0, chs0)
    p["o_c2"] = layer(chs0, 3, use_bn=False, relu=False)
    return p


if __name__ == "__main__":
    B, H, W = 2, 16, 16
    key = jax.random.PRNGKey(0)
    k_in, k_par = jax.random.split(key)
    k0, k1, k2, kn = jax.random.split(k_in, 4)
    in0 = jax.random.normal(k0, (B, 3, H, W), jnp.float32)
    in1 = jax.random.normal(k1, (B, 3, H, W), jnp.float32)
    in2 = jax.random.normal(k2, (B, 3, H, W), jnp.float32)
    noise_map = 0.1 * jnp.abs(jax.random.normal(kn, (B, 1, H, W), jnp.float32))
    params = make_denblock_params(k_par)

    out = denblock_forward(in0, in1, in2, noise_map, params)
    out = jax.block_until_ready(out)

    ref = denblock_reference(in0, in1, in2, noise_map, params)
    assert out.shape == (B, 3, H, W), out.shape
    max_err = float(jnp.max(jnp.abs(out - ref)))
    assert jnp.allclose(out, ref, atol=2e-2, rtol=2e-2), max_err

    print("KERNEL_OK")
</pallas_src>

<mosaic_0001>
module attributes {stable_mosaic.version = 11 : i64} {
  func.func @kernel(%arg0: i32, %arg1: memref<1x16x16x12xf32, #tpu.memory_space<vmem>>, %arg2: memref<108x90xf32, #tpu.memory_space<vmem>>, %arg3: memref<1x90xf32, #tpu.memory_space<vmem>>, %arg4: memref<1x90xf32, #tpu.memory_space<vmem>>, %arg5: memref<810x32xf32, #tpu.memory_space<vmem>>, %arg6: memref<1x32xf32, #tpu.memory_space<vmem>>, %arg7: memref<1x32xf32, #tpu.memory_space<vmem>>, %arg8: memref<1x16x16x32xf32, #tpu.memory_space<vmem>>, %arg9: memref<18x18x12xf32, #tpu.memory_space<vmem>>, %arg10: memref<18x18x90xf32, #tpu.memory_space<vmem>>) attributes {dimension_semantics = [#tpu.dimension_semantics<parallel>], iteration_bounds = array<i64: 2>, scalar_prefetch = 0 : i64, scratch_operands = 2 : i64, tpu.core_type = #tpu.core_type<tc>, window_params = [{transform_indices = @transform_0, window_bounds = array<i64: 1, 16, 16, 12>}, {pipeline_mode = #tpu.pipeline_mode<synchronous>, transform_indices = @transform_1, window_bounds = array<i64: 108, 90>}, {pipeline_mode = #tpu.pipeline_mode<synchronous>, transform_indices = @transform_2, window_bounds = array<i64: 1, 90>}, {pipeline_mode = #tpu.pipeline_mode<synchronous>, transform_indices = @transform_3, window_bounds = array<i64: 1, 90>}, {pipeline_mode = #tpu.pipeline_mode<synchronous>, transform_indices = @transform_4, window_bounds = array<i64: 810, 32>}, {pipeline_mode = #tpu.pipeline_mode<synchronous>, transform_indices = @transform_5, window_bounds = array<i64: 1, 32>}, {pipeline_mode = #tpu.pipeline_mode<synchronous>, transform_indices = @transform_6, window_bounds = array<i64: 1, 32>}, {transform_indices = @transform_7, window_bounds = array<i64: 1, 16, 16, 32>}]} {
    %c0 = arith.constant 0 : index
    %c0_0 = arith.constant 0 : index
    %c0_1 = arith.constant 0 : index
    %c0_2 = arith.constant 0 : index
    %0 = vector.load %arg1[%c0, %c0_0, %c0_1, %c0_2] : memref<1x16x16x12xf32, #tpu.memory_space<vmem>>, vector<1x16x16x12xf32>
    %1 = vector.shape_cast %0 : vector<1x16x16x12xf32> to vector<16x16x12xf32>
    %cst = arith.constant 0.000000e+00 : f32
    %2 = vector.broadcast %cst : f32 to vector<18x18x12xf32>
    %c0_3 = arith.constant 0 : index
    %c0_4 = arith.constant 0 : index
    %c0_5 = arith.constant 0 : index
    %3 = vector.load %arg9[%c0_3, %c0_4, %c0_5] : memref<18x18x12xf32, #tpu.memory_space<vmem>>, vector<18x18x12xf32>
    tpu.vector_store %arg9[%c0_3, %c0_4, %c0_5], %2 {strides = array<i32>} : memref<18x18x12xf32, #tpu.memory_space<vmem>>, vector<18x18x12xf32>,
    %c1 = arith.constant 1 : index
    %c1_6 = arith.constant 1 : index
    %c0_7 = arith.constant 0 : index
    %4 = vector.load %arg9[%c1, %c1_6, %c0_7] : memref<18x18x12xf32, #tpu.memory_space<vmem>>, vector<16x16x12xf32>
    tpu.vector_store %arg9[%c1, %c1_6, %c0_7], %1 {strides = array<i32>} : memref<18x18x12xf32, #tpu.memory_space<vmem>>, vector<16x16x12xf32>,
    %c0_8 = arith.constant 0 : index
    %c0_9 = arith.constant 0 : index
    %c0_10 = arith.constant 0 : index
    %5 = vector.load %arg9[%c0_8, %c0_9, %c0_10] : memref<18x18x12xf32, #tpu.memory_space<vmem>>, vector<16x16x12xf32>
    %c0_11 = arith.constant 0 : index
    %c1_12 = arith.constant 1 : index
    %c0_13 = arith.constant 0 : index
    %6 = vector.load %arg9[%c0_11, %c1_12, %c0_13] : memref<18x18x12xf32, #tpu.memory_space<vmem>>, vector<16x16x12xf32>
    %c0_14 = arith.constant 0 : index
    %c2 = arith.constant 2 : index
    %c0_15 = arith.constant 0 : index
    %7 = vector.load %arg9[%c0_14, %c2, %c0_15] : memref<18x18x12xf32, #tpu.memory_space<vmem>>, vector<16x16x12xf32>
    %c1_16 = arith.constant 1 : index
    %c0_17 = arith.constant 0 : index
    %c0_18 = arith.constant 0 : index
    %8 = vector.load %arg9[%c1_16, %c0_17, %c0_18] : memref<18x18x12xf32, #tpu.memory_space<vmem>>, vector<16x16x12xf32>
    %c1_19 = arith.constant 1 : index
    %c1_20 = arith.constant 1 : index
    %c0_21 = arith.constant 0 : index
    %9 = vector.load %arg9[%c1_19, %c1_20, %c0_21] : memref<18x18x12xf32, #tpu.memory_space<vmem>>, vector<16x16x12xf32>
    %c1_22 = arith.constant 1 : index
    %c2_23 = arith.constant 2 : index
    %c0_24 = arith.constant 0 : index
    %10 = vector.load %arg9[%c1_22, %c2_23, %c0_24] : memref<18x18x12xf32, #tpu.memory_space<vmem>>, vector<16x16x12xf32>
    %c2_25 = arith.constant 2 : index
    %c0_26 = arith.constant 0 : index
    %c0_27 = arith.constant 0 : index
    %11 = vector.load %arg9[%c2_25, %c0_26, %c0_27] : memref<18x18x12xf32, #tpu.memory_space<vmem>>, vector<16x16x12xf32>
    %c2_28 = arith.constant 2 : index
    %c1_29 = arith.constant 1 : index
    %c0_30 = arith.constant 0 : index
    %12 = vector.load %arg9[%c2_28, %c1_29, %c0_30] : memref<18x18x12xf32, #tpu.memory_space<vmem>>, vector<16x16x12xf32>
    %c2_31 = arith.constant 2 : index
    %c2_32 = arith.constant 2 : index
    %c0_33 = arith.constant 0 : index
    %13 = vector.load %arg9[%c2_31, %c2_32, %c0_33] : memref<18x18x12xf32, #tpu.memory_space<vmem>>, vector<16x16x12xf32>
    %14 = tpu.concatenate %5, %6, %7, %8, %9, %10, %11, %12, %13 in 2 : vector<16x16x12xf32>, vector<16x16x12xf32>, vector<16x16x12xf32>, vector<16x16x12xf32>, vector<16x16x12xf32>, vector<16x16x12xf32>, vector<16x16x12xf32>, vector<16x16x12xf32>, vector<16x16x12xf32> -> vector<16x16x108xf32>
    %15 = vector.shape_cast %14 : vector<16x16x108xf32> to vector<256x108xf32>
    %c0_34 = arith.constant 0 : index
    %c0_35 = arith.constant 0 : index
    %16 = vector.load %arg2[%c0_34, %c0_35] : memref<108x90xf32, #tpu.memory_space<vmem>>, vector<108x90xf32>
    %cst_36 = arith.constant dense<0.000000e+00> : vector<256x90xf32>
    %17 = tpu.matmul %15, %16, %cst_36 {dimension_numbers = #tpu.dot_dimension_numbers<[1], [0], [0], [1], [0, 0, 1, 1], [], []>} : vector<256x108xf32>, vector<108x90xf32>, vector<256x90xf32> -> vector<256x90xf32>
    %c0_37 = arith.constant 0 : index
    %c0_38 = arith.constant 0 : index
    %18 = vector.load %arg3[%c0_37, %c0_38] : memref<1x90xf32, #tpu.memory_space<vmem>>, vector<1x90xf32>
    %19 = vector.broadcast %18 : vector<1x90xf32> to vector<256x90xf32>
    %20 = arith.mulf %17, %19 : vector<256x90xf32>
    %c0_39 = arith.constant 0 : index
    %c0_40 = arith.constant 0 : index
    %21 = vector.load %arg4[%c0_39, %c0_40] : memref<1x90xf32, #tpu.memory_space<vmem>>, vector<1x90xf32>
    %22 = vector.broadcast %21 : vector<1x90xf32> to vector<256x90xf32>
    %23 = arith.addf %20, %22 : vector<256x90xf32>
    %cst_41 = arith.constant 0.000000e+00 : f32
    %24 = vector.broadcast %cst_41 : f32 to vector<256x90xf32>
    %25 = arith.maximumf %23, %24 : vector<256x90xf32>
    %26 = vector.shape_cast %25 : vector<256x90xf32> to vector<16x16x90xf32>
    %cst_42 = arith.constant 0.000000e+00 : f32
    %27 = vector.broadcast %cst_42 : f32 to vector<18x18x90xf32>
    %c0_43 = arith.constant 0 : index
    %c0_44 = arith.constant 0 : index
    %c0_45 = arith.constant 0 : index
    %28 = vector.load %arg10[%c0_43, %c0_44, %c0_45] : memref<18x18x90xf32, #tpu.memory_space<vmem>>, vector<18x18x90xf32>
    tpu.vector_store %arg10[%c0_43, %c0_44, %c0_45], %27 {strides = array<i32>} : memref<18x18x90xf32, #tpu.memory_space<vmem>>, vector<18x18x90xf32>,
    %c1_46 = arith.constant 1 : index
    %c1_47 = arith.constant 1 : index
    %c0_48 = arith.constant 0 : index
    %29 = vector.load %arg10[%c1_46, %c1_47, %c0_48] : memref<18x18x90xf32, #tpu.memory_space<vmem>>, vector<16x16x90xf32>
    tpu.vector_store %arg10[%c1_46, %c1_47, %c0_48], %26 {strides = array<i32>} : memref<18x18x90xf32, #tpu.memory_space<vmem>>, vector<16x16x90xf32>,
    %c0_49 = arith.constant 0 : index
    %c0_50 = arith.constant 0 : index
    %c0_51 = arith.constant 0 : index
    %30 = vector.load %arg10[%c0_49, %c0_50, %c0_51] : memref<18x18x90xf32, #tpu.memory_space<vmem>>, vector<16x16x90xf32>
    %c0_52 = arith.constant 0 : index
    %c1_53 = arith.constant 1 : index
    %c0_54 = arith.constant 0 : index
    %31 = vector.load %arg10[%c0_52, %c1_53, %c0_54] : memref<18x18x90xf32, #tpu.memory_space<vmem>>, vector<16x16x90xf32>
    %c0_55 = arith.constant 0 : index
    %c2_56 = arith.constant 2 : index
    %c0_57 = arith.constant 0 : index
    %32 = vector.load %arg10[%c0_55, %c2_56, %c0_57] : memref<18x18x90xf32, #tpu.memory_space<vmem>>, vector<16x16x90xf32>
    %c1_58 = arith.constant 1 : index
    %c0_59 = arith.constant 0 : index
    %c0_60 = arith.constant 0 : index
    %33 = vector.load %arg10[%c1_58, %c0_59, %c0_60] : memref<18x18x90xf32, #tpu.memory_space<vmem>>, vector<16x16x90xf32>
    %c1_61 = arith.constant 1 : index
    %c1_62 = arith.constant 1 : index
    %c0_63 = arith.constant 0 : index
    %34 = vector.load %arg10[%c1_61, %c1_62, %c0_63] : memref<18x18x90xf32, #tpu.memory_space<vmem>>, vector<16x16x90xf32>
    %c1_64 = arith.constant 1 : index
    %c2_65 = arith.constant 2 : index
    %c0_66 = arith.constant 0 : index
    %35 = vector.load %arg10[%c1_64, %c2_65, %c0_66] : memref<18x18x90xf32, #tpu.memory_space<vmem>>, vector<16x16x90xf32>
    %c2_67 = arith.constant 2 : index
    %c0_68 = arith.constant 0 : index
    %c0_69 = arith.constant 0 : index
    %36 = vector.load %arg10[%c2_67, %c0_68, %c0_69] : memref<18x18x90xf32, #tpu.memory_space<vmem>>, vector<16x16x90xf32>
    %c2_70 = arith.constant 2 : index
    %c1_71 = arith.constant 1 : index
    %c0_72 = arith.constant 0 : index
    %37 = vector.load %arg10[%c2_70, %c1_71, %c0_72] : memref<18x18x90xf32, #tpu.memory_space<vmem>>, vector<16x16x90xf32>
    %c2_73 = arith.constant 2 : index
    %c2_74 = arith.constant 2 : index
    %c0_75 = arith.constant 0 : index
    %38 = vector.load %arg10[%c2_73, %c2_74, %c0_75] : memref<18x18x90xf32, #tpu.memory_space<vmem>>, vector<16x16x90xf32>
    %39 = tpu.concatenate %30, %31, %32, %33, %34, %35, %36, %37, %38 in 2 : vector<16x16x90xf32>, vector<16x16x90xf32>, vector<16x16x90xf32>, vector<16x16x90xf32>, vector<16x16x90xf32>, vector<16x16x90xf32>, vector<16x16x90xf32>, vector<16x16x90xf32>, vector<16x16x90xf32> -> vector<16x16x810xf32>
    %40 = vector.shape_cast %39 : vector<16x16x810xf32> to vector<256x810xf32>
    %c0_76 = arith.constant 0 : index
    %c0_77 = arith.constant 0 : index
    %41 = vector.load %arg5[%c0_76, %c0_77] : memref<810x32xf32, #tpu.memory_space<vmem>>, vector<810x32xf32>
    %cst_78 = arith.constant dense<0.000000e+00> : vector<256x32xf32>
    %42 = tpu.matmul %40, %41, %cst_78 {dimension_numbers = #tpu.dot_dimension_numbers<[1], [0], [0], [1], [0, 0, 1, 1], [], []>} : vector<256x810xf32>, vector<810x32xf32>, vector<256x32xf32> -> vector<256x32xf32>
    %c0_79 = arith.constant 0 : index
    %c0_80 = arith.constant 0 : index
    %43 = vector.load %arg6[%c0_79, %c0_80] : memref<1x32xf32, #tpu.memory_space<vmem>>, vector<1x32xf32>
    %44 = vector.broadcast %43 : vector<1x32xf32> to vector<256x32xf32>
    %45 = arith.mulf %42, %44 : vector<256x32xf32>
    %c0_81 = arith.constant 0 : index
    %c0_82 = arith.constant 0 : index
    %46 = vector.load %arg7[%c0_81, %c0_82] : memref<1x32xf32, #tpu.memory_space<vmem>>, vector<1x32xf32>
    %47 = vector.broadcast %46 : vector<1x32xf32> to vector<256x32xf32>
    %48 = arith.addf %45, %47 : vector<256x32xf32>
    %cst_83 = arith.constant 0.000000e+00 : f32
    %49 = vector.broadcast %cst_83 : f32 to vector<256x32xf32>
    %50 = arith.maximumf %48, %49 : vector<256x32xf32>
    %51 = vector.shape_cast %50 : vector<256x32xf32> to vector<16x16x32xf32>
    %52 = vector.shape_cast %51 : vector<16x16x32xf32> to vector<1x16x16x32xf32>
    %c0_84 = arith.constant 0 : index
    %c0_85 = arith.constant 0 : index
    %c0_86 = arith.constant 0 : index
    %c0_87 = arith.constant 0 : index
    %53 = vector.load %arg8[%c0_84, %c0_85, %c0_86, %c0_87] : memref<1x16x16x32xf32, #tpu.memory_space<vmem>>, vector<1x16x16x32xf32>
    tpu.vector_store %arg8[%c0_84, %c0_85, %c0_86, %c0_87], %52 {strides = array<i32>} : memref<1x16x16x32xf32, #tpu.memory_space<vmem>>, vector<1x16x16x32xf32>,
    return
  }
  func.func @transform_0(%arg0: i32) -> (i32, i32, i32, i32) {
    %c0_i32 = arith.constant 0 : i32
    %c0_i32_0 = arith.constant 0 : i32
    %c0_i32_1 = arith.constant 0 : i32
    %c0_i32_2 = arith.constant 0 : i32
    return %arg0, %c0_i32, %c0_i32_0, %c0_i32_1 : i32, i32, i32, i32
  }
  func.func @transform_1(%arg0: i32) -> (i32, i32) {
    %c0_i32 = arith.constant 0 : i32
    %c0_i32_0 = arith.constant 0 : i32
    %c0_i32_1 = arith.constant 0 : i32
    return %c0_i32, %c0_i32_0 : i32, i32
  }
  func.func @transform_2(%arg0: i32) -> (i32, i32) {
    %c0_i32 = arith.constant 0 : i32
    %c0_i32_0 = arith.constant 0 : i32
    %c0_i32_1 = arith.constant 0 : i32
    return %c0_i32, %c0_i32_0 : i32, i32
  }
  func.func @transform_3(%arg0: i32) -> (i32, i32) {
    %c0_i32 = arith.constant 0 : i32
    %c0_i32_0 = arith.constant 0 : i32
    %c0_i32_1 = arith.constant 0 : i32
    return %c0_i32, %c0_i32_0 : i32, i32
  }
  func.func @transform_4(%arg0: i32) -> (i32, i32) {
    %c0_i32 = arith.constant 0 : i32
    %c0_i32_0 = arith.constant 0 : i32
    %c0_i32_1 = arith.constant 0 : i32
    return %c0_i32, %c0_i32_0 : i32, i32
  }
  func.func @transform_5(%arg0: i32) -> (i32, i32) {
    %c0_i32 = arith.constant 0 : i32
    %c0_i32_0 = arith.constant 0 : i32
    %c0_i32_1 = arith.constant 0 : i32
    return %c0_i32, %c0_i32_0 : i32, i32
  }
  func.func @transform_6(%arg0: i32) -> (i32, i32) {
    %c0_i32 = arith.constant 0 : i32
    %c0_i32_0 = arith.constant 0 : i32
    %c0_i32_1 = arith.constant 0 : i32
    return %c0_i32, %c0_i32_0 : i32, i32
  }
  func.func @transform_7(%arg0: i32) -> (i32, i32, i32, i32) {
    %c0_i32 = arith.constant 0 : i32
    %c0_i32_0 = arith.constant 0 : i32
    %c0_i32_1 = arith.constant 0 : i32
    %c0_i32_2 = arith.constant 0 : i32
    return %arg0, %c0_i32, %c0_i32_0, %c0_i32_1 : i32, i32, i32, i32
  }
}

</mosaic_0001>

<llo_original>
// kernel: tpu_custom_call.1
$region0: #{tpu_custom_call.1}
  #allocation0 [shape = 'u32[]', space=smem, size = 0x4, offset = 0x4, fixed_abs, tag = 'smem constant byte address 0x4 - core index']
  #allocation1 [shape = 'u32[144,128]{1,0:T(1,128)}', space=vmem, size = 0x12000, scoped, tag = 'internal scratch']
  #allocation2 [shape = 'f32[18,18,12]{2,1,0:T(8,128)}', space=vmem, size = 0x36000, scoped, tag = 'scratch operand']
  #allocation3 [shape = 'f32[18,18,90]{2,1,0:T(8,128)}', space=vmem, size = 0x36000, scoped, tag = 'scratch operand']
  %s0 = inlined_call_operand.vmem [shape: f32[2,16,16,12], index: 0, kind: input, shape index: {}]
  %s1 = inlined_call_operand.vmem [shape: f32[108,90], index: 1, kind: input, shape index: {}]
  %s2 = inlined_call_operand.vmem [shape: f32[1,90], index: 2, kind: input, shape index: {}]
  %s3 = inlined_call_operand.vmem [shape: f32[1,90], index: 3, kind: input, shape index: {}]
  %s4 = inlined_call_operand.vmem [shape: f32[810,32], index: 4, kind: input, shape index: {}]
  %s5 = inlined_call_operand.vmem [shape: f32[1,32], index: 5, kind: input, shape index: {}]
  %s6 = inlined_call_operand.vmem [shape: f32[1,32], index: 6, kind: input, shape index: {}]
  %s7 = inlined_call_operand.hbm [shape: f32[2,16,16,32], index: 7, kind: output, shape index: {}]
  %s8 = sld [smem:[#allocation0]]
  $region61: #{tpu_custom_call.1} parent=0
    _
  %s10 = ssub.s32 1, %s8
  %s11 = scalar_select 0, %s10, %s8
  $region1: #{tpu_custom_call.1} parent=0
    #allocation4 [shape = 'u8[262144]{0}', space=vmem, size = 0x40000, scoped, tag = 'output window, operand 0']
    #allocation5 [shape = 's32[2]{0}', space=sflag, size = 0x8, scoped, tag = 'scoped memory for tpu_custom_call.1']
    %12 = vsyncpa [#allocation5], 0
    %s13 = scalar_lea.sflag [#allocation5], 1
    %14 = vsyncpa %s13, 0
    loop: start=0, step=1, limit=4
    $region2: #{tpu_custom_call.1} parent=1 // loop_pre_header
      _
    $region3: #{tpu_custom_call.1} parent=1 // loop_header
      %s16 = sphi 0, %s20
      %p17 = scmp.ge.s32.totalorder %s16, 4
      %s26 = sphi 0, %s28
      %s29 = sphi 0, %s26
      %s30 = sphi 0, %s29
      %s46 = sphi 0, %s30
      %s50 = sphi 0, %s50
      %s52 = sphi 0, %s50
      %s53 = sphi 0, %s52
      %s67 = sphi 0, %s53
      %s71 = sphi 0, %s71
      %s73 = sphi 0, %s71
      %s74 = sphi 0, %s73
      %s88 = sphi 0, %s74
      %s92 = sphi 0, %s92
      %s94 = sphi 0, %s92
      %s95 = sphi 0, %s94
      %s109 = sphi 0, %s95
      %s113 = sphi 0, %s113
      %s115 = sphi 0, %s113
      %s116 = sphi 0, %s115
      %s130 = sphi 0, %s116
      %s134 = sphi 0, %s134
      %s136 = sphi 0, %s134
      %s137 = sphi 0, %s136
      %s151 = sphi 0, %s137
      %s155 = sphi 0, %s155
      %s157 = sphi 0, %s155
      %s158 = sphi 0, %s157
      %s172 = sphi 0, %s158
      %s178 = sphi 0, %s180
      %s181 = sphi 0, %s178
      %s182 = sphi 0, %s181
      %s198 = sphi 0, %s182
    $region4: #{tpu_custom_call.1} parent=1 // loop_header_branch
      %19 = sbr.rel (%p17) target = $region8
    $region5: #{tpu_custom_call.1} parent=1 // loop_body
      %s21 = ssub.s32 %s16, 1
      %s22 = ssub.s32 %s16, 2
      %s23 = sadd.s32 %s16, 1
      %s24 = ssub.s32 %s16, %s23
      %p25 = scmp.eq.s32.totalorder %s24, 0
      %s27 = sadd.s32 %s26, 1
      %s28 = scalar_select %p25, %s26, %s27
      %p31 = pneg %p25
      %p32 = scmp.eq.s32.totalorder %s16, 1
      %p33 = por %p31, %p32
      %p34 = scmp.ne.s32.totalorder %s26, %s29
      %p35 = scmp.eq.s32.totalorder %s16, 0
      %p36 = por %p34, %p35
      %p37 = scmp.ne.s32.totalorder %s26, %s29
      %p38 = scmp.eq.s32.totalorder %s21, 1
      %p39 = por %p37, %p38
      %p40 = scmp.ne.s32.totalorder %s29, %s30
      %p41 = scmp.eq.s32.totalorder %s21, 0
      %p42 = por %p40, %p41
      %p43 = scmp.ne.s32.totalorder %s29, %s30
      %p44 = scmp.eq.s32.totalorder %s22, 1
      %p45 = por %p43, %p44
      %p47 = scmp.ne.s32.totalorder %s30, %s46
      %p48 = scmp.eq.s32.totalorder %s22, 0
      %p49 = por %p47, %p48
      %s51 = sadd.s32 %s50, 1
      %p54 = scmp.eq.s32.totalorder %s16, 1
      %p55 = scmp.ne.s32.totalorder %s50, %s52
      %p56 = scmp.eq.s32.totalorder %s16, 0
      %p57 = por %p55, %p56
      %p58 = scmp.ne.s32.totalorder %s50, %s52
      %p59 = scmp.eq.s32.totalorder %s21, 1
      %p60 = por %p58, %p59
      %p61 = scmp.ne.s32.totalorder %s52, %s53
      %p62 = scmp.eq.s32.totalorder %s21, 0
      %p63 = por %p61, %p62
      %p64 = scmp.ne.s32.totalorder %s52, %s53
      %p65 = scmp.eq.s32.totalorder %s22, 1
      %p66 = por %p64, %p65
      %p68 = scmp.ne.s32.totalorder %s53, %s67
      %p69 = scmp.eq.s32.totalorder %s22, 0
      %p70 = por %p68, %p69
      %s72 = sadd.s32 %s71, 1
      %p75 = scmp.eq.s32.totalorder %s16, 1
      %p76 = scmp.ne.s32.totalorder %s71, %s73
      %p77 = scmp.eq.s32.totalorder %s16, 0
      %p78 = por %p76, %p77
      %p79 = scmp.ne.s32.totalorder %s71, %s73
      %p80 = scmp.eq.s32.totalorder %s21, 1
      %p81 = por %p79, %p80
      %p82 = scmp.ne.s32.totalorder %s73, %s74
      %p83 = scmp.eq.s32.totalorder %s21, 0
      %p84 = por %p82, %p83
      %p85 = scmp.ne.s32.totalorder %s73, %s74
      %p86 = scmp.eq.s32.totalorder %s22, 1
      %p87 = por %p85, %p86
      %p89 = scmp.ne.s32.totalorder %s74, %s88
      %p90 = scmp.eq.s32.totalorder %s22, 0
      %p91 = por %p89, %p90
      %s93 = sadd.s32 %s92, 1
      %p96 = scmp.eq.s32.totalorder %s16, 1
      %p97 = scmp.ne.s32.totalorder %s92, %s94
      %p98 = scmp.eq.s32.totalorder %s16, 0
      %p99 = por %p97, %p98
      %p100 = scmp.ne.s32.totalorder %s92, %s94
      %p101 = scmp.eq.s32.totalorder %s21, 1
      %p102 = por %p100, %p101
      %p103 = scmp.ne.s32.totalorder %s94, %s95
      %p104 = scmp.eq.s32.totalorder %s21, 0
      %p105 = por %p103, %p104
      %p106 = scmp.ne.s32.totalorder %s94, %s95
      %p107 = scmp.eq.s32.totalorder %s22, 1
      %p108 = por %p106, %p107
      %p110 = scmp.ne.s32.totalorder %s95, %s109
      %p111 = scmp.eq.s32.totalorder %s22, 0
      %p112 = por %p110, %p111
      %s114 = sadd.s32 %s113, 1
      %p117 = scmp.eq.s32.totalorder %s16, 1
      %p118 = scmp.ne.s32.totalorder %s113, %s115
      %p119 = scmp.eq.s32.totalorder %s16, 0
      %p120 = por %p118, %p119
      %p121 = scmp.ne.s32.totalorder %s113, %s115
      %p122 = scmp.eq.s32.totalorder %s21, 1
      %p123 = por %p121, %p122
      %p124 = scmp.ne.s32.totalorder %s115, %s116
      %p125 = scmp.eq.s32.totalorder %s21, 0
      %p126 = por %p124, %p125
      %p127 = scmp.ne.s32.totalorder %s115, %s116
      %p128 = scmp.eq.s32.totalorder %s22, 1
      %p129 = por %p127, %p128
      %p131 = scmp.ne.s32.totalorder %s116, %s130
      %p132 = scmp.eq.s32.totalorder %s22, 0
      %p133 = por %p131, %p132
      %s135 = sadd.s32 %s134, 1
      %p138 = scmp.eq.s32.totalorder %s16, 1
      %p139 = scmp.ne.s32.totalorder %s134, %s136
      %p140 = scmp.eq.s32.totalorder %s16, 0
      %p141 = por %p139, %p140
      %p142 = scmp.ne.s32.totalorder %s134, %s136
      %p143 = scmp.eq.s32.totalorder %s21, 1
      %p144 = por %p142, %p143
      %p145 = scmp.ne.s32.totalorder %s136, %s137
      %p146 = scmp.eq.s32.totalorder %s21, 0
      %p147 = por %p145, %p146
      %p148 = scmp.ne.s32.totalorder %s136, %s137
      %p149 = scmp.eq.s32.totalorder %s22, 1
      %p150 = por %p148, %p149
      %p152 = scmp.ne.s32.totalorder %s137, %s151
      %p153 = scmp.eq.s32.totalorder %s22, 0
      %p154 = por %p152, %p153
      %s156 = sadd.s32 %s155, 1
      %p159 = scmp.eq.s32.totalorder %s16, 1
      %p160 = scmp.ne.s32.totalorder %s155, %s157
      %p161 = scmp.eq.s32.totalorder %s16, 0
      %p162 = por %p160, %p161
      %p163 = scmp.ne.s32.totalorder %s155, %s157
      %p164 = scmp.eq.s32.totalorder %s21, 1
      %p165 = por %p163, %p164
      %p166 = scmp.ne.s32.totalorder %s157, %s158
      %p167 = scmp.eq.s32.totalorder %s21, 0
      %p168 = por %p166, %p167
      %p169 = scmp.ne.s32.totalorder %s157, %s158
      %p170 = scmp.eq.s32.totalorder %s22, 1
      %p171 = por %p169, %p170
      %p173 = scmp.ne.s32.totalorder %s158, %s172
      %p174 = scmp.eq.s32.totalorder %s22, 0
      %p175 = por %p173, %p174
      %s176 = ssub.s32 %s16, %s23
      %p177 = scmp.eq.s32.totalorder %s176, 0
      %s179 = sadd.s32 %s178, 1
      %s180 = scalar_select %p177, %s178, %s179
      %p183 = pneg %p177
      %p184 = scmp.eq.s32.totalorder %s16, 1
      %p185 = por %p183, %p184
      %p186 = scmp.ne.s32.totalorder %s178, %s181
      %p187 = scmp.eq.s32.totalorder %s16, 0
      %p188 = por %p186, %p187
      %p189 = scmp.ne.s32.totalorder %s178, %s181
      %p190 = scmp.eq.s32.totalorder %s21, 1
      %p191 = por %p189, %p190
      %p192 = scmp.ne.s32.totalorder %s181, %s182
      %p193 = scmp.eq.s32.totalorder %s21, 0
      %p194 = por %p192, %p193
      %p195 = scmp.ne.s32.totalorder %s181, %s182
      %p196 = scmp.eq.s32.totalorder %s22, 1
      %p197 = por %p195, %p196
      %p199 = scmp.ne.s32.totalorder %s182, %s198
      %p200 = scmp.eq.s32.totalorder %s22, 0
      %p201 = por %p199, %p200
      %p202 = scmp.le.s32.totalorder 1, %s16
      %p203 = scmp.lt.s32.totalorder %s16, 3
      %p204 = pnand %p202, %p203
      %p205 = pneg %p204
      // Predicated region
      $region9: #{tpu_custom_call.1} parent=5 // pred_check
        _
      $region10: #{tpu_custom_call.1} parent=5 // pred_check_branch
        %207 = sbr.rel (%p204) target = $region12
      $region11: #{tpu_custom_call.1} parent=5 // pred_region
        %s208 = ssub.s32 %s16, 1
        // Predicated region
        $region13: #{tpu_custom_call.1} parent=11 // pred_check
          %p209 = pneg %p63
        $region14: #{tpu_custom_call.1} parent=11 // pred_check_branch
          %211 = sbr.rel (%p209) target = $region16
        $region15: #{tpu_custom_call.1} parent=11 // pred_region
          _
        $region16: #{tpu_custom_call.1} parent=11 // pred_fallthru
          _
        // Predicated region
        $region17: #{tpu_custom_call.1} parent=11 // pred_check
          %p212 = pneg %p84
        $region18: #{tpu_custom_call.1} parent=11 // pred_check_branch
          %214 = sbr.rel (%p212) target = $region20
        $region19: #{tpu_custom_call.1} parent=11 // pred_region
          _
        $region20: #{tpu_custom_call.1} parent=11 // pred_fallthru
          _
        // Predicated region
        $region21: #{tpu_custom_call.1} parent=11 // pred_check
          %p215 = pneg %p105
        $region22: #{tpu_custom_call.1} parent=11 // pred_check_branch
          %217 = sbr.rel (%p215) target = $region24
        $region23: #{tpu_custom_call.1} parent=11 // pred_region
          _
        $region24: #{tpu_custom_call.1} parent=11 // pred_fallthru
          _
        // Predicated region
        $region25: #{tpu_custom_call.1} parent=11 // pred_check
          %p218 = pneg %p126
        $region26: #{tpu_custom_call.1} parent=11 // pred_check_branch
          %220 = sbr.rel (%p218) target = $region28
        $region27: #{tpu_custom_call.1} parent=11 // pred_region
          _
        $region28: #{tpu_custom_call.1} parent=11 // pred_fallthru
          _
        // Predicated region
        $region29: #{tpu_custom_call.1} parent=11 // pred_check
          %p221 = pneg %p147
        $region30: #{tpu_custom_call.1} parent=11 // pred_check_branch
          %223 = sbr.rel (%p221) target = $region32
        $region31: #{tpu_custom_call.1} parent=11 // pred_region
          _
        $region32: #{tpu_custom_call.1} parent=11 // pred_fallthru
          _
        // Predicated region
        $region33: #{tpu_custom_call.1} parent=11 // pred_check
          %p224 = pneg %p168
        $region34: #{tpu_custom_call.1} parent=11 // pred_check_branch
          %226 = sbr.rel (%p224) target = $region36
        $region35: #{tpu_custom_call.1} parent=11 // pred_region
          _
        $region36: #{tpu_custom_call.1} parent=11 // pred_fallthru
          _
      $region12: #{tpu_custom_call.1} parent=5 // pred_fallthru
        _
      %p227 = scmp.lt.s32.totalorder %s16, 2
      // Predicated region
      $region37: #{tpu_custom_call.1} parent=5 // pred_check
        %p228 = pneg %p227
      $region38: #{tpu_custom_call.1} parent=5 // pred_check_branch
        %230 = sbr.rel (%p228) target = $region40
      $region39: #{tpu_custom_call.1} parent=5 // pred_region
        // Predicated region
        $region41: #{tpu_custom_call.1} parent=39 // pred_check
          %p231 = pneg %p36
        $region42: #{tpu_custom_call.1} parent=39 // pred_check_branch
          %233 = sbr.rel (%p231) target = $region44
        $region43: #{tpu_custom_call.1} parent=39 // pred_region
          %p234 = scmp.lt.s32.totalorder %s16, 1
          %s235 = scalar_select %p234, %s16, 1
          %s236 = smul.addr %s235, 32
          %s237 = smul.addr %s236, 8
          %s238 = scalar_lea.vmem %s0, %s237
        $region44: #{tpu_custom_call.1} parent=39 // pred_fallthru
          _
      $region40: #{tpu_custom_call.1} parent=5 // pred_fallthru
        _
      %p239 = scmp.le.s32.totalorder 1, %s16
      %p240 = scmp.lt.s32.totalorder %s16, 3
      %p241 = pnand %p239, %p240
      %p242 = pneg %p241
      // Predicated region
      $region45: #{tpu_custom_call.1} parent=5 // pred_check
        _
      $region46: #{tpu_custom_call.1} parent=5 // pred_check_branch
        %244 = sbr.rel (%p241) target = $region48
      $region47: #{tpu_custom_call.1} parent=5 // pred_region
        %s245 = ssub.s32 %s16, 1
        %p246 = scmp.lt.s32.totalorder %s21, 1
        %s247 = scalar_select %p246, %s21, 1
        %s248 = smul.addr %s247, 32
        %s249 = smul.addr %s248, 8
        %s250 = scalar_lea.vmem %s0, %s249
        %p251 = pneg %p42
        %p252 = pneg %p39
        %p253 = pneg %p63
        %p254 = pneg %p60
        %p255 = pneg %p84
        %p256 = pneg %p81
        %p257 = pneg %p105
        %p258 = pneg %p102
        %p259 = pneg %p126
        %p260 = pneg %p123
        %p261 = pneg %p147
        %p262 = pneg %p144
        %p263 = pneg %p168
        %p264 = pneg %p165
        %p265 = pneg %p194
        %p266 = pneg %p191
        %s267 = sand.u32 %s181, 1
        %s268 = scalar_lea.sflag [#allocation5], %s267
        %s269 = sand.u32 %s181, 1
        %s270 = smul.addr %s269, 256
        %s271 = scalar_lea.vmem [#allocation4], %s270
        %p272 = scmp.lt.s32.totalorder %s21, 1
        %s273 = scalar_select %p272, %s21, 1
        %s274 = smul.addr %s273, 32
        %s275 = smul.addr %s274, 8
        %s276 = scalar_lea.vmem %s0, %s275
        %v277 = vld [vmem:[%s276] sm:$0xff]
        %v278 = vld [vmem:[%s276 + $0x8] sm:$0xff]
        %v279 = vld [vmem:[%s276 + $0x10] sm:$0xff]
        %v280 = vld [vmem:[%s276 + $0x18] sm:$0xff]
        %v281 = vld [vmem:[%s276 + $0x20] sm:$0xff]
        %v282 = vld [vmem:[%s276 + $0x28] sm:$0xff]
        %v283 = vld [vmem:[%s276 + $0x30] sm:$0xff]
        %v284 = vld [vmem:[%s276 + $0x38] sm:$0xff]
        %v285 = vld [vmem:[%s276 + $0x40] sm:$0xff]
        %v286 = vld [vmem:[%s276 + $0x48] sm:$0xff]
        %v287 = vld [vmem:[%s276 + $0x50] sm:$0xff]
        %v288 = vld [vmem:[%s276 + $0x58] sm:$0xff]
        %v289 = vld [vmem:[%s276 + $0x60] sm:$0xff]
        %v290 = vld [vmem:[%s276 + $0x68] sm:$0xff]
        %v291 = vld [vmem:[%s276 + $0x70] sm:$0xff]
        %v292 = vld [vmem:[%s276 + $0x78] sm:$0xff]
        %v293 = vld [vmem:[%s276 + $0x80] sm:$0xff]
        %v294 = vld [vmem:[%s276 + $0x88] sm:$0xff]
        %v295 = vld [vmem:[%s276 + $0x90] sm:$0xff]
        %v296 = vld [vmem:[%s276 + $0x98] sm:$0xff]
        %v297 = vld [vmem:[%s276 + $0xa0] sm:$0xff]
        %v298 = vld [vmem:[%s276 + $0xa8] sm:$0xff]
        %v299 = vld [vmem:[%s276 + $0xb0] sm:$0xff]
        %v300 = vld [vmem:[%s276 + $0xb8] sm:$0xff]
        %v301 = vld [vmem:[%s276 + $0xc0] sm:$0xff]
        %v302 = vld [vmem:[%s276 + $0xc8] sm:$0xff]
        %v303 = vld [vmem:[%s276 + $0xd0] sm:$0xff]
        %v304 = vld [vmem:[%s276 + $0xd8] sm:$0xff]
        %v305 = vld [vmem:[%s276 + $0xe0] sm:$0xff]
        %v306 = vld [vmem:[%s276 + $0xe8] sm:$0xff]
        %v307 = vld [vmem:[%s276 + $0xf0] sm:$0xff]
        %v308 = vld [vmem:[%s276 + $0xf8] sm:$0xff]
        %vm309 = vcmask 97280
        %310 = vst.msk [vmem:[#allocation2] sm:$0xff] %vm309, 0.0
        %311 = vst.msk [vmem:[#allocation2 + $0x8] sm:$0xff] %vm309, 0.0
        %vm312 = vcmask 91136
        %313 = vst.msk [vmem:[#allocation2 + $0x10] sm:$0x3] %vm312, 0.0
        %314 = vst.msk [vmem:[#allocation2 + $0x18] sm:$0xff] %vm309, 0.0
        %315 = vst.msk [vmem:[#allocation2 + $0x20] sm:$0xff] %vm309, 0.0
        %316 = vst.msk [vmem:[#allocation2 + $0x28] sm:$0x3] %vm312, 0.0
        %317 = vst.msk [vmem:[#allocation2 + $0x30] sm:$0xff] %vm309, 0.0
        %318 = vst.msk [vmem:[#allocation2 + $0x38] sm:$0xff] %vm309, 0.0
        %319 = vst.msk [vmem:[#allocation2 + $0x40] sm:$0x3] %vm312, 0.0
        %320 = vst.msk [vmem:[#allocation2 + $0x48] sm:$0xff] %vm309, 0.0
        %321 = vst.msk [vmem:[#allocation2 + $0x50] sm:$0xff] %vm309, 0.0
        %322 = vst.msk [vmem:[#allocation2 + $0x58] sm:$0x3] %vm312, 0.0
        %323 = vst.msk [vmem:[#allocation2 + $0x60] sm:$0xff] %vm309, 0.0
        %324 = vst.msk [vmem:[#allocation2 + $0x68] sm:$0xff] %vm309, 0.0
        %325 = vst.msk [vmem:[#allocation2 + $0x70] sm:$0x3] %vm312, 0.0
        %326 = vst.msk [vmem:[#allocation2 + $0x78] sm:$0xff] %vm309, 0.0
        %327 = vst.msk [vmem:[#allocation2 + $0x80] sm:$0xff] %vm309, 0.0
        %328 = vst.msk [vmem:[#allocation2 + $0x88] sm:$0x3] %vm312, 0.0
        %329 = vst.msk [vmem:[#allocation2 + $0x90] sm:$0xff] %vm309, 0.0
        %330 = vst.msk [vmem:[#allocation2 + $0x98] sm:$0xff] %vm309, 0.0
        %331 = vst.msk [vmem:[#allocation2 + $0xa0] sm:$0x3] %vm312, 0.0
        %332 = vst.msk [vmem:[#allocation2 + $0xa8] sm:$0xff] %vm309, 0.0
        %333 = vst.msk [vmem:[#allocation2 + $0xb0] sm:$0xff] %vm309, 0.0
        %334 = vst.msk [vmem:[#allocation2 + $0xb8] sm:$0x3] %vm312, 0.0
        %335 = vst.msk [vmem:[#allocation2 + $0xc0] sm:$0xff] %vm309, 0.0
        %336 = vst.msk [vmem:[#allocation2 + $0xc8] sm:$0xff] %vm309, 0.0
        %337 = vst.msk [vmem:[#allocation2 + $0xd0] sm:$0x3] %vm312, 0.0
        %338 = vst.msk [vmem:[#allocation2 + $0xd8] sm:$0xff] %vm309, 0.0
        %339 = vst.msk [vmem:[#allocation2 + $0xe0] sm:$0xff] %vm309, 0.0
        %340 = vst.msk [vmem:[#allocation2 + $0xe8] sm:$0x3] %vm312, 0.0
        %341 = vst.msk [vmem:[#allocation2 + $0xf0] sm:$0xff] %vm309, 0.0
        %342 = vst.msk [vmem:[#allocation2 + $0xf8] sm:$0xff] %vm309, 0.0
        %343 = vst.msk [vmem:[#allocation2 + $0x100] sm:$0x3] %vm312, 0.0
        %344 = vst.msk [vmem:[#allocation2 + $0x108] sm:$0xff] %vm309, 0.0
        %345 = vst.msk [vmem:[#allocation2 + $0x110] sm:$0xff] %vm309, 0.0
        %346 = vst.msk [vmem:[#allocation2 + $0x118] sm:$0x3] %vm312, 0.0
        %347 = vst.msk [vmem:[#allocation2 + $0x120] sm:$0xff] %vm309, 0.0
        %348 = vst.msk [vmem:[#allocation2 + $0x128] sm:$0xff] %vm309, 0.0
        %349 = vst.msk [vmem:[#allocation2 + $0x130] sm:$0x3] %vm312, 0.0
        %350 = vst.msk [vmem:[#allocation2 + $0x138] sm:$0xff] %vm309, 0.0
        %351 = vst.msk [vmem:[#allocation2 + $0x140] sm:$0xff] %vm309, 0.0
        %352 = vst.msk [vmem:[#allocation2 + $0x148] sm:$0x3] %vm312, 0.0
        %353 = vst.msk [vmem:[#allocation2 + $0x150] sm:$0xff] %vm309, 0.0
        %354 = vst.msk [vmem:[#allocation2 + $0x158] sm:$0xff] %vm309, 0.0
        %355 = vst.msk [vmem:[#allocation2 + $0x160] sm:$0x3] %vm312, 0.0
        %356 = vst.msk [vmem:[#allocation2 + $0x168] sm:$0xff] %vm309, 0.0
        %357 = vst.msk [vmem:[#allocation2 + $0x170] sm:$0xff] %vm309, 0.0
        %358 = vst.msk [vmem:[#allocation2 + $0x178] sm:$0x3] %vm312, 0.0
        %359 = vst.msk [vmem:[#allocation2 + $0x180] sm:$0xff] %vm309, 0.0
        %360 = vst.msk [vmem:[#allocation2 + $0x188] sm:$0xff] %vm309, 0.0
        %361 = vst.msk [vmem:[#allocation2 + $0x190] sm:$0x3] %vm312, 0.0
        %362 = vst.msk [vmem:[#allocation2 + $0x198] sm:$0xff] %vm309, 0.0
        %363 = vst.msk [vmem:[#allocation2 + $0x1a0] sm:$0xff] %vm309, 0.0
        %364 = vst.msk [vmem:[#allocation2 + $0x1a8] sm:$0x3] %vm312, 0.0
        %s365 = scalar_lea.vmem [#allocation2], 24
        %366 = vst.msk [vmem:[%s365 + $0x1] sm:$0xff] %vm309, %v277
        %367 = vst.msk [vmem:[%s365 + $0x9] sm:$0xff] %vm309, %v278
        %368 = vst.msk [vmem:[%s365 + $0x19] sm:$0xff] %vm309, %v279
        %369 = vst.msk [vmem:[%s365 + $0x21] sm:$0xff] %vm309, %v280
        %370 = vst.msk [vmem:[%s365 + $0x31] sm:$0xff] %vm309, %v281
        %371 = vst.msk [vmem:[%s365 + $0x39] sm:$0xff] %vm309, %v282
        %372 = vst.msk [vmem:[%s365 + $0x49] sm:$0xff] %vm309, %v283
        %373 = vst.msk [vmem:[%s365 + $0x51] sm:$0xff] %vm309, %v284
        %374 = vst.msk [vmem:[%s365 + $0x61] sm:$0xff] %vm309, %v285
        %375 = vst.msk [vmem:[%s365 + $0x69] sm:$0xff] %vm309, %v286
        %376 = vst.msk [vmem:[%s365 + $0x79] sm:$0xff] %vm309, %v287
        %377 = vst.msk [vmem:[%s365 + $0x81] sm:$0xff] %vm309, %v288
        %378 = vst.msk [vmem:[%s365 + $0x91] sm:$0xff] %vm309, %v289
        %379 = vst.msk [vmem:[%s365 + $0x99] sm:$0xff] %vm309, %v290
        %380 = vst.msk [vmem:[%s365 + $0xa9] sm:$0xff] %vm309, %v291
        %381 = vst.msk [vmem:[%s365 + $0xb1] sm:$0xff] %vm309, %v292
        %382 = vst.msk [vmem:[%s365 + $0xc1] sm:$0xff] %vm309, %v293
        %383 = vst.msk [vmem:[%s365 + $0xc9] sm:$0xff] %vm309, %v294
        %384 = vst.msk [vmem:[%s365 + $0xd9] sm:$0xff] %vm309, %v295
        %385 = vst.msk [vmem:[%s365 + $0xe1] sm:$0xff] %vm309, %v296
        %386 = vst.msk [vmem:[%s365 + $0xf1] sm:$0xff] %vm309, %v297
        %387 = vst.msk [vmem:[%s365 + $0xf9] sm:$0xff] %vm309, %v298
        %388 = vst.msk [vmem:[%s365 + $0x109] sm:$0xff] %vm309, %v299
        %389 = vst.msk [vmem:[%s365 + $0x111] sm:$0xff] %vm309, %v300
        %390 = vst.msk [vmem:[%s365 + $0x121] sm:$0xff] %vm309, %v301
        %391 = vst.msk [vmem:[%s365 + $0x129] sm:$0xff] %vm309, %v302
        %392 = vst.msk [vmem:[%s365 + $0x139] sm:$0xff] %vm309, %v303
        %393 = vst.msk [vmem:[%s365 + $0x141] sm:$0xff] %vm309, %v304
        %394 = vst.msk [vmem:[%s365 + $0x151] sm:$0xff] %vm309, %v305
        %395 = vst.msk [vmem:[%s365 + $0x159] sm:$0xff] %vm309, %v306
        %396 = vst.msk [vmem:[%s365 + $0x169] sm:$0xff] %vm309, %v307
        %397 = vst.msk [vmem:[%s365 + $0x171] sm:$0xff] %vm309, %v308
        %v398 = vld [vmem:[#allocation2] sm:$0xff]
        %v399 = vld [vmem:[#allocation2 + $0x8] sm:$0xff]
        %v400 = vld [vmem:[#allocation2 + $0x18] sm:$0xff]
        %v401 = vld [vmem:[#allocation2 + $0x20] sm:$0xff]
        %v402 = vld [vmem:[#allocation2 + $0x30] sm:$0xff]
        %v403 = vld [vmem:[#allocation2 + $0x38] sm:$0xff]
        %v404 = vld [vmem:[#allocation2 + $0x48] sm:$0xff]
        %v405 = vld [vmem:[#allocation2 + $0x50] sm:$0xff]
        %v406 = vld [vmem:[#allocation2 + $0x60] sm:$0xff]
        %v407 = vld [vmem:[#allocation2 + $0x68] sm:$0xff]
        %v408 = vld [vmem:[#allocation2 + $0x78] sm:$0xff]
        %v409 = vld [vmem:[#allocation2 + $0x80] sm:$0xff]
        %v410 = vld [vmem:[#allocation2 + $0x90] sm:$0xff]
        %v411 = vld [vmem:[#allocation2 + $0x98] sm:$0xff]
        %v412 = vld [vmem:[#allocation2 + $0xa8] sm:$0xff]
        %v413 = vld [vmem:[#allocation2 + $0xb0] sm:$0xff]
        %v414 = vld [vmem:[#allocation2 + $0xc0] sm:$0xff]
        %v415 = vld [vmem:[#allocation2 + $0xc8] sm:$0xff]
        %v416 = vld [vmem:[#allocation2 + $0xd8] sm:$0xff]
        %v417 = vld [vmem:[#allocation2 + $0xe0] sm:$0xff]
        %v418 = vld [vmem:[#allocation2 + $0xf0] sm:$0xff]
        %v419 = vld [vmem:[#allocation2 + $0xf8] sm:$0xff]
        %v420 = vld [vmem:[#allocation2 + $0x108] sm:$0xff]
        %v421 = vld [vmem:[#allocation2 + $0x110] sm:$0xff]
        %v422 = vld [vmem:[#allocation2 + $0x120] sm:$0xff]
        %v423 = vld [vmem:[#allocation2 + $0x128] sm:$0xff]
        %v424 = vld [vmem:[#allocation2 + $0x138] sm:$0xff]
        %v425 = vld [vmem:[#allocation2 + $0x140] sm:$0xff]
        %v426 = vld [vmem:[#allocation2 + $0x150] sm:$0xff]
        %v427 = vld [vmem:[#allocation2 + $0x158] sm:$0xff]
        %v428 = vld [vmem:[#allocation2 + $0x168] sm:$0xff]
        %v429 = vld [vmem:[#allocation2 + $0x170] sm:$0xff]
        %v430 = vld [vmem:[#allocation2 + $0x1] sm:$0xff]
        %v431 = vld [vmem:[#allocation2 + $0x9] sm:$0xff]
        %v432 = vld [vmem:[#allocation2 + $0x19] sm:$0xff]
        %v433 = vld [vmem:[#allocation2 + $0x21] sm:$0xff]
        %v434 = vld [vmem:[#allocation2 + $0x31] sm:$0xff]
        %v435 = vld [vmem:[#allocation2 + $0x39] sm:$0xff]
        %v436 = vld [vmem:[#allocation2 + $0x49] sm:$0xff]
        %v437 = vld [vmem:[#allocation2 + $0x51] sm:$0xff]
        %v438 = vld [vmem:[#allocation2 + $0x61] sm:$0xff]
        %v439 = vld [vmem:[#allocation2 + $0x69] sm:$0xff]
        %v440 = vld [vmem:[#allocation2 + $0x79] sm:$0xff]
        %v441 = vld [vmem:[#allocation2 + $0x81] sm:$0xff]
        %v442 = vld [vmem:[#allocation2 + $0x91] sm:$0xff]
        %v443 = vld [vmem:[#allocation2 + $0x99] sm:$0xff]
        %v444 = vld [vmem:[#allocation2 + $0xa9] sm:$0xff]
        %v445 = vld [vmem:[#allocation2 + $0xb1] sm:$0xff]
        %v446 = vld [vmem:[#allocation2 + $0xc1] sm:$0xff]
        %v447 = vld [vmem:[#allocation2 + $0xc9] sm:$0xff]
        %v448 = vld [vmem:[#allocation2 + $0xd9] sm:$0xff]
        %v449 = vld [vmem:[#allocation2 + $0xe1] sm:$0xff]
        %v450 = vld [vmem:[#allocation2 + $0xf1] sm:$0xff]
        %v451 = vld [vmem:[#allocation2 + $0xf9] sm:$0xff]
        %v452 = vld [vmem:[#allocation2 + $0x109] sm:$0xff]
        %v453 = vld [vmem:[#allocation2 + $0x111] sm:$0xff]
        %v454 = vld [vmem:[#allocation2 + $0x121] sm:$0xff]
        %v455 = vld [vmem:[#allocation2 + $0x129] sm:$0xff]
        %v456 = vld [vmem:[#allocation2 + $0x139] sm:$0xff]
        %v457 = vld [vmem:[#allocation2 + $0x141] sm:$0xff]
        %v458 = vld [vmem:[#allocation2 + $0x151] sm:$0xff]
        %v459 = vld [vmem:[#allocation2 + $0x159] sm:$0xff]
        %v460 = vld [vmem:[#allocation2 + $0x169] sm:$0xff]
        %v461 = vld [vmem:[#allocation2 + $0x171] sm:$0xff]
        %v462 = vld [vmem:[#allocation2 + $0x2] sm:$0xff]
        %v463 = vld [vmem:[#allocation2 + $0xa] sm:$0xff]
        %v464 = vld [vmem:[#allocation2 + $0x1a] sm:$0xff]
        %v465 = vld [vmem:[#allocation2 + $0x22] sm:$0xff]
        %v466 = vld [vmem:[#allocation2 + $0x32] sm:$0xff]
        %v467 = vld [vmem:[#allocation2 + $0x3a] sm:$0xff]
        %v468 = vld [vmem:[#allocation2 + $0x4a] sm:$0xff]
        %v469 = vld [vmem:[#allocation2 + $0x52] sm:$0xff]
        %v470 = vld [vmem:[#allocation2 + $0x62] sm:$0xff]
        %v471 = vld [vmem:[#allocation2 + $0x6a] sm:$0xff]
        %v472 = vld [vmem:[#allocation2 + $0x7a] sm:$0xff]
        %v473 = vld [vmem:[#allocation2 + $0x82] sm:$0xff]
        %v474 = vld [vmem:[#allocation2 + $0x92] sm:$0xff]
        %v475 = vld [vmem:[#allocation2 + $0x9a] sm:$0xff]
        %v476 = vld [vmem:[#allocation2 + $0xaa] sm:$0xff]
        %v477 = vld [vmem:[#allocation2 + $0xb2] sm:$0xff]
        %v478 = vld [vmem:[#allocation2 + $0xc2] sm:$0xff]
        %v479 = vld [vmem:[#allocation2 + $0xca] sm:$0xff]
        %v480 = vld [vmem:[#allocation2 + $0xda] sm:$0xff]
        %v481 = vld [vmem:[#allocation2 + $0xe2] sm:$0xff]
        %v482 = vld [vmem:[#allocation2 + $0xf2] sm:$0xff]
        %v483 = vld [vmem:[#allocation2 + $0xfa] sm:$0xff]
        %v484 = vld [vmem:[#allocation2 + $0x10a] sm:$0xff]
        %v485 = vld [vmem:[#allocation2 + $0x112] sm:$0xff]
        %v486 = vld [vmem:[#allocation2 + $0x122] sm:$0xff]
        %v487 = vld [vmem:[#allocation2 + $0x12a] sm:$0xff]
        %v488 = vld [vmem:[#allocation2 + $0x13a] sm:$0xff]
        %v489 = vld [vmem:[#allocation2 + $0x142] sm:$0xff]
        %v490 = vld [vmem:[#allocation2 + $0x152] sm:$0xff]
        %v491 = vld [vmem:[#allocation2 + $0x15a] sm:$0xff]
        %v492 = vld [vmem:[#allocation2 + $0x16a] sm:$0xff]
        %v493 = vld [vmem:[#allocation2 + $0x172] sm:$0xff]
        %v494 = vld [vmem:[%s365] sm:$0xff]
        %v495 = vld [vmem:[%s365 + $0x8] sm:$0xff]
        %v496 = vld [vmem:[%s365 + $0x18] sm:$0xff]
        %v497 = vld [vmem:[%s365 + $0x20] sm:$0xff]
        %v498 = vld [vmem:[%s365 + $0x30] sm:$0xff]
        %v499 = vld [vmem:[%s365 + $0x38] sm:$0xff]
        %v500 = vld [vmem:[%s365 + $0x48] sm:$0xff]
        %v501 = vld [vmem:[%s365 + $0x50] sm:$0xff]
        %v502 = vld [vmem:[%s365 + $0x60] sm:$0xff]
        %v503 = vld [vmem:[%s365 + $0x68] sm:$0xff]
        %v504 = vld [vmem:[%s365 + $0x78] sm:$0xff]
        %v505 = vld [vmem:[%s365 + $0x80] sm:$0xff]
        %v506 = vld [vmem:[%s365 + $0x90] sm:$0xff]
        %v507 = vld [vmem:[%s365 + $0x98] sm:$0xff]
        %v508 = vld [vmem:[%s365 + $0xa8] sm:$0xff]
        %v509 = vld [vmem:[%s365 + $0xb0] sm:$0xff]
        %v510 = vld [vmem:[%s365 + $0xc0] sm:$0xff]
        %v511 = vld [vmem:[%s365 + $0xc8] sm:$0xff]
        %v512 = vld [vmem:[%s365 + $0xd8] sm:$0xff]
        %v513 = vld [vmem:[%s365 + $0xe0] sm:$0xff]
        %v514 = vld [vmem:[%s365 + $0xf0] sm:$0xff]
        %v515 = vld [vmem:[%s365 + $0xf8] sm:$0xff]
        %v516 = vld [vmem:[%s365 + $0x108] sm:$0xff]
        %v517 = vld [vmem:[%s365 + $0x110] sm:$0xff]
        %v518 = vld [vmem:[%s365 + $0x120] sm:$0xff]
        %v519 = vld [vmem:[%s365 + $0x128] sm:$0xff]
        %v520 = vld [vmem:[%s365 + $0x138] sm:$0xff]
        %v521 = vld [vmem:[%s365 + $0x140] sm:$0xff]
        %v522 = vld [vmem:[%s365 + $0x150] sm:$0xff]
        %v523 = vld [vmem:[%s365 + $0x158] sm:$0xff]
        %v524 = vld [vmem:[%s365 + $0x168] sm:$0xff]
        %v525 = vld [vmem:[%s365 + $0x170] sm:$0xff]
        %v526 = vld [vmem:[%s365 + $0x1] sm:$0xff]
        %v527 = vld [vmem:[%s365 + $0x9] sm:$0xff]
        %v528 = vld [vmem:[%s365 + $0x19] sm:$0xff]
        %v529 = vld [vmem:[%s365 + $0x21] sm:$0xff]
        %v530 = vld [vmem:[%s365 + $0x31] sm:$0xff]
        %v531 = vld [vmem:[%s365 + $0x39] sm:$0xff]
        %v532 = vld [vmem:[%s365 + $0x49] sm:$0xff]
        %v533 = vld [vmem:[%s365 + $0x51] sm:$0xff]
        %v534 = vld [vmem:[%s365 + $0x61] sm:$0xff]
        %v535 = vld [vmem:[%s365 + $0x69] sm:$0xff]
        %v536 = vld [vmem:[%s365 + $0x79] sm:$0xff]
        %v537 = vld [vmem:[%s365 + $0x81] sm:$0xff]
        %v538 = vld [vmem:[%s365 + $0x91] sm:$0xff]
        %v539 = vld [vmem:[%s365 + $0x99] sm:$0xff]
        %v540 = vld [vmem:[%s365 + $0xa9] sm:$0xff]
        %v541 = vld [vmem:[%s365 + $0xb1] sm:$0xff]
        %v542 = vld [vmem:[%s365 + $0xc1] sm:$0xff]
        %v543 = vld [vmem:[%s365 + $0xc9] sm:$0xff]
        %v544 = vld [vmem:[%s365 + $0xd9] sm:$0xff]
        %v545 = vld [vmem:[%s365 + $0xe1] sm:$0xff]
        %v546 = vld [vmem:[%s365 + $0xf1] sm:$0xff]
        %v547 = vld [vmem:[%s365 + $0xf9] sm:$0xff]
        %v548 = vld [vmem:[%s365 + $0x109] sm:$0xff]
        %v549 = vld [vmem:[%s365 + $0x111] sm:$0xff]
        %v550 = vld [vmem:[%s365 + $0x121] sm:$0xff]
        %v551 = vld [vmem:[%s365 + $0x129] sm:$0xff]
        %v552 = vld [vmem:[%s365 + $0x139] sm:$0xff]
        %v553 = vld [vmem:[%s365 + $0x141] sm:$0xff]
        %v554 = vld [vmem:[%s365 + $0x151] sm:$0xff]
        %v555 = vld [vmem:[%s365 + $0x159] sm:$0xff]
        %v556 = vld [vmem:[%s365 + $0x169] sm:$0xff]
        %v557 = vld [vmem:[%s365 + $0x171] sm:$0xff]
        %v558 = vld [vmem:[%s365 + $0x2] sm:$0xff]
        %v559 = vld [vmem:[%s365 + $0xa] sm:$0xff]
        %v560 = vld [vmem:[%s365 + $0x1a] sm:$0xff]
        %v561 = vld [vmem:[%s365 + $0x22] sm:$0xff]
        %v562 = vld [vmem:[%s365 + $0x32] sm:$0xff]
        %v563 = vld [vmem:[%s365 + $0x3a] sm:$0xff]
        %v564 = vld [vmem:[%s365 + $0x4a] sm:$0xff]
        %v565 = vld [vmem:[%s365 + $0x52] sm:$0xff]
        %v566 = vld [vmem:[%s365 + $0x62] sm:$0xff]
        %v567 = vld [vmem:[%s365 + $0x6a] sm:$0xff]
        %v568 = vld [vmem:[%s365 + $0x7a] sm:$0xff]
        %v569 = vld [vmem:[%s365 + $0x82] sm:$0xff]
        %v570 = vld [vmem:[%s365 + $0x92] sm:$0xff]
        %v571 = vld [vmem:[%s365 + $0x9a] sm:$0xff]
        %v572 = vld [vmem:[%s365 + $0xaa] sm:$0xff]
        %v573 = vld [vmem:[%s365 + $0xb2] sm:$0xff]
        %v574 = vld [vmem:[%s365 + $0xc2] sm:$0xff]
        %v575 = vld [vmem:[%s365 + $0xca] sm:$0xff]
        %v576 = vld [vmem:[%s365 + $0xda] sm:$0xff]
        %v577 = vld [vmem:[%s365 + $0xe2] sm:$0xff]
        %v578 = vld [vmem:[%s365 + $0xf2] sm:$0xff]
        %v579 = vld [vmem:[%s365 + $0xfa] sm:$0xff]
        %v580 = vld [vmem:[%s365 + $0x10a] sm:$0xff]
        %v581 = vld [vmem:[%s365 + $0x112] sm:$0xff]
        %v582 = vld [vmem:[%s365 + $0x122] sm:$0xff]
        %v583 = vld [vmem:[%s365 + $0x12a] sm:$0xff]
        %v584 = vld [vmem:[%s365 + $0x13a] sm:$0xff]
        %v585 = vld [vmem:[%s365 + $0x142] sm:$0xff]
        %v586 = vld [vmem:[%s365 + $0x152] sm:$0xff]
        %v587 = vld [vmem:[%s365 + $0x15a] sm:$0xff]
        %v588 = vld [vmem:[%s365 + $0x16a] sm:$0xff]
        %v589 = vld [vmem:[%s365 + $0x172] sm:$0xff]
        %s590 = scalar_lea.vmem [#allocation2], 48
        %v591 = vld [vmem:[%s590] sm:$0xff]
        %v592 = vld [vmem:[%s590 + $0x8] sm:$0xff]
        %v593 = vld [vmem:[%s590 + $0x18] sm:$0xff]
        %v594 = vld [vmem:[%s590 + $0x20] sm:$0xff]
        %v595 = vld [vmem:[%s590 + $0x30] sm:$0xff]
        %v596 = vld [vmem:[%s590 + $0x38] sm:$0xff]
        %v597 = vld [vmem:[%s590 + $0x48] sm:$0xff]
        %v598 = vld [vmem:[%s590 + $0x50] sm:$0xff]
        %v599 = vld [vmem:[%s590 + $0x60] sm:$0xff]
        %v600 = vld [vmem:[%s590 + $0x68] sm:$0xff]
        %v601 = vld [vmem:[%s590 + $0x78] sm:$0xff]
        %v602 = vld [vmem:[%s590 + $0x80] sm:$0xff]
        %v603 = vld [vmem:[%s590 + $0x90] sm:$0xff]
        %v604 = vld [vmem:[%s590 + $0x98] sm:$0xff]
        %v605 = vld [vmem:[%s590 + $0xa8] sm:$0xff]
        %v606 = vld [vmem:[%s590 + $0xb0] sm:$0xff]
        %v607 = vld [vmem:[%s590 + $0xc0] sm:$0xff]
        %v608 = vld [vmem:[%s590 + $0xc8] sm:$0xff]
        %v609 = vld [vmem:[%s590 + $0xd8] sm:$0xff]
        %v610 = vld [vmem:[%s590 + $0xe0] sm:$0xff]
        %v611 = vld [vmem:[%s590 + $0xf0] sm:$0xff]
        %v612 = vld [vmem:[%s590 + $0xf8] sm:$0xff]
        %v613 = vld [vmem:[%s590 + $0x108] sm:$0xff]
        %v614 = vld [vmem:[%s590 + $0x110] sm:$0xff]
        %v615 = vld [vmem:[%s590 + $0x120] sm:$0xff]
        %v616 = vld [vmem:[%s590 + $0x128] sm:$0xff]
        %v617 = vld [vmem:[%s590 + $0x138] sm:$0xff]
        %v618 = vld [vmem:[%s590 + $0x140] sm:$0xff]
        %v619 = vld [vmem:[%s590 + $0x150] sm:$0xff]
        %v620 = vld [vmem:[%s590 + $0x158] sm:$0xff]
        %v621 = vld [vmem:[%s590 + $0x168] sm:$0xff]
        %v622 = vld [vmem:[%s590 + $0x170] sm:$0xff]
        %v623 = vld [vmem:[%s590 + $0x1] sm:$0xff]
        %v624 = vld [vmem:[%s590 + $0x9] sm:$0xff]
        %v625 = vld [vmem:[%s590 + $0x19] sm:$0xff]
        %v626 = vld [vmem:[%s590 + $0x21] sm:$0xff]
        %v627 = vld [vmem:[%s590 + $0x31] sm:$0xff]
        %v628 = vld [vmem:[%s590 + $0x39] sm:$0xff]
        %v629 = vld [vmem:[%s590 + $0x49] sm:$0xff]
        %v630 = vld [vmem:[%s590 + $0x51] sm:$0xff]
        %v631 = vld [vmem:[%s590 + $0x61] sm:$0xff]
        %v632 = vld [vmem:[%s590 + $0x69] sm:$0xff]
        %v633 = vld [vmem:[%s590 + $0x79] sm:$0xff]
        %v634 = vld [vmem:[%s590 + $0x81] sm:$0xff]
        %v635 = vld [vmem:[%s590 + $0x91] sm:$0xff]
        %v636 = vld [vmem:[%s590 + $0x99] sm:$0xff]
        %v637 = vld [vmem:[%s590 + $0xa9] sm:$0xff]
        %v638 = vld [vmem:[%s590 + $0xb1] sm:$0xff]
        %v639 = vld [vmem:[%s590 + $0xc1] sm:$0xff]
        %v640 = vld [vmem:[%s590 + $0xc9] sm:$0xff]
        %v641 = vld [vmem:[%s590 + $0xd9] sm:$0xff]
        %v642 = vld [vmem:[%s590 + $0xe1] sm:$0xff]
        %v643 = vld [vmem:[%s590 + $0xf1] sm:$0xff]
        %v644 = vld [vmem:[%s590 + $0xf9] sm:$0xff]
        %v645 = vld [vmem:[%s590 + $0x109] sm:$0xff]
        %v646 = vld [vmem:[%s590 + $0x111] sm:$0xff]
        %v647 = vld [vmem:[%s590 + $0x121] sm:$0xff]
        %v648 = vld [vmem:[%s590 + $0x129] sm:$0xff]
        %v649 = vld [vmem:[%s590 + $0x139] sm:$0xff]
        %v650 = vld [vmem:[%s590 + $0x141] sm:$0xff]
        %v651 = vld [vmem:[%s590 + $0x151] sm:$0xff]
        %v652 = vld [vmem:[%s590 + $0x159] sm:$0xff]
        %v653 = vld [vmem:[%s590 + $0x169] sm:$0xff]
        %v654 = vld [vmem:[%s590 + $0x171] sm:$0xff]
        %v655 = vld [vmem:[%s590 + $0x2] sm:$0xff]
        %v656 = vld [vmem:[%s590 + $0xa] sm:$0xff]
        %v657 = vld [vmem:[%s590 + $0x1a] sm:$0xff]
        %v658 = vld [vmem:[%s590 + $0x22] sm:$0xff]
        %v659 = vld [vmem:[%s590 + $0x32] sm:$0xff]
        %v660 = vld [vmem:[%s590 + $0x3a] sm:$0xff]
        %v661 = vld [vmem:[%s590 + $0x4a] sm:$0xff]
        %v662 = vld [vmem:[%s590 + $0x52] sm:$0xff]
        %v663 = vld [vmem:[%s590 + $0x62] sm:$0xff]
        %v664 = vld [vmem:[%s590 + $0x6a] sm:$0xff]
        %v665 = vld [vmem:[%s590 + $0x7a] sm:$0xff]
        %v666 = vld [vmem:[%s590 + $0x82] sm:$0xff]
        %v667 = vld [vmem:[%s590 + $0x92] sm:$0xff]
        %v668 = vld [vmem:[%s590 + $0x9a] sm:$0xff]
        %v669 = vld [vmem:[%s590 + $0xaa] sm:$0xff]
        %v670 = vld [vmem:[%s590 + $0xb2] sm:$0xff]
        %v671 = vld [vmem:[%s590 + $0xc2] sm:$0xff]
        %v672 = vld [vmem:[%s590 + $0xca] sm:$0xff]
        %v673 = vld [vmem:[%s590 + $0xda] sm:$0xff]
        %v674 = vld [vmem:[%s590 + $0xe2] sm:$0xff]
        %v675 = vld [vmem:[%s590 + $0xf2] sm:$0xff]
        %v676 = vld [vmem:[%s590 + $0xfa] sm:$0xff]
        %v677 = vld [vmem:[%s590 + $0x10a] sm:$0xff]
        %v678 = vld [vmem:[%s590 + $0x112] sm:$0xff]
        %v679 = vld [vmem:[%s590 + $0x122] sm:$0xff]
        %v680 = vld [vmem:[%s590 + $0x12a] sm:$0xff]
        %v681 = vld [vmem:[%s590 + $0x13a] sm:$0xff]
        %v682 = vld [vmem:[%s590 + $0x142] sm:$0xff]
        %v683 = vld [vmem:[%s590 + $0x152] sm:$0xff]
        %v684 = vld [vmem:[%s590 + $0x15a] sm:$0xff]
        %v685 = vld [vmem:[%s590 + $0x16a] sm:$0xff]
        %v686 = vld [vmem:[%s590 + $0x172] sm:$0xff]
        %719 = vrot.lane.b32.xlu0 %v430, 12
        %v720 = vpop.permute.xlu0 %719
        %721 = vrot.lane.b32.xlu0 %v431, 12
        %v722 = vpop.permute.xlu0 %721
        %723 = vrot.lane.b32.xlu0 %v432, 12
        %v724 = vpop.permute.xlu0 %723
        %725 = vrot.lane.b32.xlu0 %v433, 12
        %v726 = vpop.permute.xlu0 %725
        %727 = vrot.lane.b32.xlu0 %v434, 12
        %v728 = vpop.permute.xlu0 %727
        %729 = vrot.lane.b32.xlu0 %v435, 12
        %v730 = vpop.permute.xlu0 %729
        %731 = vrot.lane.b32.xlu0 %v436, 12
        %v732 = vpop.permute.xlu0 %731
        %733 = vrot.lane.b32.xlu0 %v437, 12
        %v734 = vpop.permute.xlu0 %733
        %735 = vrot.lane.b32.xlu0 %v438, 12
        %v736 = vpop.permute.xlu0 %735
        %737 = vrot.lane.b32.xlu0 %v439, 12
        %v738 = vpop.permute.xlu0 %737
        %739 = vrot.lane.b32.xlu0 %v440, 12
        %v740 = vpop.permute.xlu0 %739
        %741 = vrot.lane.b32.xlu0 %v441, 12
        %v742 = vpop.permute.xlu0 %741
        %743 = vrot.lane.b32.xlu0 %v442, 12
        %v744 = vpop.permute.xlu0 %743
        %745 = vrot.lane.b32.xlu0 %v443, 12
        %v746 = vpop.permute.xlu0 %745
        %747 = vrot.lane.b32.xlu0 %v444, 12
        %v748 = vpop.permute.xlu0 %747
        %749 = vrot.lane.b32.xlu0 %v445, 12
        %v750 = vpop.permute.xlu0 %749
        %751 = vrot.lane.b32.xlu0 %v446, 12
        %v752 = vpop.permute.xlu0 %751
        %753 = vrot.lane.b32.xlu0 %v447, 12
        %v754 = vpop.permute.xlu0 %753
        %755 = vrot.lane.b32.xlu0 %v448, 12
        %v756 = vpop.permute.xlu0 %755
        %757 = vrot.lane.b32.xlu0 %v449, 12
        %v758 = vpop.permute.xlu0 %757
        %759 = vrot.lane.b32.xlu0 %v450, 12
        %v760 = vpop.permute.xlu0 %759
        %761 = vrot.lane.b32.xlu0 %v451, 12
        %v762 = vpop.permute.xlu0 %761
        %763 = vrot.lane.b32.xlu0 %v452, 12
        %v764 = vpop.permute.xlu0 %763
        %765 = vrot.lane.b32.xlu0 %v453, 12
        %v766 = vpop.permute.xlu0 %765
        %767 = vrot.lane.b32.xlu0 %v454, 12
        %v768 = vpop.permute.xlu0 %767
        %769 = vrot.lane.b32.xlu0 %v455, 12
        %v770 = vpop.permute.xlu0 %769
        %771 = vrot.lane.b32.xlu0 %v456, 12
        %v772 = vpop.permute.xlu0 %771
        %773 = vrot.lane.b32.xlu0 %v457, 12
        %v774 = vpop.permute.xlu0 %773
        %775 = vrot.lane.b32.xlu0 %v458, 12
        %v776 = vpop.permute.xlu0 %775
        %777 = vrot.lane.b32.xlu0 %v459, 12
        %v778 = vpop.permute.xlu0 %777
        %779 = vrot.lane.b32.xlu0 %v460, 12
        %v780 = vpop.permute.xlu0 %779
        %781 = vrot.lane.b32.xlu0 %v461, 12
        %v782 = vpop.permute.xlu0 %781
        %847 = vrot.lane.b32.xlu0 %v462, 24
        %v848 = vpop.permute.xlu0 %847
        %849 = vrot.lane.b32.xlu0 %v463, 24
        %v850 = vpop.permute.xlu0 %849
        %851 = vrot.lane.b32.xlu0 %v464, 24
        %v852 = vpop.permute.xlu0 %851
        %853 = vrot.lane.b32.xlu0 %v465, 24
        %v854 = vpop.permute.xlu0 %853
        %855 = vrot.lane.b32.xlu0 %v466, 24
        %v856 = vpop.permute.xlu0 %855
        %857 = vrot.lane.b32.xlu0 %v467, 24
        %v858 = vpop.permute.xlu0 %857
        %859 = vrot.lane.b32.xlu0 %v468, 24
        %v860 = vpop.permute.xlu0 %859
        %861 = vrot.lane.b32.xlu0 %v469, 24
        %v862 = vpop.permute.xlu0 %861
        %863 = vrot.lane.b32.xlu0 %v470, 24
        %v864 = vpop.permute.xlu0 %863
        %865 = vrot.lane.b32.xlu0 %v471, 24
        %v866 = vpop.permute.xlu0 %865
        %867 = vrot.lane.b32.xlu0 %v472, 24
        %v868 = vpop.permute.xlu0 %867
        %869 = vrot.lane.b32.xlu0 %v473, 24
        %v870 = vpop.permute.xlu0 %869
        %871 = vrot.lane.b32.xlu0 %v474, 24
        %v872 = vpop.permute.xlu0 %871
        %873 = vrot.lane.b32.xlu0 %v475, 24
        %v874 = vpop.permute.xlu0 %873
        %875 = vrot.lane.b32.xlu0 %v476, 24
        %v876 = vpop.permute.xlu0 %875
        %877 = vrot.lane.b32.xlu0 %v477, 24
        %v878 = vpop.permute.xlu0 %877
        %879 = vrot.lane.b32.xlu0 %v478, 24
        %v880 = vpop.permute.xlu0 %879
        %881 = vrot.lane.b32.xlu0 %v479, 24
        %v882 = vpop.permute.xlu0 %881
        %883 = vrot.lane.b32.xlu0 %v480, 24
        %v884 = vpop.permute.xlu0 %883
        %885 = vrot.lane.b32.xlu0 %v481, 24
        %v886 = vpop.permute.xlu0 %885
        %887 = vrot.lane.b32.xlu0 %v482, 24
        %v888 = vpop.permute.xlu0 %887
        %889 = vrot.lane.b32.xlu0 %v483, 24
        %v890 = vpop.permute.xlu0 %889
        %891 = vrot.lane.b32.xlu0 %v484, 24
        %v892 = vpop.permute.xlu0 %891
        %893 = vrot.lane.b32.xlu0 %v485, 24
        %v894 = vpop.permute.xlu0 %893
        %895 = vrot.lane.b32.xlu0 %v486, 24
        %v896 = vpop.permute.xlu0 %895
        %897 = vrot.lane.b32.xlu0 %v487, 24
        %v898 = vpop.permute.xlu0 %897
        %899 = vrot.lane.b32.xlu0 %v488, 24
        %v900 = vpop.permute.xlu0 %899
        %901 = vrot.lane.b32.xlu0 %v489, 24
        %v902 = vpop.permute.xlu0 %901
        %903 = vrot.lane.b32.xlu0 %v490, 24
        %v904 = vpop.permute.xlu0 %903
        %905 = vrot.lane.b32.xlu0 %v491, 24
        %v906 = vpop.permute.xlu0 %905
        %907 = vrot.lane.b32.xlu0 %v492, 24
        %v908 = vpop.permute.xlu0 %907
        %909 = vrot.lane.b32.xlu0 %v493, 24
        %v910 = vpop.permute.xlu0 %909
        %975 = vrot.lane.b32.xlu0 %v494, 36
        %v976 = vpop.permute.xlu0 %975
        %977 = vrot.lane.b32.xlu0 %v495, 36
        %v978 = vpop.permute.xlu0 %977
        %979 = vrot.lane.b32.xlu0 %v496, 36
        %v980 = vpop.permute.xlu0 %979
        %981 = vrot.lane.b32.xlu0 %v497, 36
        %v982 = vpop.permute.xlu0 %981
        %983 = vrot.lane.b32.xlu0 %v498, 36
        %v984 = vpop.permute.xlu0 %983
        %985 = vrot.lane.b32.xlu0 %v499, 36
        %v986 = vpop.permute.xlu0 %985
        %987 = vrot.lane.b32.xlu0 %v500, 36
        %v988 = vpop.permute.xlu0 %987
        %989 = vrot.lane.b32.xlu0 %v501, 36
        %v990 = vpop.permute.xlu0 %989
        %991 = vrot.lane.b32.xlu0 %v502, 36
        %v992 = vpop.permute.xlu0 %991
        %993 = vrot.lane.b32.xlu0 %v503, 36
        %v994 = vpop.permute.xlu0 %993
        %995 = vrot.lane.b32.xlu0 %v504, 36
        %v996 = vpop.permute.xlu0 %995
        %997 = vrot.lane.b32.xlu0 %v505, 36
        %v998 = vpop.permute.xlu0 %997
        %999 = vrot.lane.b32.xlu0 %v506, 36
        %v1000 = vpop.permute.xlu0 %999
        %1001 = vrot.lane.b32.xlu0 %v507, 36
        %v1002 = vpop.permute.xlu0 %1001
        %1003 = vrot.lane.b32.xlu0 %v508, 36
        %v1004 = vpop.permute.xlu0 %1003
        %1005 = vrot.lane.b32.xlu0 %v509, 36
        %v1006 = vpop.permute.xlu0 %1005
        %1007 = vrot.lane.b32.xlu0 %v510, 36
        %v1008 = vpop.permute.xlu0 %1007
        %1009 = vrot.lane.b32.xlu0 %v511, 36
        %v1010 = vpop.permute.xlu0 %1009
        %1011 = vrot.lane.b32.xlu0 %v512, 36
        %v1012 = vpop.permute.xlu0 %1011
        %1013 = vrot.lane.b32.xlu0 %v513, 36
        %v1014 = vpop.permute.xlu0 %1013
        %1015 = vrot.lane.b32.xlu0 %v514, 36
        %v1016 = vpop.permute.xlu0 %1015
        %1017 = vrot.lane.b32.xlu0 %v515, 36
        %v1018 = vpop.permute.xlu0 %1017
        %1019 = vrot.lane.b32.xlu0 %v516, 36
        %v1020 = vpop.permute.xlu0 %1019
        %1021 = vrot.lane.b32.xlu0 %v517, 36
        %v1022 = vpop.permute.xlu0 %1021
        %1023 = vrot.lane.b32.xlu0 %v518, 36
        %v1024 = vpop.permute.xlu0 %1023
        %1025 = vrot.lane.b32.xlu0 %v519, 36
        %v1026 = vpop.permute.xlu0 %1025
        %1027 = vrot.lane.b32.xlu0 %v520, 36
        %v1028 = vpop.permute.xlu0 %1027
        %1029 = vrot.lane.b32.xlu0 %v521, 36
        %v1030 = vpop.permute.xlu0 %1029
        %1031 = vrot.lane.b32.xlu0 %v522, 36
        %v1032 = vpop.permute.xlu0 %1031
        %1033 = vrot.lane.b32.xlu0 %v523, 36
        %v1034 = vpop.permute.xlu0 %1033
        %1035 = vrot.lane.b32.xlu0 %v524, 36
        %v1036 = vpop.permute.xlu0 %1035
        %1037 = vrot.lane.b32.xlu0 %v525, 36
        %v1038 = vpop.permute.xlu0 %1037
        %1103 = vrot.lane.b32.xlu0 %v526, 48
        %v1104 = vpop.permute.xlu0 %1103
        %1105 = vrot.lane.b32.xlu0 %v527, 48
        %v1106 = vpop.permute.xlu0 %1105
        %1107 = vrot.lane.b32.xlu0 %v528, 48
        %v1108 = vpop.permute.xlu0 %1107
        %1109 = vrot.lane.b32.xlu0 %v529, 48
        %v1110 = vpop.permute.xlu0 %1109
        %1111 = vrot.lane.b32.xlu0 %v530, 48
        %v1112 = vpop.permute.xlu0 %1111
        %1113 = vrot.lane.b32.xlu0 %v531, 48
        %v1114 = vpop.permute.xlu0 %1113
        %1115 = vrot.lane.b32.xlu0 %v532, 48
        %v1116 = vpop.permute.xlu0 %1115
        %1117 = vrot.lane.b32.xlu0 %v533, 48
        %v1118 = vpop.permute.xlu0 %1117
        %1119 = vrot.lane.b32.xlu0 %v534, 48
        %v1120 = vpop.permute.xlu0 %1119
        %1121 = vrot.lane.b32.xlu0 %v535, 48
        %v1122 = vpop.permute.xlu0 %1121
        %1123 = vrot.lane.b32.xlu0 %v536, 48
        %v1124 = vpop.permute.xlu0 %1123
        %1125 = vrot.lane.b32.xlu0 %v537, 48
        %v1126 = vpop.permute.xlu0 %1125
        %1127 = vrot.lane.b32.xlu0 %v538, 48
        %v1128 = vpop.permute.xlu0 %1127
        %1129 = vrot.lane.b32.xlu0 %v539, 48
        %v1130 = vpop.permute.xlu0 %1129
        %1131 = vrot.lane.b32.xlu0 %v540, 48
        %v1132 = vpop.permute.xlu0 %1131
        %1133 = vrot.lane.b32.xlu0 %v541, 48
        %v1134 = vpop.permute.xlu0 %1133
        %1135 = vrot.lane.b32.xlu0 %v542, 48
        %v1136 = vpop.permute.xlu0 %1135
        %1137 = vrot.lane.b32.xlu0 %v543, 48
        %v1138 = vpop.permute.xlu0 %1137
        %1139 = vrot.lane.b32.xlu0 %v544, 48
        %v1140 = vpop.permute.xlu0 %1139
        %1141 = vrot.lane.b32.xlu0 %v545, 48
        %v1142 = vpop.permute.xlu0 %1141
        %1143 = vrot.lane.b32.xlu0 %v546, 48
        %v1144 = vpop.permute.xlu0 %1143
        %1145 = vrot.lane.b32.xlu0 %v547, 48
        %v1146 = vpop.permute.xlu0 %1145
        %1147 = vrot.lane.b32.xlu0 %v548, 48
        %v1148 = vpop.permute.xlu0 %1147
        %1149 = vrot.lane.b32.xlu0 %v549, 48
        %v1150 = vpop.permute.xlu0 %1149
        %1151 = vrot.lane.b32.xlu0 %v550, 48
        %v1152 = vpop.permute.xlu0 %1151
        %1153 = vrot.lane.b32.xlu0 %v551, 48
        %v1154 = vpop.permute.xlu0 %1153
        %1155 = vrot.lane.b32.xlu0 %v552, 48
        %v1156 = vpop.permute.xlu0 %1155
        %1157 = vrot.lane.b32.xlu0 %v553, 48
        %v1158 = vpop.permute.xlu0 %1157
        %1159 = vrot.lane.b32.xlu0 %v554, 48
        %v1160 = vpop.permute.xlu0 %1159
        %1161 = vrot.lane.b32.xlu0 %v555, 48
        %v1162 = vpop.permute.xlu0 %1161
        %1163 = vrot.lane.b32.xlu0 %v556, 48
        %v1164 = vpop.permute.xlu0 %1163
        %1165 = vrot.lane.b32.xlu0 %v557, 48
        %v1166 = vpop.permute.xlu0 %1165
        %1231 = vrot.lane.b32.xlu0 %v558, 60
        %v1232 = vpop.permute.xlu0 %1231
        %1233 = vrot.lane.b32.xlu0 %v559, 60
        %v1234 = vpop.permute.xlu0 %1233
        %1235 = vrot.lane.b32.xlu0 %v560, 60
        %v1236 = vpop.permute.xlu0 %1235
        %1237 = vrot.lane.b32.xlu0 %v561, 60
        %v1238 = vpop.permute.xlu0 %1237
        %1239 = vrot.lane.b32.xlu0 %v562, 60
        %v1240 = vpop.permute.xlu0 %1239
        %1241 = vrot.lane.b32.xlu0 %v563, 60
        %v1242 = vpop.permute.xlu0 %1241
        %1243 = vrot.lane.b32.xlu0 %v564, 60
        %v1244 = vpop.permute.xlu0 %1243
        %1245 = vrot.lane.b32.xlu0 %v565, 60
        %v1246 = vpop.permute.xlu0 %1245
        %1247 = vrot.lane.b32.xlu0 %v566, 60
        %v1248 = vpop.permute.xlu0 %1247
        %1249 = vrot.lane.b32.xlu0 %v567, 60
        %v1250 = vpop.permute.xlu0 %1249
        %1251 = vrot.lane.b32.xlu0 %v568, 60
        %v1252 = vpop.permute.xlu0 %1251
        %1253 = vrot.lane.b32.xlu0 %v569, 60
        %v1254 = vpop.permute.xlu0 %1253
        %1255 = vrot.lane.b32.xlu0 %v570, 60
        %v1256 = vpop.permute.xlu0 %1255
        %1257 = vrot.lane.b32.xlu0 %v571, 60
        %v1258 = vpop.permute.xlu0 %1257
        %1259 = vrot.lane.b32.xlu0 %v572, 60
        %v1260 = vpop.permute.xlu0 %1259
        %1261 = vrot.lane.b32.xlu0 %v573, 60
        %v1262 = vpop.permute.xlu0 %1261
        %1263 = vrot.lane.b32.xlu0 %v574, 60
        %v1264 = vpop.permute.xlu0 %1263
        %1265 = vrot.lane.b32.xlu0 %v575, 60
        %v1266 = vpop.permute.xlu0 %1265
        %1267 = vrot.lane.b32.xlu0 %v576, 60
        %v1268 = vpop.permute.xlu0 %1267
        %1269 = vrot.lane.b32.xlu0 %v577, 60
        %v1270 = vpop.permute.xlu0 %1269
        %1271 = vrot.lane.b32.xlu0 %v578, 60
        %v1272 = vpop.permute.xlu0 %1271
        %1273 = vrot.lane.b32.xlu0 %v579, 60
        %v1274 = vpop.permute.xlu0 %1273
        %1275 = vrot.lane.b32.xlu0 %v580, 60
        %v1276 = vpop.permute.xlu0 %1275
        %1277 = vrot.lane.b32.xlu0 %v581, 60
        %v1278 = vpop.permute.xlu0 %1277
        %1279 = vrot.lane.b32.xlu0 %v582, 60
        %v1280 = vpop.permute.xlu0 %1279
        %1281 = vrot.lane.b32.xlu0 %v583, 60
        %v1282 = vpop.permute.xlu0 %1281
        %1283 = vrot.lane.b32.xlu0 %v584, 60
        %v1284 = vpop.permute.xlu0 %1283
        %1285 = vrot.lane.b32.xlu0 %v585, 60
        %v1286 = vpop.permute.xlu0 %1285
        %1287 = vrot.lane.b32.xlu0 %v586, 60
        %v1288 = vpop.permute.xlu0 %1287
        %1289 = vrot.lane.b32.xlu0 %v587, 60
        %v1290 = vpop.permute.xlu0 %1289
        %1291 = vrot.lane.b32.xlu0 %v588, 60
        %v1292 = vpop.permute.xlu0 %1291
        %1293 = vrot.lane.b32.xlu0 %v589, 60
        %v1294 = vpop.permute.xlu0 %1293
        %1359 = vrot.lane.b32.xlu0 %v591, 72
        %v1360 = vpop.permute.xlu0 %1359
        %1361 = vrot.lane.b32.xlu0 %v592, 72
        %v1362 = vpop.permute.xlu0 %1361
        %1363 = vrot.lane.b32.xlu0 %v593, 72
        %v1364 = vpop.permute.xlu0 %1363
        %1365 = vrot.lane.b32.xlu0 %v594, 72
        %v1366 = vpop.permute.xlu0 %1365
        %1367 = vrot.lane.b32.xlu0 %v595, 72
        %v1368 = vpop.permute.xlu0 %1367
        %1369 = vrot.lane.b32.xlu0 %v596, 72
        %v1370 = vpop.permute.xlu0 %1369
        %1371 = vrot.lane.b32.xlu0 %v597, 72
        %v1372 = vpop.permute.xlu0 %1371
        %1373 = vrot.lane.b32.xlu0 %v598, 72
        %v1374 = vpop.permute.xlu0 %1373
        %1375 = vrot.lane.b32.xlu0 %v599, 72
        %v1376 = vpop.permute.xlu0 %1375
        %1377 = vrot.lane.b32.xlu0 %v600, 72
        %v1378 = vpop.permute.xlu0 %1377
        %1379 = vrot.lane.b32.xlu0 %v601, 72
        %v1380 = vpop.permute.xlu0 %1379
        %1381 = vrot.lane.b32.xlu0 %v602, 72
        %v1382 = vpop.permute.xlu0 %1381
        %1383 = vrot.lane.b32.xlu0 %v603, 72
        %v1384 = vpop.permute.xlu0 %1383
        %1385 = vrot.lane.b32.xlu0 %v604, 72
        %v1386 = vpop.permute.xlu0 %1385
        %1387 = vrot.lane.b32.xlu0 %v605, 72
        %v1388 = vpop.permute.xlu0 %1387
        %1389 = vrot.lane.b32.xlu0 %v606, 72
        %v1390 = vpop.permute.xlu0 %1389
        %1391 = vrot.lane.b32.xlu0 %v607, 72
        %v1392 = vpop.permute.xlu0 %1391
        %1393 = vrot.lane.b32.xlu0 %v608, 72
        %v1394 = vpop.permute.xlu0 %1393
        %1395 = vrot.lane.b32.xlu0 %v609, 72
        %v1396 = vpop.permute.xlu0 %1395
        %1397 = vrot.lane.b32.xlu0 %v610, 72
        %v1398 = vpop.permute.xlu0 %1397
        %1399 = vrot.lane.b32.xlu0 %v611, 72
        %v1400 = vpop.permute.xlu0 %1399
        %1401 = vrot.lane.b32.xlu0 %v612, 72
        %v1402 = vpop.permute.xlu0 %1401
        %1403 = vrot.lane.b32.xlu0 %v613, 72
        %v1404 = vpop.permute.xlu0 %1403
        %1405 = vrot.lane.b32.xlu0 %v614, 72
        %v1406 = vpop.permute.xlu0 %1405
        %1407 = vrot.lane.b32.xlu0 %v615, 72
        %v1408 = vpop.permute.xlu0 %1407
        %1409 = vrot.lane.b32.xlu0 %v616, 72
        %v1410 = vpop.permute.xlu0 %1409
        %1411 = vrot.lane.b32.xlu0 %v617, 72
        %v1412 = vpop.permute.xlu0 %1411
        %1413 = vrot.lane.b32.xlu0 %v618, 72
        %v1414 = vpop.permute.xlu0 %1413
        %1415 = vrot.lane.b32.xlu0 %v619, 72
        %v1416 = vpop.permute.xlu0 %1415
        %1417 = vrot.lane.b32.xlu0 %v620, 72
        %v1418 = vpop.permute.xlu0 %1417
        %1419 = vrot.lane.b32.xlu0 %v621, 72
        %v1420 = vpop.permute.xlu0 %1419
        %1421 = vrot.lane.b32.xlu0 %v622, 72
        %v1422 = vpop.permute.xlu0 %1421
        %1487 = vrot.lane.b32.xlu0 %v623, 84
        %v1488 = vpop.permute.xlu0 %1487
        %1489 = vrot.lane.b32.xlu0 %v624, 84
        %v1490 = vpop.permute.xlu0 %1489
        %1491 = vrot.lane.b32.xlu0 %v625, 84
        %v1492 = vpop.permute.xlu0 %1491
        %1493 = vrot.lane.b32.xlu0 %v626, 84
        %v1494 = vpop.permute.xlu0 %1493
        %1495 = vrot.lane.b32.xlu0 %v627, 84
        %v1496 = vpop.permute.xlu0 %1495
        %1497 = vrot.lane.b32.xlu0 %v628, 84
        %v1498 = vpop.permute.xlu0 %1497
        %1499 = vrot.lane.b32.xlu0 %v629, 84
        %v1500 = vpop.permute.xlu0 %1499
        %1501 = vrot.lane.b32.xlu0 %v630, 84
        %v1502 = vpop.permute.xlu0 %1501
        %1503 = vrot.lane.b32.xlu0 %v631, 84
        %v1504 = vpop.permute.xlu0 %1503
        %1505 = vrot.lane.b32.xlu0 %v632, 84
        %v1506 = vpop.permute.xlu0 %1505
        %1507 = vrot.lane.b32.xlu0 %v633, 84
        %v1508 = vpop.permute.xlu0 %1507
        %1509 = vrot.lane.b32.xlu0 %v634, 84
        %v1510 = vpop.permute.xlu0 %1509
        %1511 = vrot.lane.b32.xlu0 %v635, 84
        %v1512 = vpop.permute.xlu0 %1511
        %1513 = vrot.lane.b32.xlu0 %v636, 84
        %v1514 = vpop.permute.xlu0 %1513
        %1515 = vrot.lane.b32.xlu0 %v637, 84
        %v1516 = vpop.permute.xlu0 %1515
        %1517 = vrot.lane.b32.xlu0 %v638, 84
        %v1518 = vpop.permute.xlu0 %1517
        %1519 = vrot.lane.b32.xlu0 %v639, 84
        %v1520 = vpop.permute.xlu0 %1519
        %1521 = vrot.lane.b32.xlu0 %v640, 84
        %v1522 = vpop.permute.xlu0 %1521
        %1523 = vrot.lane.b32.xlu0 %v641, 84
        %v1524 = vpop.permute.xlu0 %1523
        %1525 = vrot.lane.b32.xlu0 %v642, 84
        %v1526 = vpop.permute.xlu0 %1525
        %1527 = vrot.lane.b32.xlu0 %v643, 84
        %v1528 = vpop.permute.xlu0 %1527
        %1529 = vrot.lane.b32.xlu0 %v644, 84
        %v1530 = vpop.permute.xlu0 %1529
        %1531 = vrot.lane.b32.xlu0 %v645, 84
        %v1532 = vpop.permute.xlu0 %1531
        %1533 = vrot.lane.b32.xlu0 %v646, 84
        %v1534 = vpop.permute.xlu0 %1533
        %1535 = vrot.lane.b32.xlu0 %v647, 84
        %v1536 = vpop.permute.xlu0 %1535
        %1537 = vrot.lane.b32.xlu0 %v648, 84
        %v1538 = vpop.permute.xlu0 %1537
        %1539 = vrot.lane.b32.xlu0 %v649, 84
        %v1540 = vpop.permute.xlu0 %1539
        %1541 = vrot.lane.b32.xlu0 %v650, 84
        %v1542 = vpop.permute.xlu0 %1541
        %1543 = vrot.lane.b32.xlu0 %v651, 84
        %v1544 = vpop.permute.xlu0 %1543
        %1545 = vrot.lane.b32.xlu0 %v652, 84
        %v1546 = vpop.permute.xlu0 %1545
        %1547 = vrot.lane.b32.xlu0 %v653, 84
        %v1548 = vpop.permute.xlu0 %1547
        %1549 = vrot.lane.b32.xlu0 %v654, 84
        %v1550 = vpop.permute.xlu0 %1549
        %1615 = vrot.lane.b32.xlu0 %v655, 96
        %v1616 = vpop.permute.xlu0 %1615
        %1617 = vrot.lane.b32.xlu0 %v656, 96
        %v1618 = vpop.permute.xlu0 %1617
        %1619 = vrot.lane.b32.xlu0 %v657, 96
        %v1620 = vpop.permute.xlu0 %1619
        %1621 = vrot.lane.b32.xlu0 %v658, 96
        %v1622 = vpop.permute.xlu0 %1621
        %1623 = vrot.lane.b32.xlu0 %v659, 96
        %v1624 = vpop.permute.xlu0 %1623
        %1625 = vrot.lane.b32.xlu0 %v660, 96
        %v1626 = vpop.permute.xlu0 %1625
        %1627 = vrot.lane.b32.xlu0 %v661, 96
        %v1628 = vpop.permute.xlu0 %1627
        %1629 = vrot.lane.b32.xlu0 %v662, 96
        %v1630 = vpop.permute.xlu0 %1629
        %1631 = vrot.lane.b32.xlu0 %v663, 96
        %v1632 = vpop.permute.xlu0 %1631
        %1633 = vrot.lane.b32.xlu0 %v664, 96
        %v1634 = vpop.permute.xlu0 %1633
        %1635 = vrot.lane.b32.xlu0 %v665, 96
        %v1636 = vpop.permute.xlu0 %1635
        %1637 = vrot.lane.b32.xlu0 %v666, 96
        %v1638 = vpop.permute.xlu0 %1637
        %1639 = vrot.lane.b32.xlu0 %v667, 96
        %v1640 = vpop.permute.xlu0 %1639
        %1641 = vrot.lane.b32.xlu0 %v668, 96
        %v1642 = vpop.permute.xlu0 %1641
        %1643 = vrot.lane.b32.xlu0 %v669, 96
        %v1644 = vpop.permute.xlu0 %1643
        %1645 = vrot.lane.b32.xlu0 %v670, 96
        %v1646 = vpop.permute.xlu0 %1645
        %1647 = vrot.lane.b32.xlu0 %v671, 96
        %v1648 = vpop.permute.xlu0 %1647
        %1649 = vrot.lane.b32.xlu0 %v672, 96
        %v1650 = vpop.permute.xlu0 %1649
        %1651 = vrot.lane.b32.xlu0 %v673, 96
        %v1652 = vpop.permute.xlu0 %1651
        %1653 = vrot.lane.b32.xlu0 %v674, 96
        %v1654 = vpop.permute.xlu0 %1653
        %1655 = vrot.lane.b32.xlu0 %v675, 96
        %v1656 = vpop.permute.xlu0 %1655
        %1657 = vrot.lane.b32.xlu0 %v676, 96
        %v1658 = vpop.permute.xlu0 %1657
        %1659 = vrot.lane.b32.xlu0 %v677, 96
        %v1660 = vpop.permute.xlu0 %1659
        %1661 = vrot.lane.b32.xlu0 %v678, 96
        %v1662 = vpop.permute.xlu0 %1661
        %1663 = vrot.lane.b32.xlu0 %v679, 96
        %v1664 = vpop.permute.xlu0 %1663
        %1665 = vrot.lane.b32.xlu0 %v680, 96
        %v1666 = vpop.permute.xlu0 %1665
        %1667 = vrot.lane.b32.xlu0 %v681, 96
        %v1668 = vpop.permute.xlu0 %1667
        %1669 = vrot.lane.b32.xlu0 %v682, 96
        %v1670 = vpop.permute.xlu0 %1669
        %1671 = vrot.lane.b32.xlu0 %v683, 96
        %v1672 = vpop.permute.xlu0 %1671
        %1673 = vrot.lane.b32.xlu0 %v684, 96
        %v1674 = vpop.permute.xlu0 %1673
        %1675 = vrot.lane.b32.xlu0 %v685, 96
        %v1676 = vpop.permute.xlu0 %1675
        %1677 = vrot.lane.b32.xlu0 %v686, 96
        %v1678 = vpop.permute.xlu0 %1677
        %v1711 = vsel %vm309, %v398, %v720
        %v1712 = vsel %vm309, %v399, %v722
        %v1713 = vsel %vm309, %v400, %v724
        %v1714 = vsel %vm309, %v401, %v726
        %v1715 = vsel %vm309, %v402, %v728
        %v1716 = vsel %vm309, %v403, %v730
        %v1717 = vsel %vm309, %v404, %v732
        %v1718 = vsel %vm309, %v405, %v734
        %v1719 = vsel %vm309, %v406, %v736
        %v1720 = vsel %vm309, %v407, %v738
        %v1721 = vsel %vm309, %v408, %v740
        %v1722 = vsel %vm309, %v409, %v742
        %v1723 = vsel %vm309, %v410, %v744
        %v1724 = vsel %vm309, %v411, %v746
        %v1725 = vsel %vm309, %v412, %v748
        %v1726 = vsel %vm309, %v413, %v750
        %v1727 = vsel %vm309, %v414, %v752
        %v1728 = vsel %vm309, %v415, %v754
        %v1729 = vsel %vm309, %v416, %v756
        %v1730 = vsel %vm309, %v417, %v758
        %v1731 = vsel %vm309, %v418, %v760
        %v1732 = vsel %vm309, %v419, %v762
        %v1733 = vsel %vm309, %v420, %v764
        %v1734 = vsel %vm309, %v421, %v766
        %v1735 = vsel %vm309, %v422, %v768
        %v1736 = vsel %vm309, %v423, %v770
        %v1737 = vsel %vm309, %v424, %v772
        %v1738 = vsel %vm309, %v425, %v774
        %v1739 = vsel %vm309, %v426, %v776
        %v1740 = vsel %vm309, %v427, %v778
        %v1741 = vsel %vm309, %v428, %v780
        %v1742 = vsel %vm309, %v429, %v782
        %vm1743 = vcmask 195584
        %v1744 = vsel %vm1743, %v1711, %v848
        %v1745 = vsel %vm1743, %v1712, %v850
        %v1746 = vsel %vm1743, %v1713, %v852
        %v1747 = vsel %vm1743, %v1714, %v854
        %v1748 = vsel %vm1743, %v1715, %v856
        %v1749 = vsel %vm1743, %v1716, %v858
        %v1750 = vsel %vm1743, %v1717, %v860
        %v1751 = vsel %vm1743, %v1718, %v862
        %v1752 = vsel %vm1743, %v1719, %v864
        %v1753 = vsel %vm1743, %v1720, %v866
        %v1754 = vsel %vm1743, %v1721, %v868
        %v1755 = vsel %vm1743, %v1722, %v870
        %v1756 = vsel %vm1743, %v1723, %v872
        %v1757 = vsel %vm1743, %v1724, %v874
        %v1758 = vsel %vm1743, %v1725, %v876
        %v1759 = vsel %vm1743, %v1726, %v878
        %v1760 = vsel %vm1743, %v1727, %v880
        %v1761 = vsel %vm1743, %v1728, %v882
        %v1762 = vsel %vm1743, %v1729, %v884
        %v1763 = vsel %vm1743, %v1730, %v886
        %v1764 = vsel %vm1743, %v1731, %v888
        %v1765 = vsel %vm1743, %v1732, %v890
        %v1766 = vsel %vm1743, %v1733, %v892
        %v1767 = vsel %vm1743, %v1734, %v894
        %v1768 = vsel %vm1743, %v1735, %v896
        %v1769 = vsel %vm1743, %v1736, %v898
        %v1770 = vsel %vm1743, %v1737, %v900
        %v1771 = vsel %vm1743, %v1738, %v902
        %v1772 = vsel %vm1743, %v1739, %v904
        %v1773 = vsel %vm1743, %v1740, %v906
        %v1774 = vsel %vm1743, %v1741, %v908
        %v1775 = vsel %vm1743, %v1742, %v910
        %vm1776 = vcmask 293888
        %v1777 = vsel %vm1776, %v1744, %v976
        %v1778 = vsel %vm1776, %v1745, %v978
        %v1779 = vsel %vm1776, %v1746, %v980
        %v1780 = vsel %vm1776, %v1747, %v982
        %v1781 = vsel %vm1776, %v1748, %v984
        %v1782 = vsel %vm1776, %v1749, %v986
        %v1783 = vsel %vm1776, %v1750, %v988
        %v1784 = vsel %vm1776, %v1751, %v990
        %v1785 = vsel %vm1776, %v1752, %v992
        %v1786 = vsel %vm1776, %v1753, %v994
        %v1787 = vsel %vm1776, %v1754, %v996
        %v1788 = vsel %vm1776, %v1755, %v998
        %v1789 = vsel %vm1776, %v1756, %v1000
        %v1790 = vsel %vm1776, %v1757, %v1002
        %v1791 = vsel %vm1776, %v1758, %v1004
        %v1792 = vsel %vm1776, %v1759, %v1006
        %v1793 = vsel %vm1776, %v1760, %v1008
        %v1794 = vsel %vm1776, %v1761, %v1010
        %v1795 = vsel %vm1776, %v1762, %v1012
        %v1796 = vsel %vm1776, %v1763, %v1014
        %v1797 = vsel %vm1776, %v1764, %v1016
        %v1798 = vsel %vm1776, %v1765, %v1018
        %v1799 = vsel %vm1776, %v1766, %v1020
        %v1800 = vsel %vm1776, %v1767, %v1022
        %v1801 = vsel %vm1776, %v1768, %v1024
        %v1802 = vsel %vm1776, %v1769, %v1026
        %v1803 = vsel %vm1776, %v1770, %v1028
        %v1804 = vsel %vm1776, %v1771, %v1030
        %v1805 = vsel %vm1776, %v1772, %v1032
        %v1806 = vsel %vm1776, %v1773, %v1034
        %v1807 = vsel %vm1776, %v1774, %v1036
        %v1808 = vsel %vm1776, %v1775, %v1038
        %vm1809 = vcmask 392192
        %v1810 = vsel %vm1809, %v1777, %v1104
        %v1811 = vsel %vm1809, %v1778, %v1106
        %v1812 = vsel %vm1809, %v1779, %v1108
        %v1813 = vsel %vm1809, %v1780, %v1110
        %v1814 = vsel %vm1809, %v1781, %v1112
        %v1815 = vsel %vm1809, %v1782, %v1114
        %v1816 = vsel %vm1809, %v1783, %v1116
        %v1817 = vsel %vm1809, %v1784, %v1118
        %v1818 = vsel %vm1809, %v1785, %v1120
        %v1819 = vsel %vm1809, %v1786, %v1122
        %v1820 = vsel %vm1809, %v1787, %v1124
        %v1821 = vsel %vm1809, %v1788, %v1126
        %v1822 = vsel %vm1809, %v1789, %v1128
        %v1823 = vsel %vm1809, %v1790, %v1130
        %v1824 = vsel %vm1809, %v1791, %v1132
        %v1825 = vsel %vm1809, %v1792, %v1134
        %v1826 = vsel %vm1809, %v1793, %v1136
        %v1827 = vsel %vm1809, %v1794, %v1138
        %v1828 = vsel %vm1809, %v1795, %v1140
        %v1829 = vsel %vm1809, %v1796, %v1142
        %v1830 = vsel %vm1809, %v1797, %v1144
        %v1831 = vsel %vm1809, %v1798, %v1146
        %v1832 = vsel %vm1809, %v1799, %v1148
        %v1833 = vsel %vm1809, %v1800, %v1150
        %v1834 = vsel %vm1809, %v1801, %v1152
        %v1835 = vsel %vm1809, %v1802, %v1154
        %v1836 = vsel %vm1809, %v1803, %v1156
        %v1837 = vsel %vm1809, %v1804, %v1158
        %v1838 = vsel %vm1809, %v1805, %v1160
        %v1839 = vsel %vm1809, %v1806, %v1162
        %v1840 = vsel %vm1809, %v1807, %v1164
        %v1841 = vsel %vm1809, %v1808, %v1166
        %vm1842 = vcmask 490496
        %v1843 = vsel %vm1842, %v1810, %v1232
        %v1844 = vsel %vm1842, %v1811, %v1234
        %v1845 = vsel %vm1842, %v1812, %v1236
        %v1846 = vsel %vm1842, %v1813, %v1238
        %v1847 = vsel %vm1842, %v1814, %v1240
        %v1848 = vsel %vm1842, %v1815, %v1242
        %v1849 = vsel %vm1842, %v1816, %v1244
        %v1850 = vsel %vm1842, %v1817, %v1246
        %v1851 = vsel %vm1842, %v1818, %v1248
        %v1852 = vsel %vm1842, %v1819, %v1250
        %v1853 = vsel %vm1842, %v1820, %v1252
        %v1854 = vsel %vm1842, %v1821, %v1254
        %v1855 = vsel %vm1842, %v1822, %v1256
        %v1856 = vsel %vm1842, %v1823, %v1258
        %v1857 = vsel %vm1842, %v1824, %v1260
        %v1858 = vsel %vm1842, %v1825, %v1262
        %v1859 = vsel %vm1842, %v1826, %v1264
        %v1860 = vsel %vm1842, %v1827, %v1266
        %v1861 = vsel %vm1842, %v1828, %v1268
        %v1862 = vsel %vm1842, %v1829, %v1270
        %v1863 = vsel %vm1842, %v1830, %v1272
        %v1864 = vsel %vm1842, %v1831, %v1274
        %v1865 = vsel %vm1842, %v1832, %v1276
        %v1866 = vsel %vm1842, %v1833, %v1278
        %v1867 = vsel %vm1842, %v1834, %v1280
        %v1868 = vsel %vm1842, %v1835, %v1282
        %v1869 = vsel %vm1842, %v1836, %v1284
        %v1870 = vsel %vm1842, %v1837, %v1286
        %v1871 = vsel %vm1842, %v1838, %v1288
        %v1872 = vsel %vm1842, %v1839, %v1290
        %v1873 = vsel %vm1842, %v1840, %v1292
        %v1874 = vsel %vm1842, %v1841, %v1294
        %vm1875 = vcmask 588800
        %v1876 = vsel %vm1875, %v1843, %v1360
        %v1877 = vsel %vm1875, %v1844, %v1362
        %v1878 = vsel %vm1875, %v1845, %v1364
        %v1879 = vsel %vm1875, %v1846, %v1366
        %v1880 = vsel %vm1875, %v1847, %v1368
        %v1881 = vsel %vm1875, %v1848, %v1370
        %v1882 = vsel %vm1875, %v1849, %v1372
        %v1883 = vsel %vm1875, %v1850, %v1374
        %v1884 = vsel %vm1875, %v1851, %v1376
        %v1885 = vsel %vm1875, %v1852, %v1378
        %v1886 = vsel %vm1875, %v1853, %v1380
        %v1887 = vsel %vm1875, %v1854, %v1382
        %v1888 = vsel %vm1875, %v1855, %v1384
        %v1889 = vsel %vm1875, %v1856, %v1386
        %v1890 = vsel %vm1875, %v1857, %v1388
        %v1891 = vsel %vm1875, %v1858, %v1390
        %v1892 = vsel %vm1875, %v1859, %v1392
        %v1893 = vsel %vm1875, %v1860, %v1394
        %v1894 = vsel %vm1875, %v1861, %v1396
        %v1895 = vsel %vm1875, %v1862, %v1398
        %v1896 = vsel %vm1875, %v1863, %v1400
        %v1897 = vsel %vm1875, %v1864, %v1402
        %v1898 = vsel %vm1875, %v1865, %v1404
        %v1899 = vsel %vm1875, %v1866, %v1406
        %v1900 = vsel %vm1875, %v1867, %v1408
        %v1901 = vsel %vm1875, %v1868, %v1410
        %v1902 = vsel %vm1875, %v1869, %v1412
        %v1903 = vsel %vm1875, %v1870, %v1414
        %v1904 = vsel %vm1875, %v1871, %v1416
        %v1905 = vsel %vm1875, %v1872, %v1418
        %v1906 = vsel %vm1875, %v1873, %v1420
        %v1907 = vsel %vm1875, %v1874, %v1422
        %vm1908 = vcmask 687104
        %v1909 = vsel %vm1908, %v1876, %v1488
        %v1910 = vsel %vm1908, %v1877, %v1490
        %v1911 = vsel %vm1908, %v1878, %v1492
        %v1912 = vsel %vm1908, %v1879, %v1494
        %v1913 = vsel %vm1908, %v1880, %v1496
        %v1914 = vsel %vm1908, %v1881, %v1498
        %v1915 = vsel %vm1908, %v1882, %v1500
        %v1916 = vsel %vm1908, %v1883, %v1502
        %v1917 = vsel %vm1908, %v1884, %v1504
        %v1918 = vsel %vm1908, %v1885, %v1506
        %v1919 = vsel %vm1908, %v1886, %v1508
        %v1920 = vsel %vm1908, %v1887, %v1510
        %v1921 = vsel %vm1908, %v1888, %v1512
        %v1922 = vsel %vm1908, %v1889, %v1514
        %v1923 = vsel %vm1908, %v1890, %v1516
        %v1924 = vsel %vm1908, %v1891, %v1518
        %v1925 = vsel %vm1908, %v1892, %v1520
        %v1926 = vsel %vm1908, %v1893, %v1522
        %v1927 = vsel %vm1908, %v1894, %v1524
        %v1928 = vsel %vm1908, %v1895, %v1526
        %v1929 = vsel %vm1908, %v1896, %v1528
        %v1930 = vsel %vm1908, %v1897, %v1530
        %v1931 = vsel %vm1908, %v1898, %v1532
        %v1932 = vsel %vm1908, %v1899, %v1534
        %v1933 = vsel %vm1908, %v1900, %v1536
        %v1934 = vsel %vm1908, %v1901, %v1538
        %v1935 = vsel %vm1908, %v1902, %v1540
        %v1936 = vsel %vm1908, %v1903, %v1542
        %v1937 = vsel %vm1908, %v1904, %v1544
        %v1938 = vsel %vm1908, %v1905, %v1546
        %v1939 = vsel %vm1908, %v1906, %v1548
        %v1940 = vsel %vm1908, %v1907, %v1550
        %vm1941 = vcmask 785408
        %v1942 = vsel %vm1941, %v1909, %v1616
        %v1943 = vsel %vm1941, %v1910, %v1618
        %v1944 = vsel %vm1941, %v1911, %v1620
        %v1945 = vsel %vm1941, %v1912, %v1622
        %v1946 = vsel %vm1941, %v1913, %v1624
        %v1947 = vsel %vm1941, %v1914, %v1626
        %v1948 = vsel %vm1941, %v1915, %v1628
        %v1949 = vsel %vm1941, %v1916, %v1630
        %v1950 = vsel %vm1941, %v1917, %v1632
        %v1951 = vsel %vm1941, %v1918, %v1634
        %v1952 = vsel %vm1941, %v1919, %v1636
        %v1953 = vsel %vm1941, %v1920, %v1638
        %v1954 = vsel %vm1941, %v1921, %v1640
        %v1955 = vsel %vm1941, %v1922, %v1642
        %v1956 = vsel %vm1941, %v1923, %v1644
        %v1957 = vsel %vm1941, %v1924, %v1646
        %v1958 = vsel %vm1941, %v1925, %v1648
        %v1959 = vsel %vm1941, %v1926, %v1650
        %v1960 = vsel %vm1941, %v1927, %v1652
        %v1961 = vsel %vm1941, %v1928, %v1654
        %v1962 = vsel %vm1941, %v1929, %v1656
        %v1963 = vsel %vm1941, %v1930, %v1658
        %v1964 = vsel %vm1941, %v1931, %v1660
        %v1965 = vsel %vm1941, %v1932, %v1662
        %v1966 = vsel %vm1941, %v1933, %v1664
        %v1967 = vsel %vm1941, %v1934, %v1666
        %v1968 = vsel %vm1941, %v1935, %v1668
        %v1969 = vsel %vm1941, %v1936, %v1670
        %v1970 = vsel %vm1941, %v1937, %v1672
        %v1971 = vsel %vm1941, %v1938, %v1674
        %v1972 = vsel %vm1941, %v1939, %v1676
        %v1973 = vsel %vm1941, %v1940, %v1678
        %v1974 = vld [vmem:[%s1] sm:$0xff]
        %v1975 = vld [vmem:[%s1 + $0x8] sm:$0xff]
        %v1976 = vld [vmem:[%s1 + $0x10] sm:$0xff]
        %v1977 = vld [vmem:[%s1 + $0x18] sm:$0xff]
        %v1978 = vld [vmem:[%s1 + $0x20] sm:$0xff]
        %v1979 = vld [vmem:[%s1 + $0x28] sm:$0xff]
        %v1980 = vld [vmem:[%s1 + $0x30] sm:$0xff]
        %v1981 = vld [vmem:[%s1 + $0x38] sm:$0xff]
        %v1982 = vld [vmem:[%s1 + $0x40] sm:$0xff]
        %v1983 = vld [vmem:[%s1 + $0x48] sm:$0xff]
        %v1984 = vld [vmem:[%s1 + $0x50] sm:$0xff]
        %v1985 = vld [vmem:[%s1 + $0x58] sm:$0xff]
        %v1986 = vld [vmem:[%s1 + $0x60] sm:$0xff]
        %v1987 = vld [vmem:[%s1 + $0x68] sm:$0xf]
        %vm1988 = vcmask 883712
        %v1990 = vsel %vm1988, %v1942, 0
        %v1993 = vsel %vm1988, %v1943, 0
        %v1996 = vsel %vm1988, %v1944, 0
        %v1999 = vsel %vm1988, %v1945, 0
        %v2002 = vsel %vm1988, %v1946, 0
        %v2005 = vsel %vm1988, %v1947, 0
        %v2008 = vsel %vm1988, %v1948, 0
        %v2011 = vsel %vm1988, %v1949, 0
        %v2014 = vsel %vm1988, %v1950, 0
        %v2017 = vsel %vm1988, %v1951, 0
        %v2020 = vsel %vm1988, %v1952, 0
        %v2023 = vsel %vm1988, %v1953, 0
        %v2026 = vsel %vm1988, %v1954, 0
        %v2029 = vsel %vm1988, %v1955, 0
        %v2032 = vsel %vm1988, %v1956, 0
        %v2035 = vsel %vm1988, %v1957, 0
        %v2038 = vsel %vm1988, %v1958, 0
        %v2041 = vsel %vm1988, %v1959, 0
        %v2044 = vsel %vm1988, %v1960, 0
        %v2047 = vsel %vm1988, %v1961, 0
        %v2050 = vsel %vm1988, %v1962, 0
        %v2053 = vsel %vm1988, %v1963, 0
        %v2056 = vsel %vm1988, %v1964, 0
        %v2059 = vsel %vm1988, %v1965, 0
        %v2062 = vsel %vm1988, %v1966, 0
        %v2065 = vsel %vm1988, %v1967, 0
        %v2068 = vsel %vm1988, %v1968, 0
        %v2071 = vsel %vm1988, %v1969, 0
        %v2074 = vsel %vm1988, %v1970, 0
        %v2077 = vsel %vm1988, %v1971, 0
        %v2080 = vsel %vm1988, %v1972, 0
        %v2083 = vsel %vm1988, %v1973, 0
        %vm2085 = vcmask 1043456
        %v2087 = vsel %vm2085, %v1987, 0
        %2089 = vmatprep.subr.mxu0 0.0
        %2090 = vmatpush1.msra.mxu0 %v1974
        %2091 = vmatprep.subr.mxu0 0.0
        %2092 = vmatpush1.msra.mxu0 %v1975
        %2093 = vmatprep.subr.mxu0 0.0
        %2094 = vmatpush1.msra.mxu0 %v1976
        %2095 = vmatprep.subr.mxu0 0.0
        %2096 = vmatpush1.msra.mxu0 %v1977
        %2097 = vmatprep.subr.mxu0 0.0
        %2098 = vmatpush1.msra.mxu0 %v1978
        %2099 = vmatprep.subr.mxu0 0.0
        %2100 = vmatpush1.msra.mxu0 %v1979
        %2101 = vmatprep.subr.mxu0 0.0
        %2102 = vmatpush1.msra.mxu0 %v1980
        %2103 = vmatprep.subr.mxu0 0.0
        %2104 = vmatpush1.msra.mxu0 %v1981
        %2105 = vmatprep.subr.mxu0 0.0
        %2106 = vmatpush1.msra.mxu0 %v1982
        %2107 = vmatprep.subr.mxu0 0.0
        %2108 = vmatpush1.msra.mxu0 %v1983
        %2109 = vmatprep.subr.mxu0 0.0
        %2110 = vmatpush1.msra.mxu0 %v1984
        %2111 = vmatprep.subr.mxu0 0.0
        %2112 = vmatpush1.msra.mxu0 %v1985
        %2113 = vmatprep.subr.mxu0 0.0
        %2114 = vmatpush1.msra.mxu0 %v1986
        %2115 = vmatprep.subr.mxu0 0.0
        %2116 = vmatpush1.msra.mxu0 %v2087
        %2117 = vmatprep.subr.mxu0 0.0
        %2118 = vmatpush1.msra.mxu0 0.0
        %2119 = vmatprep.subr.mxu0 0.0
        %2120 = vmatpush1.msra.mxu0 0.0
        %2121 = vmatprep.subr.mxu0 0.0
        %2122 = vmatpush1.msra.mxu0 0.0
        %2123 = vmatprep.subr.mxu0 0.0
        %2124 = vmatpush1.msra.mxu0 0.0
        %2125 = vmatprep.subr.mxu0 0.0
        %2126 = vmatpush1.msra.mxu0 0.0
        %2127 = vmatprep.subr.mxu0 0.0
        %2128 = vmatpush1.msra.mxu0 0.0
        %2129 = vmatprep.subr.mxu0 0.0
        %2130 = vmatpush1.msra.mxu0 0.0
        %2131 = vmatprep.subr.mxu0 0.0
        %2132 = vmatpush1.msra.mxu0 0.0
        %2133 = vmatprep.subr.mxu0 0.0
        %2134 = vmatpush1.msra.mxu0 0.0
        %2135 = vmatprep.subr.mxu0 0.0
        %2136 = vmatpush1.msra.mxu0 0.0
        %2137 = vmatprep.subr.mxu0 0.0
        %2138 = vmatpush1.msra.mxu0 0.0
        %2139 = vmatprep.subr.mxu0 0.0
        %2140 = vmatpush1.msra.mxu0 0.0
        %2141 = vmatprep.subr.mxu0 0.0
        %2142 = vmatpush1.msra.mxu0 0.0
        %2143 = vmatprep.subr.mxu0 0.0
        %2144 = vmatpush1.msra.mxu0 0.0
        %2145 = vmatprep.subr.mxu0 0.0
        %2146 = vmatpush1.msra.mxu0 0.0
        %2147 = vmatprep.subr.mxu0 0.0
        %2148 = vmatpush1.msra.mxu0 0.0
        %2149 = vmatprep.subr.mxu0 0.0
        %2150 = vmatpush1.msra.mxu0 0.0
        %2151 = vmatprep.subr.mxu0 0.0
        %2152 = vmatpush1.msra.mxu0 0.0
        %2153 = vmatprep.mubr.f32.mxu0 0.0
        %2154 = vmatmul.mubr.f32.gmra.mrb[0].mxu0 %v1990
        %v2155 = vpop.f32.mrb[0].mxu0
        %v2156 = vadd.f32 0.0, %v2155
        %v2157 = vpop.f32.mrb[0].mxu0
        %2158 = vmatprep.mubr.f32.mxu0 0.0
        %2159 = vmatmul.mubr.f32.gmra.mrb[0].mxu0 %v1993
        %v2160 = vpop.f32.mrb[0].mxu0
        %v2161 = vadd.f32 0.0, %v2160
        %v2162 = vpop.f32.mrb[0].mxu0
        %2163 = vmatprep.mubr.f32.mxu0 0.0
        %2164 = vmatmul.mubr.f32.gmra.mrb[0].mxu0 %v1996
        %v2165 = vpop.f32.mrb[0].mxu0
        %v2166 = vadd.f32 0.0, %v2165
        %v2167 = vpop.f32.mrb[0].mxu0
        %2168 = vmatprep.mubr.f32.mxu0 0.0
        %2169 = vmatmul.mubr.f32.gmra.mrb[0].mxu0 %v1999
        %v2170 = vpop.f32.mrb[0].mxu0
        %v2171 = vadd.f32 0.0, %v2170
        %v2172 = vpop.f32.mrb[0].mxu0
        %2173 = vmatprep.mubr.f32.mxu0 0.0
        %2174 = vmatmul.mubr.f32.gmra.mrb[0].mxu0 %v2002
        %v2175 = vpop.f32.mrb[0].mxu0
        %v2176 = vadd.f32 0.0, %v2175
        %v2177 = vpop.f32.mrb[0].mxu0
        %2178 = vmatprep.mubr.f32.mxu0 0.0
        %2179 = vmatmul.mubr.f32.gmra.mrb[0].mxu0 %v2005
        %v2180 = vpop.f32.mrb[0].mxu0
        %v2181 = vadd.f32 0.0, %v2180
        %v2182 = vpop.f32.mrb[0].mxu0
        %2183 = vmatprep.mubr.f32.mxu0 0.0
        %2184 = vmatmul.mubr.f32.gmra.mrb[0].mxu0 %v2008
        %v2185 = vpop.f32.mrb[0].mxu0
        %v2186 = vadd.f32 0.0, %v2185
        %v2187 = vpop.f32.mrb[0].mxu0
        %2188 = vmatprep.mubr.f32.mxu0 0.0
        %2189 = vmatmul.mubr.f32.gmra.mrb[0].mxu0 %v2011
        %v2190 = vpop.f32.mrb[0].mxu0
        %v2191 = vadd.f32 0.0, %v2190
        %v2192 = vpop.f32.mrb[0].mxu0
        %2193 = vmatprep.mubr.f32.mxu0 0.0
        %2194 = vmatmul.mubr.f32.gmra.mrb[0].mxu0 %v2014
        %v2195 = vpop.f32.mrb[0].mxu0
        %v2196 = vadd.f32 0.0, %v2195
        %v2197 = vpop.f32.mrb[0].mxu0
        %2198 = vmatprep.mubr.f32.mxu0 0.0
        %2199 = vmatmul.mubr.f32.gmra.mrb[0].mxu0 %v2017
        %v2200 = vpop.f32.mrb[0].mxu0
        %v2201 = vadd.f32 0.0, %v2200
        %v2202 = vpop.f32.mrb[0].mxu0
        %2203 = vmatprep.mubr.f32.mxu0 0.0
        %2204 = vmatmul.mubr.f32.gmra.mrb[0].mxu0 %v2020
        %v2205 = vpop.f32.mrb[0].mxu0
        %v2206 = vadd.f32 0.0, %v2205
        %v2207 = vpop.f32.mrb[0].mxu0
        %2208 = vmatprep.mubr.f32.mxu0 0.0
        %2209 = vmatmul.mubr.f32.gmra.mrb[0].mxu0 %v2023
        %v2210 = vpop.f32.mrb[0].mxu0
        %v2211 = vadd.f32 0.0, %v2210
        %v2212 = vpop.f32.mrb[0].mxu0
        %2213 = vmatprep.mubr.f32.mxu0 0.0
        %2214 = vmatmul.mubr.f32.gmra.mrb[0].mxu0 %v2026
        %v2215 = vpop.f32.mrb[0].mxu0
        %v2216 = vadd.f32 0.0, %v2215
        %v2217 = vpop.f32.mrb[0].mxu0
        %2218 = vmatprep.mubr.f32.mxu0 0.0
        %2219 = vmatmul.mubr.f32.gmra.mrb[0].mxu0 %v2029
        %v2220 = vpop.f32.mrb[0].mxu0
        %v2221 = vadd.f32 0.0, %v2220
        %v2222 = vpop.f32.mrb[0].mxu0
        %2223 = vmatprep.mubr.f32.mxu0 0.0
        %2224 = vmatmul.mubr.f32.gmra.mrb[0].mxu0 %v2032
        %v2225 = vpop.f32.mrb[0].mxu0
        %v2226 = vadd.f32 0.0, %v2225
        %v2227 = vpop.f32.mrb[0].mxu0
        %2228 = vmatprep.mubr.f32.mxu0 0.0
        %2229 = vmatmul.mubr.f32.gmra.mrb[0].mxu0 %v2035
        %v2230 = vpop.f32.mrb[0].mxu0
        %v2231 = vadd.f32 0.0, %v2230
        %v2232 = vpop.f32.mrb[0].mxu0
        %2233 = vmatprep.mubr.f32.mxu0 0.0
        %2234 = vmatmul.mubr.f32.gmra.mrb[0].mxu0 %v2038
        %v2235 = vpop.f32.mrb[0].mxu0
        %v2236 = vadd.f32 0.0, %v2235
        %v2237 = vpop.f32.mrb[0].mxu0
        %2238 = vmatprep.mubr.f32.mxu0 0.0
        %2239 = vmatmul.mubr.f32.gmra.mrb[0].mxu0 %v2041
        %v2240 = vpop.f32.mrb[0].mxu0
        %v2241 = vadd.f32 0.0, %v2240
        %v2242 = vpop.f32.mrb[0].mxu0
        %2243 = vmatprep.mubr.f32.mxu0 0.0
        %2244 = vmatmul.mubr.f32.gmra.mrb[0].mxu0 %v2044
        %v2245 = vpop.f32.mrb[0].mxu0
        %v2246 = vadd.f32 0.0, %v2245
        %v2247 = vpop.f32.mrb[0].mxu0
        %2248 = vmatprep.mubr.f32.mxu0 0.0
        %2249 = vmatmul.mubr.f32.gmra.mrb[0].mxu0 %v2047
        %v2250 = vpop.f32.mrb[0].mxu0
        %v2251 = vadd.f32 0.0, %v2250
        %v2252 = vpop.f32.mrb[0].mxu0
        %2253 = vmatprep.mubr.f32.mxu0 0.0
        %2254 = vmatmul.mubr.f32.gmra.mrb[0].mxu0 %v2050
        %v2255 = vpop.f32.mrb[0].mxu0
        %v2256 = vadd.f32 0.0, %v2255
        %v2257 = vpop.f32.mrb[0].mxu0
        %2258 = vmatprep.mubr.f32.mxu0 0.0
        %2259 = vmatmul.mubr.f32.gmra.mrb[0].mxu0 %v2053
        %v2260 = vpop.f32.mrb[0].mxu0
        %v2261 = vadd.f32 0.0, %v2260
        %v2262 = vpop.f32.mrb[0].mxu0
        %2263 = vmatprep.mubr.f32.mxu0 0.0
        %2264 = vmatmul.mubr.f32.gmra.mrb[0].mxu0 %v2056
        %v2265 = vpop.f32.mrb[0].mxu0
        %v2266 = vadd.f32 0.0, %v2265
        %v2267 = vpop.f32.mrb[0].mxu0
        %2268 = vmatprep.mubr.f32.mxu0 0.0
        %2269 = vmatmul.mubr.f32.gmra.mrb[0].mxu0 %v2059
        %v2270 = vpop.f32.mrb[0].mxu0
        %v2271 = vadd.f32 0.0, %v2270
        %v2272 = vpop.f32.mrb[0].mxu0
        %2273 = vmatprep.mubr.f32.mxu0 0.0
        %2274 = vmatmul.mubr.f32.gmra.mrb[0].mxu0 %v2062
        %v2275 = vpop.f32.mrb[0].mxu0
        %v2276 = vadd.f32 0.0, %v2275
        %v2277 = vpop.f32.mrb[0].mxu0
        %2278 = vmatprep.mubr.f32.mxu0 0.0
        %2279 = vmatmul.mubr.f32.gmra.mrb[0].mxu0 %v2065
        %v2280 = vpop.f32.mrb[0].mxu0
        %v2281 = vadd.f32 0.0, %v2280
        %v2282 = vpop.f32.mrb[0].mxu0
        %2283 = vmatprep.mubr.f32.mxu0 0.0
        %2284 = vmatmul.mubr.f32.gmra.mrb[0].mxu0 %v2068
        %v2285 = vpop.f32.mrb[0].mxu0
        %v2286 = vadd.f32 0.0, %v2285
        %v2287 = vpop.f32.mrb[0].mxu0
        %2288 = vmatprep.mubr.f32.mxu0 0.0
        %2289 = vmatmul.mubr.f32.gmra.mrb[0].mxu0 %v2071
        %v2290 = vpop.f32.mrb[0].mxu0
        %v2291 = vadd.f32 0.0, %v2290
        %v2292 = vpop.f32.mrb[0].mxu0
        %2293 = vmatprep.mubr.f32.mxu0 0.0
        %2294 = vmatmul.mubr.f32.gmra.mrb[0].mxu0 %v2074
        %v2295 = vpop.f32.mrb[0].mxu0
        %v2296 = vadd.f32 0.0, %v2295
        %v2297 = vpop.f32.mrb[0].mxu0
        %2298 = vmatprep.mubr.f32.mxu0 0.0
        %2299 = vmatmul.mubr.f32.gmra.mrb[0].mxu0 %v2077
        %v2300 = vpop.f32.mrb[0].mxu0
        %v2301 = vadd.f32 0.0, %v2300
        %v2302 = vpop.f32.mrb[0].mxu0
        %2303 = vmatprep.mubr.f32.mxu0 0.0
        %2304 = vmatmul.mubr.f32.gmra.mrb[0].mxu0 %v2080
        %v2305 = vpop.f32.mrb[0].mxu0
        %v2306 = vadd.f32 0.0, %v2305
        %v2307 = vpop.f32.mrb[0].mxu0
        %2308 = vmatprep.mubr.f32.mxu0 0.0
        %2309 = vmatmul.mubr.f32.gmra.mrb[0].mxu0 %v2083
        %v2310 = vpop.f32.mrb[0].mxu0
        %v2311 = vadd.f32 0.0, %v2310
        %v2312 = vpop.f32.mrb[0].mxu0
        %2313 = vdwg.mxu0
        %v2314 = vld [vmem:[%s2] sm:$0x1]
        %v2316 = vlaneseq
        %v2317 = vshrl.u32 %v2316, 7
        %v2318 = vsub.s32 0, %v2317
        %v2319 = vrot.slane %v2314, %v2318
        %v2321 = vmul.f32 %v2156, %v2319
        %v2322 = vmul.f32 %v2161, %v2319
        %v2323 = vmul.f32 %v2166, %v2319
        %v2324 = vmul.f32 %v2171, %v2319
        %v2325 = vmul.f32 %v2176, %v2319
        %v2326 = vmul.f32 %v2181, %v2319
        %v2327 = vmul.f32 %v2186, %v2319
        %v2328 = vmul.f32 %v2191, %v2319
        %v2329 = vmul.f32 %v2196, %v2319
        %v2330 = vmul.f32 %v2201, %v2319
        %v2331 = vmul.f32 %v2206, %v2319
        %v2332 = vmul.f32 %v2211, %v2319
        %v2333 = vmul.f32 %v2216, %v2319
        %v2334 = vmul.f32 %v2221, %v2319
        %v2335 = vmul.f32 %v2226, %v2319
        %v2336 = vmul.f32 %v2231, %v2319
        %v2337 = vmul.f32 %v2236, %v2319
        %v2338 = vmul.f32 %v2241, %v2319
        %v2339 = vmul.f32 %v2246, %v2319
        %v2340 = vmul.f32 %v2251, %v2319
        %v2341 = vmul.f32 %v2256, %v2319
        %v2342 = vmul.f32 %v2261, %v2319
        %v2343 = vmul.f32 %v2266, %v2319
        %v2344 = vmul.f32 %v2271, %v2319
        %v2345 = vmul.f32 %v2276, %v2319
        %v2346 = vmul.f32 %v2281, %v2319
        %v2347 = vmul.f32 %v2286, %v2319
        %v2348 = vmul.f32 %v2291, %v2319
        %v2349 = vmul.f32 %v2296, %v2319
        %v2350 = vmul.f32 %v2301, %v2319
        %v2351 = vmul.f32 %v2306, %v2319
        %v2352 = vmul.f32 %v2311, %v2319
        %v2353 = vld [vmem:[%s3] sm:$0x1]
        %v2355 = vlaneseq
        %v2356 = vshrl.u32 %v2355, 7
        %v2357 = vsub.s32 0, %v2356
        %v2358 = vrot.slane %v2353, %v2357
        %v2360 = vadd.f32 %v2321, %v2358
        %v2361 = vadd.f32 %v2322, %v2358
        %v2362 = vadd.f32 %v2323, %v2358
        %v2363 = vadd.f32 %v2324, %v2358
        %v2364 = vadd.f32 %v2325, %v2358
        %v2365 = vadd.f32 %v2326, %v2358
        %v2366 = vadd.f32 %v2327, %v2358
        %v2367 = vadd.f32 %v2328, %v2358
        %v2368 = vadd.f32 %v2329, %v2358
        %v2369 = vadd.f32 %v2330, %v2358
        %v2370 = vadd.f32 %v2331, %v2358
        %v2371 = vadd.f32 %v2332, %v2358
        %v2372 = vadd.f32 %v2333, %v2358
        %v2373 = vadd.f32 %v2334, %v2358
        %v2374 = vadd.f32 %v2335, %v2358
        %v2375 = vadd.f32 %v2336, %v2358
        %v2376 = vadd.f32 %v2337, %v2358
        %v2377 = vadd.f32 %v2338, %v2358
        %v2378 = vadd.f32 %v2339, %v2358
        %v2379 = vadd.f32 %v2340, %v2358
        %v2380 = vadd.f32 %v2341, %v2358
        %v2381 = vadd.f32 %v2342, %v2358
        %v2382 = vadd.f32 %v2343, %v2358
        %v2383 = vadd.f32 %v2344, %v2358
        %v2384 = vadd.f32 %v2345, %v2358
        %v2385 = vadd.f32 %v2346, %v2358
        %v2386 = vadd.f32 %v2347, %v2358
        %v2387 = vadd.f32 %v2348, %v2358
        %v2388 = vadd.f32 %v2349, %v2358
        %v2389 = vadd.f32 %v2350, %v2358
        %v2390 = vadd.f32 %v2351, %v2358
        %v2391 = vadd.f32 %v2352, %v2358
        %v2392 = vmax.f32 %v2360, 0.0
        %v2393 = vmax.f32 %v2361, 0.0
        %v2394 = vmax.f32 %v2362, 0.0
        %v2395 = vmax.f32 %v2363, 0.0
        %v2396 = vmax.f32 %v2364, 0.0
        %v2397 = vmax.f32 %v2365, 0.0
        %v2398 = vmax.f32 %v2366, 0.0
        %v2399 = vmax.f32 %v2367, 0.0
        %v2400 = vmax.f32 %v2368, 0.0
        %v2401 = vmax.f32 %v2369, 0.0
        %v2402 = vmax.f32 %v2370, 0.0
        %v2403 = vmax.f32 %v2371, 0.0
        %v2404 = vmax.f32 %v2372, 0.0
        %v2405 = vmax.f32 %v2373, 0.0
        %v2406 = vmax.f32 %v2374, 0.0
        %v2407 = vmax.f32 %v2375, 0.0
        %v2408 = vmax.f32 %v2376, 0.0
        %v2409 = vmax.f32 %v2377, 0.0
        %v2410 = vmax.f32 %v2378, 0.0
        %v2411 = vmax.f32 %v2379, 0.0
        %v2412 = vmax.f32 %v2380, 0.0
        %v2413 = vmax.f32 %v2381, 0.0
        %v2414 = vmax.f32 %v2382, 0.0
        %v2415 = vmax.f32 %v2383, 0.0
        %v2416 = vmax.f32 %v2384, 0.0
        %v2417 = vmax.f32 %v2385, 0.0
        %v2418 = vmax.f32 %v2386, 0.0
        %v2419 = vmax.f32 %v2387, 0.0
        %v2420 = vmax.f32 %v2388, 0.0
        %v2421 = vmax.f32 %v2389, 0.0
        %v2422 = vmax.f32 %v2390, 0.0
        %v2423 = vmax.f32 %v2391, 0.0
        %vm2424 = vcmask 736256
        %2425 = vst.msk [vmem:[#allocation3] sm:$0xff] %vm2424, 0.0
        %2426 = vst.msk [vmem:[#allocation3 + $0x8] sm:$0xff] %vm2424, 0.0
        %vm2427 = vcmask 730112
        %2428 = vst.msk [vmem:[#allocation3 + $0x10] sm:$0x3] %vm2427, 0.0
        %2429 = vst.msk [vmem:[#allocation3 + $0x18] sm:$0xff] %vm2424, 0.0
        %2430 = vst.msk [vmem:[#allocation3 + $0x20] sm:$0xff] %vm2424, 0.0
        %2431 = vst.msk [vmem:[#allocation3 + $0x28] sm:$0x3] %vm2427, 0.0
        %2432 = vst.msk [vmem:[#allocation3 + $0x30] sm:$0xff] %vm2424, 0.0
        %2433 = vst.msk [vmem:[#allocation3 + $0x38] sm:$0xff] %vm2424, 0.0
        %2434 = vst.msk [vmem:[#allocation3 + $0x40] sm:$0x3] %vm2427, 0.0
        %2435 = vst.msk [vmem:[#allocation3 + $0x48] sm:$0xff] %vm2424, 0.0
        %2436 = vst.msk [vmem:[#allocation3 + $0x50] sm:$0xff] %vm2424, 0.0
        %2437 = vst.msk [vmem:[#allocation3 + $0x58] sm:$0x3] %vm2427, 0.0
        %2438 = vst.msk [vmem:[#allocation3 + $0x60] sm:$0xff] %vm2424, 0.0
        %2439 = vst.msk [vmem:[#allocation3 + $0x68] sm:$0xff] %vm2424, 0.0
        %2440 = vst.msk [vmem:[#allocation3 + $0x70] sm:$0x3] %vm2427, 0.0
        %2441 = vst.msk [vmem:[#allocation3 + $0x78] sm:$0xff] %vm2424, 0.0
        %2442 = vst.msk [vmem:[#allocation3 + $0x80] sm:$0xff] %vm2424, 0.0
        %2443 = vst.msk [vmem:[#allocation3 + $0x88] sm:$0x3] %vm2427, 0.0
        %2444 = vst.msk [vmem:[#allocation3 + $0x90] sm:$0xff] %vm2424, 0.0
        %2445 = vst.msk [vmem:[#allocation3 + $0x98] sm:$0xff] %vm2424, 0.0
        %2446 = vst.msk [vmem:[#allocation3 + $0xa0] sm:$0x3] %vm2427, 0.0
        %2447 = vst.msk [vmem:[#allocation3 + $0xa8] sm:$0xff] %vm2424, 0.0
        %2448 = vst.msk [vmem:[#allocation3 + $0xb0] sm:$0xff] %vm2424, 0.0
        %2449 = vst.msk [vmem:[#allocation3 + $0xb8] sm:$0x3] %vm2427, 0.0
        %2450 = vst.msk [vmem:[#allocation3 + $0xc0] sm:$0xff] %vm2424, 0.0
        %2451 = vst.msk [vmem:[#allocation3 + $0xc8] sm:$0xff] %vm2424, 0.0
        %2452 = vst.msk [vmem:[#allocation3 + $0xd0] sm:$0x3] %vm2427, 0.0
        %2453 = vst.msk [vmem:[#allocation3 + $0xd8] sm:$0xff] %vm2424, 0.0
        %2454 = vst.msk [vmem:[#allocation3 + $0xe0] sm:$0xff] %vm2424, 0.0
        %2455 = vst.msk [vmem:[#allocation3 + $0xe8] sm:$0x3] %vm2427, 0.0
        %2456 = vst.msk [vmem:[#allocation3 + $0xf0] sm:$0xff] %vm2424, 0.0
        %2457 = vst.msk [vmem:[#allocation3 + $0xf8] sm:$0xff] %vm2424, 0.0
        %2458 = vst.msk [vmem:[#allocation3 + $0x100] sm:$0x3] %vm2427, 0.0
        %2459 = vst.msk [vmem:[#allocation3 + $0x108] sm:$0xff] %vm2424, 0.0
        %2460 = vst.msk [vmem:[#allocation3 + $0x110] sm:$0xff] %vm2424, 0.0
        %2461 = vst.msk [vmem:[#allocation3 + $0x118] sm:$0x3] %vm2427, 0.0
        %2462 = vst.msk [vmem:[#allocation3 + $0x120] sm:$0xff] %vm2424, 0.0
        %2463 = vst.msk [vmem:[#allocation3 + $0x128] sm:$0xff] %vm2424, 0.0
        %2464 = vst.msk [vmem:[#allocation3 + $0x130] sm:$0x3] %vm2427, 0.0
        %2465 = vst.msk [vmem:[#allocation3 + $0x138] sm:$0xff] %vm2424, 0.0
        %2466 = vst.msk [vmem:[#allocation3 + $0x140] sm:$0xff] %vm2424, 0.0
        %2467 = vst.msk [vmem:[#allocation3 + $0x148] sm:$0x3] %vm2427, 0.0
        %2468 = vst.msk [vmem:[#allocation3 + $0x150] sm:$0xff] %vm2424, 0.0
        %2469 = vst.msk [vmem:[#allocation3 + $0x158] sm:$0xff] %vm2424, 0.0
        %2470 = vst.msk [vmem:[#allocation3 + $0x160] sm:$0x3] %vm2427, 0.0
        %2471 = vst.msk [vmem:[#allocation3 + $0x168] sm:$0xff] %vm2424, 0.0
        %2472 = vst.msk [vmem:[#allocation3 + $0x170] sm:$0xff] %vm2424, 0.0
        %2473 = vst.msk [vmem:[#allocation3 + $0x178] sm:$0x3] %vm2427, 0.0
        %2474 = vst.msk [vmem:[#allocation3 + $0x180] sm:$0xff] %vm2424, 0.0
        %2475 = vst.msk [vmem:[#allocation3 + $0x188] sm:$0xff] %vm2424, 0.0
        %2476 = vst.msk [vmem:[#allocation3 + $0x190] sm:$0x3] %vm2427, 0.0
        %2477 = vst.msk [vmem:[#allocation3 + $0x198] sm:$0xff] %vm2424, 0.0
        %2478 = vst.msk [vmem:[#allocation3 + $0x1a0] sm:$0xff] %vm2424, 0.0
        %2479 = vst.msk [vmem:[#allocation3 + $0x1a8] sm:$0x3] %vm2427, 0.0
        %s2480 = scalar_lea.vmem [#allocation3], 24
        %2481 = vst.msk [vmem:[%s2480 + $0x1] sm:$0xff] %vm2424, %v2392
        %2482 = vst.msk [vmem:[%s2480 + $0x9] sm:$0xff] %vm2424, %v2393
        %2483 = vst.msk [vmem:[%s2480 + $0x19] sm:$0xff] %vm2424, %v2394
        %2484 = vst.msk [vmem:[%s2480 + $0x21] sm:$0xff] %vm2424, %v2395
        %2485 = vst.msk [vmem:[%s2480 + $0x31] sm:$0xff] %vm2424, %v2396
        %2486 = vst.msk [vmem:[%s2480 + $0x39] sm:$0xff] %vm2424, %v2397
        %2487 = vst.msk [vmem:[%s2480 + $0x49] sm:$0xff] %vm2424, %v2398
        %2488 = vst.msk [vmem:[%s2480 + $0x51] sm:$0xff] %vm2424, %v2399
        %2489 = vst.msk [vmem:[%s2480 + $0x61] sm:$0xff] %vm2424, %v2400
        %2490 = vst.msk [vmem:[%s2480 + $0x69] sm:$0xff] %vm2424, %v2401
        %2491 = vst.msk [vmem:[%s2480 + $0x79] sm:$0xff] %vm2424, %v2402
        %2492 = vst.msk [vmem:[%s2480 + $0x81] sm:$0xff] %vm2424, %v2403
        %2493 = vst.msk [vmem:[%s2480 + $0x91] sm:$0xff] %vm2424, %v2404
        %2494 = vst.msk [vmem:[%s2480 + $0x99] sm:$0xff] %vm2424, %v2405
        %2495 = vst.msk [vmem:[%s2480 + $0xa9] sm:$0xff] %vm2424, %v2406
        %2496 = vst.msk [vmem:[%s2480 + $0xb1] sm:$0xff] %vm2424, %v2407
        %2497 = vst.msk [vmem:[%s2480 + $0xc1] sm:$0xff] %vm2424, %v2408
        %2498 = vst.msk [vmem:[%s2480 + $0xc9] sm:$0xff] %vm2424, %v2409
        %2499 = vst.msk [vmem:[%s2480 + $0xd9] sm:$0xff] %vm2424, %v2410
        %2500 = vst.msk [vmem:[%s2480 + $0xe1] sm:$0xff] %vm2424, %v2411
        %2501 = vst.msk [vmem:[%s2480 + $0xf1] sm:$0xff] %vm2424, %v2412
        %2502 = vst.msk [vmem:[%s2480 + $0xf9] sm:$0xff] %vm2424, %v2413
        %2503 = vst.msk [vmem:[%s2480 + $0x109] sm:$0xff] %vm2424, %v2414
        %2504 = vst.msk [vmem:[%s2480 + $0x111] sm:$0xff] %vm2424, %v2415
        %2505 = vst.msk [vmem:[%s2480 + $0x121] sm:$0xff] %vm2424, %v2416
        %2506 = vst.msk [vmem:[%s2480 + $0x129] sm:$0xff] %vm2424, %v2417
        %2507 = vst.msk [vmem:[%s2480 + $0x139] sm:$0xff] %vm2424, %v2418
        %2508 = vst.msk [vmem:[%s2480 + $0x141] sm:$0xff] %vm2424, %v2419
        %2509 = vst.msk [vmem:[%s2480 + $0x151] sm:$0xff] %vm2424, %v2420
        %2510 = vst.msk [vmem:[%s2480 + $0x159] sm:$0xff] %vm2424, %v2421
        %2511 = vst.msk [vmem:[%s2480 + $0x169] sm:$0xff] %vm2424, %v2422
        %2512 = vst.msk [vmem:[%s2480 + $0x171] sm:$0xff] %vm2424, %v2423
        %v2513 = vld [vmem:[#allocation3] sm:$0xff]
        %v2514 = vld [vmem:[#allocation3 + $0x8] sm:$0xff]
        %v2515 = vld [vmem:[#allocation3 + $0x18] sm:$0xff]
        %v2516 = vld [vmem:[#allocation3 + $0x20] sm:$0xff]
        %v2517 = vld [vmem:[#allocation3 + $0x30] sm:$0xff]
        %v2518 = vld [vmem:[#allocation3 + $0x38] sm:$0xff]
        %v2519 = vld [vmem:[#allocation3 + $0x48] sm:$0xff]
        %v2520 = vld [vmem:[#allocation3 + $0x50] sm:$0xff]
        %v2521 = vld [vmem:[#allocation3 + $0x60] sm:$0xff]
        %v2522 = vld [vmem:[#allocation3 + $0x68] sm:$0xff]
        %v2523 = vld [vmem:[#allocation3 + $0x78] sm:$0xff]
        %v2524 = vld [vmem:[#allocation3 + $0x80] sm:$0xff]
        %v2525 = vld [vmem:[#allocation3 + $0x90] sm:$0xff]
        %v2526 = vld [vmem:[#allocation3 + $0x98] sm:$0xff]
        %v2527 = vld [vmem:[#allocation3 + $0xa8] sm:$0xff]
        %v2528 = vld [vmem:[#allocation3 + $0xb0] sm:$0xff]
        %v2529 = vld [vmem:[#allocation3 + $0xc0] sm:$0xff]
        %v2530 = vld [vmem:[#allocation3 + $0xc8] sm:$0xff]
        %v2531 = vld [vmem:[#allocation3 + $0xd8] sm:$0xff]
        %v2532 = vld [vmem:[#allocation3 + $0xe0] sm:$0xff]
        %v2533 = vld [vmem:[#allocation3 + $0xf0] sm:$0xff]
        %v2534 = vld [vmem:[#allocation3 + $0xf8] sm:$0xff]
        %v2535 = vld [vmem:[#allocation3 + $0x108] sm:$0xff]
        %v2536 = vld [vmem:[#allocation3 + $0x110] sm:$0xff]
        %v2537 = vld [vmem:[#allocation3 + $0x120] sm:$0xff]
        %v2538 = vld [vmem:[#allocation3 + $0x128] sm:$0xff]
        %v2539 = vld [vmem:[#allocation3 + $0x138] sm:$0xff]
        %v2540 = vld [vmem:[#allocation3 + $0x140] sm:$0xff]
        %v2541 = vld [vmem:[#allocation3 + $0x150] sm:$0xff]
        %v2542 = vld [vmem:[#allocation3 + $0x158] sm:$0xff]
        %v2543 = vld [vmem:[#allocation3 + $0x168] sm:$0xff]
        %v2544 = vld [vmem:[#allocation3 + $0x170] sm:$0xff]
        %v2545 = vld [vmem:[#allocation3 + $0x1] sm:$0xff]
        %v2546 = vld [vmem:[#allocation3 + $0x9] sm:$0xff]
        %v2547 = vld [vmem:[#allocation3 + $0x19] sm:$0xff]
        %v2548 = vld [vmem:[#allocation3 + $0x21] sm:$0xff]
        %v2549 = vld [vmem:[#allocation3 + $0x31] sm:$0xff]
        %v2550 = vld [vmem:[#allocation3 + $0x39] sm:$0xff]
        %v2551 = vld [vmem:[#allocation3 + $0x49] sm:$0xff]
        %v2552 = vld [vmem:[#allocation3 + $0x51] sm:$0xff]
        %v2553 = vld [vmem:[#allocation3 + $0x61] sm:$0xff]
        %v2554 = vld [vmem:[#allocation3 + $0x69] sm:$0xff]
        %v2555 = vld [vmem:[#allocation3 + $0x79] sm:$0xff]
        %v2556 = vld [vmem:[#allocation3 + $0x81] sm:$0xff]
        %v2557 = vld [vmem:[#allocation3 + $0x91] sm:$0xff]
        %v2558 = vld [vmem:[#allocation3 + $0x99] sm:$0xff]
        %v2559 = vld [vmem:[#allocation3 + $0xa9] sm:$0xff]
        %v2560 = vld [vmem:[#allocation3 + $0xb1] sm:$0xff]
        %v2561 = vld [vmem:[#allocation3 + $0xc1] sm:$0xff]
        %v2562 = vld [vmem:[#allocation3 + $0xc9] sm:$0xff]
        %v2563 = vld [vmem:[#allocation3 + $0xd9] sm:$0xff]
        %v2564 = vld [vmem:[#allocation3 + $0xe1] sm:$0xff]
        %v2565 = vld [vmem:[#allocation3 + $0xf1] sm:$0xff]
        %v2566 = vld [vmem:[#allocation3 + $0xf9] sm:$0xff]
        %v2567 = vld [vmem:[#allocation3 + $0x109] sm:$0xff]
        %v2568 = vld [vmem:[#allocation3 + $0x111] sm:$0xff]
        %v2569 = vld [vmem:[#allocation3 + $0x121] sm:$0xff]
        %v2570 = vld [vmem:[#allocation3 + $0x129] sm:$0xff]
        %v2571 = vld [vmem:[#allocation3 + $0x139] sm:$0xff]
        %v2572 = vld [vmem:[#allocation3 + $0x141] sm:$0xff]
        %v2573 = vld [vmem:[#allocation3 + $0x151] sm:$0xff]
        %v2574 = vld [vmem:[#allocation3 + $0x159] sm:$0xff]
        %v2575 = vld [vmem:[#allocation3 + $0x169] sm:$0xff]
        %v2576 = vld [vmem:[#allocation3 + $0x171] sm:$0xff]
        %v2577 = vld [vmem:[#allocation3 + $0x2] sm:$0xff]
        %v2578 = vld [vmem:[#allocation3 + $0xa] sm:$0xff]
        %v2579 = vld [vmem:[#allocation3 + $0x1a] sm:$0xff]
        %v2580 = vld [vmem:[#allocation3 + $0x22] sm:$0xff]
        %v2581 = vld [vmem:[#allocation3 + $0x32] sm:$0xff]
        %v2582 = vld [vmem:[#allocation3 + $0x3a] sm:$0xff]
        %v2583 = vld [vmem:[#allocation3 + $0x4a] sm:$0xff]
        %v2584 = vld [vmem:[#allocation3 + $0x52] sm:$0xff]
        %v2585 = vld [vmem:[#allocation3 + $0x62] sm:$0xff]
        %v2586 = vld [vmem:[#allocation3 + $0x6a] sm:$0xff]
        %v2587 = vld [vmem:[#allocation3 + $0x7a] sm:$0xff]
        %v2588 = vld [vmem:[#allocation3 + $0x82] sm:$0xff]
        %v2589 = vld [vmem:[#allocation3 + $0x92] sm:$0xff]
        %v2590 = vld [vmem:[#allocation3 + $0x9a] sm:$0xff]
        %v2591 = vld [vmem:[#allocation3 + $0xaa] sm:$0xff]
        %v2592 = vld [vmem:[#allocation3 + $0xb2] sm:$0xff]
        %v2593 = vld [vmem:[#allocation3 + $0xc2] sm:$0xff]
        %v2594 = vld [vmem:[#allocation3 + $0xca] sm:$0xff]
        %v2595 = vld [vmem:[#allocation3 + $0xda] sm:$0xff]
        %v2596 = vld [vmem:[#allocation3 + $0xe2] sm:$0xff]
        %v2597 = vld [vmem:[#allocation3 + $0xf2] sm:$0xff]
        %v2598 = vld [vmem:[#allocation3 + $0xfa] sm:$0xff]
        %v2599 = vld [vmem:[#allocation3 + $0x10a] sm:$0xff]
        %v2600 = vld [vmem:[#allocation3 + $0x112] sm:$0xff]
        %v2601 = vld [vmem:[#allocation3 + $0x122] sm:$0xff]
        %v2602 = vld [vmem:[#allocation3 + $0x12a] sm:$0xff]
        %v2603 = vld [vmem:[#allocation3 + $0x13a] sm:$0xff]
        %v2604 = vld [vmem:[#allocation3 + $0x142] sm:$0xff]
        %v2605 = vld [vmem:[#allocation3 + $0x152] sm:$0xff]
        %v2606 = vld [vmem:[#allocation3 + $0x15a] sm:$0xff]
        %v2607 = vld [vmem:[#allocation3 + $0x16a] sm:$0xff]
        %v2608 = vld [vmem:[#allocation3 + $0x172] sm:$0xff]
        %v2609 = vld [vmem:[%s2480] sm:$0xff]
        %v2610 = vld [vmem:[%s2480 + $0x8] sm:$0xff]
        %v2611 = vld [vmem:[%s2480 + $0x18] sm:$0xff]
        %v2612 = vld [vmem:[%s2480 + $0x20] sm:$0xff]
        %v2613 = vld [vmem:[%s2480 + $0x30] sm:$0xff]
        %v2614 = vld [vmem:[%s2480 + $0x38] sm:$0xff]
        %v2615 = vld [vmem:[%s2480 + $0x48] sm:$0xff]
        %v2616 = vld [vmem:[%s2480 + $0x50] sm:$0xff]
        %v2617 = vld [vmem:[%s2480 + $0x60] sm:$0xff]
        %v2618 = vld [vmem:[%s2480 + $0x68] sm:$0xff]
        %v2619 = vld [vmem:[%s2480 + $0x78] sm:$0xff]
        %v2620 = vld [vmem:[%s2480 + $0x80] sm:$0xff]
        %v2621 = vld [vmem:[%s2480 + $0x90] sm:$0xff]
        %v2622 = vld [vmem:[%s2480 + $0x98] sm:$0xff]
        %v2623 = vld [vmem:[%s2480 + $0xa8] sm:$0xff]
        %v2624 = vld [vmem:[%s2480 + $0xb0] sm:$0xff]
        %v2625 = vld [vmem:[%s2480 + $0xc0] sm:$0xff]
        %v2626 = vld [vmem:[%s2480 + $0xc8] sm:$0xff]
        %v2627 = vld [vmem:[%s2480 + $0xd8] sm:$0xff]
        %v2628 = vld [vmem:[%s2480 + $0xe0] sm:$0xff]
        %v2629 = vld [vmem:[%s2480 + $0xf0] sm:$0xff]
        %v2630 = vld [vmem:[%s2480 + $0xf8] sm:$0xff]
        %v2631 = vld [vmem:[%s2480 + $0x108] sm:$0xff]
        %v2632 = vld [vmem:[%s2480 + $0x110] sm:$0xff]
        %v2633 = vld [vmem:[%s2480 + $0x120] sm:$0xff]
        %v2634 = vld [vmem:[%s2480 + $0x128] sm:$0xff]
        %v2635 = vld [vmem:[%s2480 + $0x138] sm:$0xff]
        %v2636 = vld [vmem:[%s2480 + $0x140] sm:$0xff]
        %v2637 = vld [vmem:[%s2480 + $0x150] sm:$0xff]
        %v2638 = vld [vmem:[%s2480 + $0x158] sm:$0xff]
        %v2639 = vld [vmem:[%s2480 + $0x168] sm:$0xff]
        %v2640 = vld [vmem:[%s2480 + $0x170] sm:$0xff]
        %v2641 = vld [vmem:[%s2480 + $0x1] sm:$0xff]
        %v2642 = vld [vmem:[%s2480 + $0x9] sm:$0xff]
        %v2643 = vld [vmem:[%s2480 + $0x19] sm:$0xff]
        %v2644 = vld [vmem:[%s2480 + $0x21] sm:$0xff]
        %v2645 = vld [vmem:[%s2480 + $0x31] sm:$0xff]
        %v2646 = vld [vmem:[%s2480 + $0x39] sm:$0xff]
        %v2647 = vld [vmem:[%s2480 + $0x49] sm:$0xff]
        %v2648 = vld [vmem:[%s2480 + $0x51] sm:$0xff]
        %v2649 = vld [vmem:[%s2480 + $0x61] sm:$0xff]
        %v2650 = vld [vmem:[%s2480 + $0x69] sm:$0xff]
        %v2651 = vld [vmem:[%s2480 + $0x79] sm:$0xff]
        %v2652 = vld [vmem:[%s2480 + $0x81] sm:$0xff]
        %v2653 = vld [vmem:[%s2480 + $0x91] sm:$0xff]
        %v2654 = vld [vmem:[%s2480 + $0x99] sm:$0xff]
        %v2655 = vld [vmem:[%s2480 + $0xa9] sm:$0xff]
        %v2656 = vld [vmem:[%s2480 + $0xb1] sm:$0xff]
        %v2657 = vld [vmem:[%s2480 + $0xc1] sm:$0xff]
        %v2658 = vld [vmem:[%s2480 + $0xc9] sm:$0xff]
        %v2659 = vld [vmem:[%s2480 + $0xd9] sm:$0xff]
        %v2660 = vld [vmem:[%s2480 + $0xe1] sm:$0xff]
        %v2661 = vld [vmem:[%s2480 + $0xf1] sm:$0xff]
        %v2662 = vld [vmem:[%s2480 + $0xf9] sm:$0xff]
        %v2663 = vld [vmem:[%s2480 + $0x109] sm:$0xff]
        %v2664 = vld [vmem:[%s2480 + $0x111] sm:$0xff]
        %v2665 = vld [vmem:[%s2480 + $0x121] sm:$0xff]
        %v2666 = vld [vmem:[%s2480 + $0x129] sm:$0xff]
        %v2667 = vld [vmem:[%s2480 + $0x139] sm:$0xff]
        %v2668 = vld [vmem:[%s2480 + $0x141] sm:$0xff]
        %v2669 = vld [vmem:[%s2480 + $0x151] sm:$0xff]
        %v2670 = vld [vmem:[%s2480 + $0x159] sm:$0xff]
        %v2671 = vld [vmem:[%s2480 + $0x169] sm:$0xff]
        %v2672 = vld [vmem:[%s2480 + $0x171] sm:$0xff]
        %v2673 = vld [vmem:[%s2480 + $0x2] sm:$0xff]
        %v2674 = vld [vmem:[%s2480 + $0xa] sm:$0xff]
        %v2675 = vld [vmem:[%s2480 + $0x1a] sm:$0xff]
        %v2676 = vld [vmem:[%s2480 + $0x22] sm:$0xff]
        %v2677 = vld [vmem:[%s2480 + $0x32] sm:$0xff]
        %v2678 = vld [vmem:[%s2480 + $0x3a] sm:$0xff]
        %v2679 = vld [vmem:[%s2480 + $0x4a] sm:$0xff]
        %v2680 = vld [vmem:[%s2480 + $0x52] sm:$0xff]
        %v2681 = vld [vmem:[%s2480 + $0x62] sm:$0xff]
        %v2682 = vld [vmem:[%s2480 + $0x6a] sm:$0xff]
        %v2683 = vld [vmem:[%s2480 + $0x7a] sm:$0xff]
        %v2684 = vld [vmem:[%s2480 + $0x82] sm:$0xff]
        %v2685 = vld [vmem:[%s2480 + $0x92] sm:$0xff]
        %v2686 = vld [vmem:[%s2480 + $0x9a] sm:$0xff]
        %v2687 = vld [vmem:[%s2480 + $0xaa] sm:$0xff]
        %v2688 = vld [vmem:[%s2480 + $0xb2] sm:$0xff]
        %v2689 = vld [vmem:[%s2480 + $0xc2] sm:$0xff]
        %v2690 = vld [vmem:[%s2480 + $0xca] sm:$0xff]
        %v2691 = vld [vmem:[%s2480 + $0xda] sm:$0xff]
        %v2692 = vld [vmem:[%s2480 + $0xe2] sm:$0xff]
        %v2693 = vld [vmem:[%s2480 + $0xf2] sm:$0xff]
        %v2694 = vld [vmem:[%s2480 + $0xfa] sm:$0xff]
        %v2695 = vld [vmem:[%s2480 + $0x10a] sm:$0xff]
        %v2696 = vld [vmem:[%s2480 + $0x112] sm:$0xff]
        %v2697 = vld [vmem:[%s2480 + $0x122] sm:$0xff]
        %v2698 = vld [vmem:[%s2480 + $0x12a] sm:$0xff]
        %v2699 = vld [vmem:[%s2480 + $0x13a] sm:$0xff]
        %v2700 = vld [vmem:[%s2480 + $0x142] sm:$0xff]
        %v2701 = vld [vmem:[%s2480 + $0x152] sm:$0xff]
        %v2702 = vld [vmem:[%s2480 + $0x15a] sm:$0xff]
        %v2703 = vld [vmem:[%s2480 + $0x16a] sm:$0xff]
        %v2704 = vld [vmem:[%s2480 + $0x172] sm:$0xff]
        %s2705 = scalar_lea.vmem [#allocation3], 48
        %v2706 = vld [vmem:[%s2705] sm:$0xff]
        %v2707 = vld [vmem:[%s2705 + $0x8] sm:$0xff]
        %v2708 = vld [vmem:[%s2705 + $0x18] sm:$0xff]
        %v2709 = vld [vmem:[%s2705 + $0x20] sm:$0xff]
        %v2710 = vld [vmem:[%s2705 + $0x30] sm:$0xff]
        %v2711 = vld [vmem:[%s2705 + $0x38] sm:$0xff]
        %v2712 = vld [vmem:[%s2705 + $0x48] sm:$0xff]
        %v2713 = vld [vmem:[%s2705 + $0x50] sm:$0xff]
        %v2714 = vld [vmem:[%s2705 + $0x60] sm:$0xff]
        %v2715 = vld [vmem:[%s2705 + $0x68] sm:$0xff]
        %v2716 = vld [vmem:[%s2705 + $0x78] sm:$0xff]
        %v2717 = vld [vmem:[%s2705 + $0x80] sm:$0xff]
        %v2718 = vld [vmem:[%s2705 + $0x90] sm:$0xff]
        %v2719 = vld [vmem:[%s2705 + $0x98] sm:$0xff]
        %v2720 = vld [vmem:[%s2705 + $0xa8] sm:$0xff]
        %v2721 = vld [vmem:[%s2705 + $0xb0] sm:$0xff]
        %v2722 = vld [vmem:[%s2705 + $0xc0] sm:$0xff]
        %v2723 = vld [vmem:[%s2705 + $0xc8] sm:$0xff]
        %v2724 = vld [vmem:[%s2705 + $0xd8] sm:$0xff]
        %v2725 = vld [vmem:[%s2705 + $0xe0] sm:$0xff]
        %v2726 = vld [vmem:[%s2705 + $0xf0] sm:$0xff]
        %v2727 = vld [vmem:[%s2705 + $0xf8] sm:$0xff]
        %v2728 = vld [vmem:[%s2705 + $0x108] sm:$0xff]
        %v2729 = vld [vmem:[%s2705 + $0x110] sm:$0xff]
        %v2730 = vld [vmem:[%s2705 + $0x120] sm:$0xff]
        %v2731 = vld [vmem:[%s2705 + $0x128] sm:$0xff]
        %v2732 = vld [vmem:[%s2705 + $0x138] sm:$0xff]
        %v2733 = vld [vmem:[%s2705 + $0x140] sm:$0xff]
        %v2734 = vld [vmem:[%s2705 + $0x150] sm:$0xff]
        %v2735 = vld [vmem:[%s2705 + $0x158] sm:$0xff]
        %v2736 = vld [vmem:[%s2705 + $0x168] sm:$0xff]
        %v2737 = vld [vmem:[%s2705 + $0x170] sm:$0xff]
        %v2738 = vld [vmem:[%s2705 + $0x1] sm:$0xff]
        %v2739 = vld [vmem:[%s2705 + $0x9] sm:$0xff]
        %v2740 = vld [vmem:[%s2705 + $0x19] sm:$0xff]
        %v2741 = vld [vmem:[%s2705 + $0x21] sm:$0xff]
        %v2742 = vld [vmem:[%s2705 + $0x31] sm:$0xff]
        %v2743 = vld [vmem:[%s2705 + $0x39] sm:$0xff]
        %v2744 = vld [vmem:[%s2705 + $0x49] sm:$0xff]
        %v2745 = vld [vmem:[%s2705 + $0x51] sm:$0xff]
        %v2746 = vld [vmem:[%s2705 + $0x61] sm:$0xff]
        %v2747 = vld [vmem:[%s2705 + $0x69] sm:$0xff]
        %v2748 = vld [vmem:[%s2705 + $0x79] sm:$0xff]
        %v2749 = vld [vmem:[%s2705 + $0x81] sm:$0xff]
        %v2750 = vld [vmem:[%s2705 + $0x91] sm:$0xff]
        %v2751 = vld [vmem:[%s2705 + $0x99] sm:$0xff]
        %v2752 = vld [vmem:[%s2705 + $0xa9] sm:$0xff]
        %v2753 = vld [vmem:[%s2705 + $0xb1] sm:$0xff]
        %v2754 = vld [vmem:[%s2705 + $0xc1] sm:$0xff]
        %v2755 = vld [vmem:[%s2705 + $0xc9] sm:$0xff]
        %v2756 = vld [vmem:[%s2705 + $0xd9] sm:$0xff]
        %v2757 = vld [vmem:[%s2705 + $0xe1] sm:$0xff]
        %v2758 = vld [vmem:[%s2705 + $0xf1] sm:$0xff]
        %v2759 = vld [vmem:[%s2705 + $0xf9] sm:$0xff]
        %v2760 = vld [vmem:[%s2705 + $0x109] sm:$0xff]
        %v2761 = vld [vmem:[%s2705 + $0x111] sm:$0xff]
        %v2762 = vld [vmem:[%s2705 + $0x121] sm:$0xff]
        %v2763 = vld [vmem:[%s2705 + $0x129] sm:$0xff]
        %v2764 = vld [vmem:[%s2705 + $0x139] sm:$0xff]
        %v2765 = vld [vmem:[%s2705 + $0x141] sm:$0xff]
        %v2766 = vld [vmem:[%s2705 + $0x151] sm:$0xff]
        %v2767 = vld [vmem:[%s2705 + $0x159] sm:$0xff]
        %v2768 = vld [vmem:[%s2705 + $0x169] sm:$0xff]
        %v2769 = vld [vmem:[%s2705 + $0x171] sm:$0xff]
        %v2770 = vld [vmem:[%s2705 + $0x2] sm:$0xff]
        %v2771 = vld [vmem:[%s2705 + $0xa] sm:$0xff]
        %v2772 = vld [vmem:[%s2705 + $0x1a] sm:$0xff]
        %v2773 = vld [vmem:[%s2705 + $0x22] sm:$0xff]
        %v2774 = vld [vmem:[%s2705 + $0x32] sm:$0xff]
        %v2775 = vld [vmem:[%s2705 + $0x3a] sm:$0xff]
        %v2776 = vld [vmem:[%s2705 + $0x4a] sm:$0xff]
        %v2777 = vld [vmem:[%s2705 + $0x52] sm:$0xff]
        %v2778 = vld [vmem:[%s2705 + $0x62] sm:$0xff]
        %v2779 = vld [vmem:[%s2705 + $0x6a] sm:$0xff]
        %v2780 = vld [vmem:[%s2705 + $0x7a] sm:$0xff]
        %v2781 = vld [vmem:[%s2705 + $0x82] sm:$0xff]
        %v2782 = vld [vmem:[%s2705 + $0x92] sm:$0xff]
        %v2783 = vld [vmem:[%s2705 + $0x9a] sm:$0xff]
        %v2784 = vld [vmem:[%s2705 + $0xaa] sm:$0xff]
        %v2785 = vld [vmem:[%s2705 + $0xb2] sm:$0xff]
        %v2786 = vld [vmem:[%s2705 + $0xc2] sm:$0xff]
        %v2787 = vld [vmem:[%s2705 + $0xca] sm:$0xff]
        %v2788 = vld [vmem:[%s2705 + $0xda] sm:$0xff]
        %v2789 = vld [vmem:[%s2705 + $0xe2] sm:$0xff]
        %v2790 = vld [vmem:[%s2705 + $0xf2] sm:$0xff]
        %v2791 = vld [vmem:[%s2705 + $0xfa] sm:$0xff]
        %v2792 = vld [vmem:[%s2705 + $0x10a] sm:$0xff]
        %v2793 = vld [vmem:[%s2705 + $0x112] sm:$0xff]
        %v2794 = vld [vmem:[%s2705 + $0x122] sm:$0xff]
        %v2795 = vld [vmem:[%s2705 + $0x12a] sm:$0xff]
        %v2796 = vld [vmem:[%s2705 + $0x13a] sm:$0xff]
        %v2797 = vld [vmem:[%s2705 + $0x142] sm:$0xff]
        %v2798 = vld [vmem:[%s2705 + $0x152] sm:$0xff]
        %v2799 = vld [vmem:[%s2705 + $0x15a] sm:$0xff]
        %v2800 = vld [vmem:[%s2705 + $0x16a] sm:$0xff]
        %v2801 = vld [vmem:[%s2705 + $0x172] sm:$0xff]
        %2834 = vrot.lane.b32.xlu0 %v2545, 90
        %v2835 = vpop.permute.xlu0 %2834
        %2836 = vrot.lane.b32.xlu0 %v2546, 90
        %v2837 = vpop.permute.xlu0 %2836
        %2838 = vrot.lane.b32.xlu0 %v2547, 90
        %v2839 = vpop.permute.xlu0 %2838
        %2840 = vrot.lane.b32.xlu0 %v2548, 90
        %v2841 = vpop.permute.xlu0 %2840
        %2842 = vrot.lane.b32.xlu0 %v2549, 90
        %v2843 = vpop.permute.xlu0 %2842
        %2844 = vrot.lane.b32.xlu0 %v2550, 90
        %v2845 = vpop.permute.xlu0 %2844
        %2846 = vrot.lane.b32.xlu0 %v2551, 90
        %v2847 = vpop.permute.xlu0 %2846
        %2848 = vrot.lane.b32.xlu0 %v2552, 90
        %v2849 = vpop.permute.xlu0 %2848
        %2850 = vrot.lane.b32.xlu0 %v2553, 90
        %v2851 = vpop.permute.xlu0 %2850
        %2852 = vrot.lane.b32.xlu0 %v2554, 90
        %v2853 = vpop.permute.xlu0 %2852
        %2854 = vrot.lane.b32.xlu0 %v2555, 90
        %v2855 = vpop.permute.xlu0 %2854
        %2856 = vrot.lane.b32.xlu0 %v2556, 90
        %v2857 = vpop.permute.xlu0 %2856
        %2858 = vrot.lane.b32.xlu0 %v2557, 90
        %v2859 = vpop.permute.xlu0 %2858
        %2860 = vrot.lane.b32.xlu0 %v2558, 90
        %v2861 = vpop.permute.xlu0 %2860
        %2862 = vrot.lane.b32.xlu0 %v2559, 90
        %v2863 = vpop.permute.xlu0 %2862
        %2864 = vrot.lane.b32.xlu0 %v2560, 90
        %v2865 = vpop.permute.xlu0 %2864
        %2866 = vrot.lane.b32.xlu0 %v2561, 90
        %v2867 = vpop.permute.xlu0 %2866
        %2868 = vrot.lane.b32.xlu0 %v2562, 90
        %v2869 = vpop.permute.xlu0 %2868
        %2870 = vrot.lane.b32.xlu0 %v2563, 90
        %v2871 = vpop.permute.xlu0 %2870
        %2872 = vrot.lane.b32.xlu0 %v2564, 90
        %v2873 = vpop.permute.xlu0 %2872
        %2874 = vrot.lane.b32.xlu0 %v2565, 90
        %v2875 = vpop.permute.xlu0 %2874
        %2876 = vrot.lane.b32.xlu0 %v2566, 90
        %v2877 = vpop.permute.xlu0 %2876
        %2878 = vrot.lane.b32.xlu0 %v2567, 90
        %v2879 = vpop.permute.xlu0 %2878
        %2880 = vrot.lane.b32.xlu0 %v2568, 90
        %v2881 = vpop.permute.xlu0 %2880
        %2882 = vrot.lane.b32.xlu0 %v2569, 90
        %v2883 = vpop.permute.xlu0 %2882
        %2884 = vrot.lane.b32.xlu0 %v2570, 90
        %v2885 = vpop.permute.xlu0 %2884
        %2886 = vrot.lane.b32.xlu0 %v2571, 90
        %v2887 = vpop.permute.xlu0 %2886
        %2888 = vrot.lane.b32.xlu0 %v2572, 90
        %v2889 = vpop.permute.xlu0 %2888
        %2890 = vrot.lane.b32.xlu0 %v2573, 90
        %v2891 = vpop.permute.xlu0 %2890
        %2892 = vrot.lane.b32.xlu0 %v2574, 90
        %v2893 = vpop.permute.xlu0 %2892
        %2894 = vrot.lane.b32.xlu0 %v2575, 90
        %v2895 = vpop.permute.xlu0 %2894
        %2896 = vrot.lane.b32.xlu0 %v2576, 90
        %v2897 = vpop.permute.xlu0 %2896
        %2962 = vrot.lane.b32.xlu0 %v2577, 52
        %v2963 = vpop.permute.xlu0 %2962
        %2964 = vrot.lane.b32.xlu0 %v2578, 52
        %v2965 = vpop.permute.xlu0 %2964
        %2966 = vrot.lane.b32.xlu0 %v2579, 52
        %v2967 = vpop.permute.xlu0 %2966
        %2968 = vrot.lane.b32.xlu0 %v2580, 52
        %v2969 = vpop.permute.xlu0 %2968
        %2970 = vrot.lane.b32.xlu0 %v2581, 52
        %v2971 = vpop.permute.xlu0 %2970
        %2972 = vrot.lane.b32.xlu0 %v2582, 52
        %v2973 = vpop.permute.xlu0 %2972
        %2974 = vrot.lane.b32.xlu0 %v2583, 52
        %v2975 = vpop.permute.xlu0 %2974
        %2976 = vrot.lane.b32.xlu0 %v2584, 52
        %v2977 = vpop.permute.xlu0 %2976
        %2978 = vrot.lane.b32.xlu0 %v2585, 52
        %v2979 = vpop.permute.xlu0 %2978
        %2980 = vrot.lane.b32.xlu0 %v2586, 52
        %v2981 = vpop.permute.xlu0 %2980
        %2982 = vrot.lane.b32.xlu0 %v2587, 52
        %v2983 = vpop.permute.xlu0 %2982
        %2984 = vrot.lane.b32.xlu0 %v2588, 52
        %v2985 = vpop.permute.xlu0 %2984
        %2986 = vrot.lane.b32.xlu0 %v2589, 52
        %v2987 = vpop.permute.xlu0 %2986
        %2988 = vrot.lane.b32.xlu0 %v2590, 52
        %v2989 = vpop.permute.xlu0 %2988
        %2990 = vrot.lane.b32.xlu0 %v2591, 52
        %v2991 = vpop.permute.xlu0 %2990
        %2992 = vrot.lane.b32.xlu0 %v2592, 52
        %v2993 = vpop.permute.xlu0 %2992
        %2994 = vrot.lane.b32.xlu0 %v2593, 52
        %v2995 = vpop.permute.xlu0 %2994
        %2996 = vrot.lane.b32.xlu0 %v2594, 52
        %v2997 = vpop.permute.xlu0 %2996
        %2998 = vrot.lane.b32.xlu0 %v2595, 52
        %v2999 = vpop.permute.xlu0 %2998
        %3000 = vrot.lane.b32.xlu0 %v2596, 52
        %v3001 = vpop.permute.xlu0 %3000
        %3002 = vrot.lane.b32.xlu0 %v2597, 52
        %v3003 = vpop.permute.xlu0 %3002
        %3004 = vrot.lane.b32.xlu0 %v2598, 52
        %v3005 = vpop.permute.xlu0 %3004
        %3006 = vrot.lane.b32.xlu0 %v2599, 52
        %v3007 = vpop.permute.xlu0 %3006
        %3008 = vrot.lane.b32.xlu0 %v2600, 52
        %v3009 = vpop.permute.xlu0 %3008
        %3010 = vrot.lane.b32.xlu0 %v2601, 52
        %v3011 = vpop.permute.xlu0 %3010
        %3012 = vrot.lane.b32.xlu0 %v2602, 52
        %v3013 = vpop.permute.xlu0 %3012
        %3014 = vrot.lane.b32.xlu0 %v2603, 52
        %v3015 = vpop.permute.xlu0 %3014
        %3016 = vrot.lane.b32.xlu0 %v2604, 52
        %v3017 = vpop.permute.xlu0 %3016
        %3018 = vrot.lane.b32.xlu0 %v2605, 52
        %v3019 = vpop.permute.xlu0 %3018
        %3020 = vrot.lane.b32.xlu0 %v2606, 52
        %v3021 = vpop.permute.xlu0 %3020
        %3022 = vrot.lane.b32.xlu0 %v2607, 52
        %v3023 = vpop.permute.xlu0 %3022
        %3024 = vrot.lane.b32.xlu0 %v2608, 52
        %v3025 = vpop.permute.xlu0 %3024
        %3090 = vrot.lane.b32.xlu0 %v2609, 14
        %v3091 = vpop.permute.xlu0 %3090
        %3092 = vrot.lane.b32.xlu0 %v2610, 14
        %v3093 = vpop.permute.xlu0 %3092
        %3094 = vrot.lane.b32.xlu0 %v2611, 14
        %v3095 = vpop.permute.xlu0 %3094
        %3096 = vrot.lane.b32.xlu0 %v2612, 14
        %v3097 = vpop.permute.xlu0 %3096
        %3098 = vrot.lane.b32.xlu0 %v2613, 14
        %v3099 = vpop.permute.xlu0 %3098
        %3100 = vrot.lane.b32.xlu0 %v2614, 14
        %v3101 = vpop.permute.xlu0 %3100
        %3102 = vrot.lane.b32.xlu0 %v2615, 14
        %v3103 = vpop.permute.xlu0 %3102
        %3104 = vrot.lane.b32.xlu0 %v2616, 14
        %v3105 = vpop.permute.xlu0 %3104
        %3106 = vrot.lane.b32.xlu0 %v2617, 14
        %v3107 = vpop.permute.xlu0 %3106
        %3108 = vrot.lane.b32.xlu0 %v2618, 14
        %v3109 = vpop.permute.xlu0 %3108
        %3110 = vrot.lane.b32.xlu0 %v2619, 14
        %v3111 = vpop.permute.xlu0 %3110
        %3112 = vrot.lane.b32.xlu0 %v2620, 14
        %v3113 = vpop.permute.xlu0 %3112
        %3114 = vrot.lane.b32.xlu0 %v2621, 14
        %v3115 = vpop.permute.xlu0 %3114
        %3116 = vrot.lane.b32.xlu0 %v2622, 14
        %v3117 = vpop.permute.xlu0 %3116
        %3118 = vrot.lane.b32.xlu0 %v2623, 14
        %v3119 = vpop.permute.xlu0 %3118
        %3120 = vrot.lane.b32.xlu0 %v2624, 14
        %v3121 = vpop.permute.xlu0 %3120
        %3122 = vrot.lane.b32.xlu0 %v2625, 14
        %v3123 = vpop.permute.xlu0 %3122
        %3124 = vrot.lane.b32.xlu0 %v2626, 14
        %v3125 = vpop.permute.xlu0 %3124
        %3126 = vrot.lane.b32.xlu0 %v2627, 14
        %v3127 = vpop.permute.xlu0 %3126
        %3128 = vrot.lane.b32.xlu0 %v2628, 14
        %v3129 = vpop.permute.xlu0 %3128
        %3130 = vrot.lane.b32.xlu0 %v2629, 14
        %v3131 = vpop.permute.xlu0 %3130
        %3132 = vrot.lane.b32.xlu0 %v2630, 14
        %v3133 = vpop.permute.xlu0 %3132
        %3134 = vrot.lane.b32.xlu0 %v2631, 14
        %v3135 = vpop.permute.xlu0 %3134
        %3136 = vrot.lane.b32.xlu0 %v2632, 14
        %v3137 = vpop.permute.xlu0 %3136
        %3138 = vrot.lane.b32.xlu0 %v2633, 14
        %v3139 = vpop.permute.xlu0 %3138
        %3140 = vrot.lane.b32.xlu0 %v2634, 14
        %v3141 = vpop.permute.xlu0 %3140
        %3142 = vrot.lane.b32.xlu0 %v2635, 14
        %v3143 = vpop.permute.xlu0 %3142
        %3144 = vrot.lane.b32.xlu0 %v2636, 14
        %v3145 = vpop.permute.xlu0 %3144
        %3146 = vrot.lane.b32.xlu0 %v2637, 14
        %v3147 = vpop.permute.xlu0 %3146
        %3148 = vrot.lane.b32.xlu0 %v2638, 14
        %v3149 = vpop.permute.xlu0 %3148
        %3150 = vrot.lane.b32.xlu0 %v2639, 14
        %v3151 = vpop.permute.xlu0 %3150
        %3152 = vrot.lane.b32.xlu0 %v2640, 14
        %v3153 = vpop.permute.xlu0 %3152
        %3218 = vrot.lane.b32.xlu0 %v2641, 104
        %v3219 = vpop.permute.xlu0 %3218
        %3220 = vrot.lane.b32.xlu0 %v2642, 104
        %v3221 = vpop.permute.xlu0 %3220
        %3222 = vrot.lane.b32.xlu0 %v2643, 104
        %v3223 = vpop.permute.xlu0 %3222
        %3224 = vrot.lane.b32.xlu0 %v2644, 104
        %v3225 = vpop.permute.xlu0 %3224
        %3226 = vrot.lane.b32.xlu0 %v2645, 104
        %v3227 = vpop.permute.xlu0 %3226
        %3228 = vrot.lane.b32.xlu0 %v2646, 104
        %v3229 = vpop.permute.xlu0 %3228
        %3230 = vrot.lane.b32.xlu0 %v2647, 104
        %v3231 = vpop.permute.xlu0 %3230
        %3232 = vrot.lane.b32.xlu0 %v2648, 104
        %v3233 = vpop.permute.xlu0 %3232
        %3234 = vrot.lane.b32.xlu0 %v2649, 104
        %v3235 = vpop.permute.xlu0 %3234
        %3236 = vrot.lane.b32.xlu0 %v2650, 104
        %v3237 = vpop.permute.xlu0 %3236
        %3238 = vrot.lane.b32.xlu0 %v2651, 104
        %v3239 = vpop.permute.xlu0 %3238
        %3240 = vrot.lane.b32.xlu0 %v2652, 104
        %v3241 = vpop.permute.xlu0 %3240
        %3242 = vrot.lane.b32.xlu0 %v2653, 104
        %v3243 = vpop.permute.xlu0 %3242
        %3244 = vrot.lane.b32.xlu0 %v2654, 104
        %v3245 = vpop.permute.xlu0 %3244
        %3246 = vrot.lane.b32.xlu0 %v2655, 104
        %v3247 = vpop.permute.xlu0 %3246
        %3248 = vrot.lane.b32.xlu0 %v2656, 104
        %v3249 = vpop.permute.xlu0 %3248
        %3250 = vrot.lane.b32.xlu0 %v2657, 104
        %v3251 = vpop.permute.xlu0 %3250
        %3252 = vrot.lane.b32.xlu0 %v2658, 104
        %v3253 = vpop.permute.xlu0 %3252
        %3254 = vrot.lane.b32.xlu0 %v2659, 104
        %v3255 = vpop.permute.xlu0 %3254
        %3256 = vrot.lane.b32.xlu0 %v2660, 104
        %v3257 = vpop.permute.xlu0 %3256
        %3258 = vrot.lane.b32.xlu0 %v2661, 104
        %v3259 = vpop.permute.xlu0 %3258
        %3260 = vrot.lane.b32.xlu0 %v2662, 104
        %v3261 = vpop.permute.xlu0 %3260
        %3262 = vrot.lane.b32.xlu0 %v2663, 104
        %v3263 = vpop.permute.xlu0 %3262
        %3264 = vrot.lane.b32.xlu0 %v2664, 104
        %v3265 = vpop.permute.xlu0 %3264
        %3266 = vrot.lane.b32.xlu0 %v2665, 104
        %v3267 = vpop.permute.xlu0 %3266
        %3268 = vrot.lane.b32.xlu0 %v2666, 104
        %v3269 = vpop.permute.xlu0 %3268
        %3270 = vrot.lane.b32.xlu0 %v2667, 104
        %v3271 = vpop.permute.xlu0 %3270
        %3272 = vrot.lane.b32.xlu0 %v2668, 104
        %v3273 = vpop.permute.xlu0 %3272
        %3274 = vrot.lane.b32.xlu0 %v2669, 104
        %v3275 = vpop.permute.xlu0 %3274
        %3276 = vrot.lane.b32.xlu0 %v2670, 104
        %v3277 = vpop.permute.xlu0 %3276
        %3278 = vrot.lane.b32.xlu0 %v2671, 104
        %v3279 = vpop.permute.xlu0 %3278
        %3280 = vrot.lane.b32.xlu0 %v2672, 104
        %v3281 = vpop.permute.xlu0 %3280
        %3346 = vrot.lane.b32.xlu0 %v2673, 66
        %v3347 = vpop.permute.xlu0 %3346
        %3348 = vrot.lane.b32.xlu0 %v2674, 66
        %v3349 = vpop.permute.xlu0 %3348
        %3350 = vrot.lane.b32.xlu0 %v2675, 66
        %v3351 = vpop.permute.xlu0 %3350
        %3352 = vrot.lane.b32.xlu0 %v2676, 66
        %v3353 = vpop.permute.xlu0 %3352
        %3354 = vrot.lane.b32.xlu0 %v2677, 66
        %v3355 = vpop.permute.xlu0 %3354
        %3356 = vrot.lane.b32.xlu0 %v2678, 66
        %v3357 = vpop.permute.xlu0 %3356
        %3358 = vrot.lane.b32.xlu0 %v2679, 66
        %v3359 = vpop.permute.xlu0 %3358
        %3360 = vrot.lane.b32.xlu0 %v2680, 66
        %v3361 = vpop.permute.xlu0 %3360
        %3362 = vrot.lane.b32.xlu0 %v2681, 66
        %v3363 = vpop.permute.xlu0 %3362
        %3364 = vrot.lane.b32.xlu0 %v2682, 66
        %v3365 = vpop.permute.xlu0 %3364
        %3366 = vrot.lane.b32.xlu0 %v2683, 66
        %v3367 = vpop.permute.xlu0 %3366
        %3368 = vrot.lane.b32.xlu0 %v2684, 66
        %v3369 = vpop.permute.xlu0 %3368
        %3370 = vrot.lane.b32.xlu0 %v2685, 66
        %v3371 = vpop.permute.xlu0 %3370
        %3372 = vrot.lane.b32.xlu0 %v2686, 66
        %v3373 = vpop.permute.xlu0 %3372
        %3374 = vrot.lane.b32.xlu0 %v2687, 66
        %v3375 = vpop.permute.xlu0 %3374
        %3376 = vrot.lane.b32.xlu0 %v2688, 66
        %v3377 = vpop.permute.xlu0 %3376
        %3378 = vrot.lane.b32.xlu0 %v2689, 66
        %v3379 = vpop.permute.xlu0 %3378
        %3380 = vrot.lane.b32.xlu0 %v2690, 66
        %v3381 = vpop.permute.xlu0 %3380
        %3382 = vrot.lane.b32.xlu0 %v2691, 66
        %v3383 = vpop.permute.xlu0 %3382
        %3384 = vrot.lane.b32.xlu0 %v2692, 66
        %v3385 = vpop.permute.xlu0 %3384
        %3386 = vrot.lane.b32.xlu0 %v2693, 66
        %v3387 = vpop.permute.xlu0 %3386
        %3388 = vrot.lane.b32.xlu0 %v2694, 66
        %v3389 = vpop.permute.xlu0 %3388
        %3390 = vrot.lane.b32.xlu0 %v2695, 66
        %v3391 = vpop.permute.xlu0 %3390
        %3392 = vrot.lane.b32.xlu0 %v2696, 66
        %v3393 = vpop.permute.xlu0 %3392
        %3394 = vrot.lane.b32.xlu0 %v2697, 66
        %v3395 = vpop.permute.xlu0 %3394
        %3396 = vrot.lane.b32.xlu0 %v2698, 66
        %v3397 = vpop.permute.xlu0 %3396
        %3398 = vrot.lane.b32.xlu0 %v2699, 66
        %v3399 = vpop.permute.xlu0 %3398
        %3400 = vrot.lane.b32.xlu0 %v2700, 66
        %v3401 = vpop.permute.xlu0 %3400
        %3402 = vrot.lane.b32.xlu0 %v2701, 66
        %v3403 = vpop.permute.xlu0 %3402
        %3404 = vrot.lane.b32.xlu0 %v2702, 66
        %v3405 = vpop.permute.xlu0 %3404
        %3406 = vrot.lane.b32.xlu0 %v2703, 66
        %v3407 = vpop.permute.xlu0 %3406
        %3408 = vrot.lane.b32.xlu0 %v2704, 66
        %v3409 = vpop.permute.xlu0 %3408
        %3474 = vrot.lane.b32.xlu0 %v2706, 28
        %v3475 = vpop.permute.xlu0 %3474
        %3476 = vrot.lane.b32.xlu0 %v2707, 28
        %v3477 = vpop.permute.xlu0 %3476
        %3478 = vrot.lane.b32.xlu0 %v2708, 28
        %v3479 = vpop.permute.xlu0 %3478
        %3480 = vrot.lane.b32.xlu0 %v2709, 28
        %v3481 = vpop.permute.xlu0 %3480
        %3482 = vrot.lane.b32.xlu0 %v2710, 28
        %v3483 = vpop.permute.xlu0 %3482
        %3484 = vrot.lane.b32.xlu0 %v2711, 28
        %v3485 = vpop.permute.xlu0 %3484
        %3486 = vrot.lane.b32.xlu0 %v2712, 28
        %v3487 = vpop.permute.xlu0 %3486
        %3488 = vrot.lane.b32.xlu0 %v2713, 28
        %v3489 = vpop.permute.xlu0 %3488
        %3490 = vrot.lane.b32.xlu0 %v2714, 28
        %v3491 = vpop.permute.xlu0 %3490
        %3492 = vrot.lane.b32.xlu0 %v2715, 28
        %v3493 = vpop.permute.xlu0 %3492
        %3494 = vrot.lane.b32.xlu0 %v2716, 28
        %v3495 = vpop.permute.xlu0 %3494
        %3496 = vrot.lane.b32.xlu0 %v2717, 28
        %v3497 = vpop.permute.xlu0 %3496
        %3498 = vrot.lane.b32.xlu0 %v2718, 28
        %v3499 = vpop.permute.xlu0 %3498
        %3500 = vrot.lane.b32.xlu0 %v2719, 28
        %v3501 = vpop.permute.xlu0 %3500
        %3502 = vrot.lane.b32.xlu0 %v2720, 28
        %v3503 = vpop.permute.xlu0 %3502
        %3504 = vrot.lane.b32.xlu0 %v2721, 28
        %v3505 = vpop.permute.xlu0 %3504
        %3506 = vrot.lane.b32.xlu0 %v2722, 28
        %v3507 = vpop.permute.xlu0 %3506
        %3508 = vrot.lane.b32.xlu0 %v2723, 28
        %v3509 = vpop.permute.xlu0 %3508
        %3510 = vrot.lane.b32.xlu0 %v2724, 28
        %v3511 = vpop.permute.xlu0 %3510
        %3512 = vrot.lane.b32.xlu0 %v2725, 28
        %v3513 = vpop.permute.xlu0 %3512
        %3514 = vrot.lane.b32.xlu0 %v2726, 28
        %v3515 = vpop.permute.xlu0 %3514
        %3516 = vrot.lane.b32.xlu0 %v2727, 28
        %v3517 = vpop.permute.xlu0 %3516
        %3518 = vrot.lane.b32.xlu0 %v2728, 28
        %v3519 = vpop.permute.xlu0 %3518
        %3520 = vrot.lane.b32.xlu0 %v2729, 28
        %v3521 = vpop.permute.xlu0 %3520
        %3522 = vrot.lane.b32.xlu0 %v2730, 28
        %v3523 = vpop.permute.xlu0 %3522
        %3524 = vrot.lane.b32.xlu0 %v2731, 28
        %v3525 = vpop.permute.xlu0 %3524
        %3526 = vrot.lane.b32.xlu0 %v2732, 28
        %v3527 = vpop.permute.xlu0 %3526
        %3528 = vrot.lane.b32.xlu0 %v2733, 28
        %v3529 = vpop.permute.xlu0 %3528
        %3530 = vrot.lane.b32.xlu0 %v2734, 28
        %v3531 = vpop.permute.xlu0 %3530
        %3532 = vrot.lane.b32.xlu0 %v2735, 28
        %v3533 = vpop.permute.xlu0 %3532
        %3534 = vrot.lane.b32.xlu0 %v2736, 28
        %v3535 = vpop.permute.xlu0 %3534
        %3536 = vrot.lane.b32.xlu0 %v2737, 28
        %v3537 = vpop.permute.xlu0 %3536
        %3602 = vrot.lane.b32.xlu0 %v2738, 118
        %v3603 = vpop.permute.xlu0 %3602
        %3604 = vrot.lane.b32.xlu0 %v2739, 118
        %v3605 = vpop.permute.xlu0 %3604
        %3606 = vrot.lane.b32.xlu0 %v2740, 118
        %v3607 = vpop.permute.xlu0 %3606
        %3608 = vrot.lane.b32.xlu0 %v2741, 118
        %v3609 = vpop.permute.xlu0 %3608
        %3610 = vrot.lane.b32.xlu0 %v2742, 118
        %v3611 = vpop.permute.xlu0 %3610
        %3612 = vrot.lane.b32.xlu0 %v2743, 118
        %v3613 = vpop.permute.xlu0 %3612
        %3614 = vrot.lane.b32.xlu0 %v2744, 118
        %v3615 = vpop.permute.xlu0 %3614
        %3616 = vrot.lane.b32.xlu0 %v2745, 118
        %v3617 = vpop.permute.xlu0 %3616
        %3618 = vrot.lane.b32.xlu0 %v2746, 118
        %v3619 = vpop.permute.xlu0 %3618
        %3620 = vrot.lane.b32.xlu0 %v2747, 118
        %v3621 = vpop.permute.xlu0 %3620
        %3622 = vrot.lane.b32.xlu0 %v2748, 118
        %v3623 = vpop.permute.xlu0 %3622
        %3624 = vrot.lane.b32.xlu0 %v2749, 118
        %v3625 = vpop.permute.xlu0 %3624
        %3626 = vrot.lane.b32.xlu0 %v2750, 118
        %v3627 = vpop.permute.xlu0 %3626
        %3628 = vrot.lane.b32.xlu0 %v2751, 118
        %v3629 = vpop.permute.xlu0 %3628
        %3630 = vrot.lane.b32.xlu0 %v2752, 118
        %v3631 = vpop.permute.xlu0 %3630
        %3632 = vrot.lane.b32.xlu0 %v2753, 118
        %v3633 = vpop.permute.xlu0 %3632
        %3634 = vrot.lane.b32.xlu0 %v2754, 118
        %v3635 = vpop.permute.xlu0 %3634
        %3636 = vrot.lane.b32.xlu0 %v2755, 118
        %v3637 = vpop.permute.xlu0 %3636
        %3638 = vrot.lane.b32.xlu0 %v2756, 118
        %v3639 = vpop.permute.xlu0 %3638
        %3640 = vrot.lane.b32.xlu0 %v2757, 118
        %v3641 = vpop.permute.xlu0 %3640
        %3642 = vrot.lane.b32.xlu0 %v2758, 118
        %v3643 = vpop.permute.xlu0 %3642
        %3644 = vrot.lane.b32.xlu0 %v2759, 118
        %v3645 = vpop.permute.xlu0 %3644
        %3646 = vrot.lane.b32.xlu0 %v2760, 118
        %v3647 = vpop.permute.xlu0 %3646
        %3648 = vrot.lane.b32.xlu0 %v2761, 118
        %v3649 = vpop.permute.xlu0 %3648
        %3650 = vrot.lane.b32.xlu0 %v2762, 118
        %v3651 = vpop.permute.xlu0 %3650
        %3652 = vrot.lane.b32.xlu0 %v2763, 118
        %v3653 = vpop.permute.xlu0 %3652
        %3654 = vrot.lane.b32.xlu0 %v2764, 118
        %v3655 = vpop.permute.xlu0 %3654
        %3656 = vrot.lane.b32.xlu0 %v2765, 118
        %v3657 = vpop.permute.xlu0 %3656
        %3658 = vrot.lane.b32.xlu0 %v2766, 118
        %v3659 = vpop.permute.xlu0 %3658
        %3660 = vrot.lane.b32.xlu0 %v2767, 118
        %v3661 = vpop.permute.xlu0 %3660
        %3662 = vrot.lane.b32.xlu0 %v2768, 118
        %v3663 = vpop.permute.xlu0 %3662
        %3664 = vrot.lane.b32.xlu0 %v2769, 118
        %v3665 = vpop.permute.xlu0 %3664
        %3730 = vrot.lane.b32.xlu0 %v2770, 80
        %v3731 = vpop.permute.xlu0 %3730
        %3732 = vrot.lane.b32.xlu0 %v2771, 80
        %v3733 = vpop.permute.xlu0 %3732
        %3734 = vrot.lane.b32.xlu0 %v2772, 80
        %v3735 = vpop.permute.xlu0 %3734
        %3736 = vrot.lane.b32.xlu0 %v2773, 80
        %v3737 = vpop.permute.xlu0 %3736
        %3738 = vrot.lane.b32.xlu0 %v2774, 80
        %v3739 = vpop.permute.xlu0 %3738
        %3740 = vrot.lane.b32.xlu0 %v2775, 80
        %v3741 = vpop.permute.xlu0 %3740
        %3742 = vrot.lane.b32.xlu0 %v2776, 80
        %v3743 = vpop.permute.xlu0 %3742
        %3744 = vrot.lane.b32.xlu0 %v2777, 80
        %v3745 = vpop.permute.xlu0 %3744
        %3746 = vrot.lane.b32.xlu0 %v2778, 80
        %v3747 = vpop.permute.xlu0 %3746
        %3748 = vrot.lane.b32.xlu0 %v2779, 80
        %v3749 = vpop.permute.xlu0 %3748
        %3750 = vrot.lane.b32.xlu0 %v2780, 80
        %v3751 = vpop.permute.xlu0 %3750
        %3752 = vrot.lane.b32.xlu0 %v2781, 80
        %v3753 = vpop.permute.xlu0 %3752
        %3754 = vrot.lane.b32.xlu0 %v2782, 80
        %v3755 = vpop.permute.xlu0 %3754
        %3756 = vrot.lane.b32.xlu0 %v2783, 80
        %v3757 = vpop.permute.xlu0 %3756
        %3758 = vrot.lane.b32.xlu0 %v2784, 80
        %v3759 = vpop.permute.xlu0 %3758
        %3760 = vrot.lane.b32.xlu0 %v2785, 80
        %v3761 = vpop.permute.xlu0 %3760
        %3762 = vrot.lane.b32.xlu0 %v2786, 80
        %v3763 = vpop.permute.xlu0 %3762
        %3764 = vrot.lane.b32.xlu0 %v2787, 80
        %v3765 = vpop.permute.xlu0 %3764
        %3766 = vrot.lane.b32.xlu0 %v2788, 80
        %v3767 = vpop.permute.xlu0 %3766
        %3768 = vrot.lane.b32.xlu0 %v2789, 80
        %v3769 = vpop.permute.xlu0 %3768
        %3770 = vrot.lane.b32.xlu0 %v2790, 80
        %v3771 = vpop.permute.xlu0 %3770
        %3772 = vrot.lane.b32.xlu0 %v2791, 80
        %v3773 = vpop.permute.xlu0 %3772
        %3774 = vrot.lane.b32.xlu0 %v2792, 80
        %v3775 = vpop.permute.xlu0 %3774
        %3776 = vrot.lane.b32.xlu0 %v2793, 80
        %v3777 = vpop.permute.xlu0 %3776
        %3778 = vrot.lane.b32.xlu0 %v2794, 80
        %v3779 = vpop.permute.xlu0 %3778
        %3780 = vrot.lane.b32.xlu0 %v2795, 80
        %v3781 = vpop.permute.xlu0 %3780
        %3782 = vrot.lane.b32.xlu0 %v2796, 80
        %v3783 = vpop.permute.xlu0 %3782
        %3784 = vrot.lane.b32.xlu0 %v2797, 80
        %v3785 = vpop.permute.xlu0 %3784
        %3786 = vrot.lane.b32.xlu0 %v2798, 80
        %v3787 = vpop.permute.xlu0 %3786
        %3788 = vrot.lane.b32.xlu0 %v2799, 80
        %v3789 = vpop.permute.xlu0 %3788
        %3790 = vrot.lane.b32.xlu0 %v2800, 80
        %v3791 = vpop.permute.xlu0 %3790
        %3792 = vrot.lane.b32.xlu0 %v2801, 80
        %v3793 = vpop.permute.xlu0 %3792
        %v3826 = vsel %vm2424, %v2513, %v2835
        %v3827 = vsel %vm2424, %v2514, %v2837
        %v3828 = vsel %vm2424, %v2515, %v2839
        %v3829 = vsel %vm2424, %v2516, %v2841
        %v3830 = vsel %vm2424, %v2517, %v2843
        %v3831 = vsel %vm2424, %v2518, %v2845
        %v3832 = vsel %vm2424, %v2519, %v2847
        %v3833 = vsel %vm2424, %v2520, %v2849
        %v3834 = vsel %vm2424, %v2521, %v2851
        %v3835 = vsel %vm2424, %v2522, %v2853
        %v3836 = vsel %vm2424, %v2523, %v2855
        %v3837 = vsel %vm2424, %v2524, %v2857
        %v3838 = vsel %vm2424, %v2525, %v2859
        %v3839 = vsel %vm2424, %v2526, %v2861
        %v3840 = vsel %vm2424, %v2527, %v2863
        %v3841 = vsel %vm2424, %v2528, %v2865
        %v3842 = vsel %vm2424, %v2529, %v2867
        %v3843 = vsel %vm2424, %v2530, %v2869
        %v3844 = vsel %vm2424, %v2531, %v2871
        %v3845 = vsel %vm2424, %v2532, %v2873
        %v3846 = vsel %vm2424, %v2533, %v2875
        %v3847 = vsel %vm2424, %v2534, %v2877
        %v3848 = vsel %vm2424, %v2535, %v2879
        %v3849 = vsel %vm2424, %v2536, %v2881
        %v3850 = vsel %vm2424, %v2537, %v2883
        %v3851 = vsel %vm2424, %v2538, %v2885
        %v3852 = vsel %vm2424, %v2539, %v2887
        %v3853 = vsel %vm2424, %v2540, %v2889
        %v3854 = vsel %vm2424, %v2541, %v2891
        %v3855 = vsel %vm2424, %v2542, %v2893
        %v3856 = vsel %vm2424, %v2543, %v2895
        %v3857 = vsel %vm2424, %v2544, %v2897
        %vm3858 = vcmask 424960
        %v3859 = vsel %vm3858, %v2835, %v2963
        %v3860 = vsel %vm3858, %v2837, %v2965
        %v3861 = vsel %vm3858, %v2839, %v2967
        %v3862 = vsel %vm3858, %v2841, %v2969
        %v3863 = vsel %vm3858, %v2843, %v2971
        %v3864 = vsel %vm3858, %v2845, %v2973
        %v3865 = vsel %vm3858, %v2847, %v2975
        %v3866 = vsel %vm3858, %v2849, %v2977
        %v3867 = vsel %vm3858, %v2851, %v2979
        %v3868 = vsel %vm3858, %v2853, %v2981
        %v3869 = vsel %vm3858, %v2855, %v2983
        %v3870 = vsel %vm3858, %v2857, %v2985
        %v3871 = vsel %vm3858, %v2859, %v2987
        %v3872 = vsel %vm3858, %v2861, %v2989
        %v3873 = vsel %vm3858, %v2863, %v2991
        %v3874 = vsel %vm3858, %v2865, %v2993
        %v3875 = vsel %vm3858, %v2867, %v2995
        %v3876 = vsel %vm3858, %v2869, %v2997
        %v3877 = vsel %vm3858, %v2871, %v2999
        %v3878 = vsel %vm3858, %v2873, %v3001
        %v3879 = vsel %vm3858, %v2875, %v3003
        %v3880 = vsel %vm3858, %v2877, %v3005
        %v3881 = vsel %vm3858, %v2879, %v3007
        %v3882 = vsel %vm3858, %v2881, %v3009
        %v3883 = vsel %vm3858, %v2883, %v3011
        %v3884 = vsel %vm3858, %v2885, %v3013
        %v3885 = vsel %vm3858, %v2887, %v3015
        %v3886 = vsel %vm3858, %v2889, %v3017
        %v3887 = vsel %vm3858, %v2891, %v3019
        %v3888 = vsel %vm3858, %v2893, %v3021
        %v3889 = vsel %vm3858, %v2895, %v3023
        %v3890 = vsel %vm3858, %v2897, %v3025
        %vm3891 = vcmask 113664
        %v3892 = vsel %vm3891, %v2963, %v3091
        %v3893 = vsel %vm3891, %v2965, %v3093
        %v3894 = vsel %vm3891, %v2967, %v3095
        %v3895 = vsel %vm3891, %v2969, %v3097
        %v3896 = vsel %vm3891, %v2971, %v3099
        %v3897 = vsel %vm3891, %v2973, %v3101
        %v3898 = vsel %vm3891, %v2975, %v3103
        %v3899 = vsel %vm3891, %v2977, %v3105
        %v3900 = vsel %vm3891, %v2979, %v3107
        %v3901 = vsel %vm3891, %v2981, %v3109
        %v3902 = vsel %vm3891, %v2983, %v3111
        %v3903 = vsel %vm3891, %v2985, %v3113
        %v3904 = vsel %vm3891, %v2987, %v3115
        %v3905 = vsel %vm3891, %v2989, %v3117
        %v3906 = vsel %vm3891, %v2991, %v3119
        %v3907 = vsel %vm3891, %v2993, %v3121
        %v3908 = vsel %vm3891, %v2995, %v3123
        %v3909 = vsel %vm3891, %v2997, %v3125
        %v3910 = vsel %vm3891, %v2999, %v3127
        %v3911 = vsel %vm3891, %v3001, %v3129
        %v3912 = vsel %vm3891, %v3003, %v3131
        %v3913 = vsel %vm3891, %v3005, %v3133
        %v3914 = vsel %vm3891, %v3007, %v3135
        %v3915 = vsel %vm3891, %v3009, %v3137
        %v3916 = vsel %vm3891, %v3011, %v3139
        %v3917 = vsel %vm3891, %v3013, %v3141
        %v3918 = vsel %vm3891, %v3015, %v3143
        %v3919 = vsel %vm3891, %v3017, %v3145
        %v3920 = vsel %vm3891, %v3019, %v3147
        %v3921 = vsel %vm3891, %v3021, %v3149
        %v3922 = vsel %vm3891, %v3023, %v3151
        %v3923 = vsel %vm3891, %v3025, %v3153
        %vm3924 = vcmask 850944
        %v3925 = vsel %vm3924, %v3892, %v3219
        %v3926 = vsel %vm3924, %v3893, %v3221
        %v3927 = vsel %vm3924, %v3894, %v3223
        %v3928 = vsel %vm3924, %v3895, %v3225
        %v3929 = vsel %vm3924, %v3896, %v3227
        %v3930 = vsel %vm3924, %v3897, %v3229
        %v3931 = vsel %vm3924, %v3898, %v3231
        %v3932 = vsel %vm3924, %v3899, %v3233
        %v3933 = vsel %vm3924, %v3900, %v3235
        %v3934 = vsel %vm3924, %v3901, %v3237
        %v3935 = vsel %vm3924, %v3902, %v3239
        %v3936 = vsel %vm3924, %v3903, %v3241
        %v3937 = vsel %vm3924, %v3904, %v3243
        %v3938 = vsel %vm3924, %v3905, %v3245
        %v3939 = vsel %vm3924, %v3906, %v3247
        %v3940 = vsel %vm3924, %v3907, %v3249
        %v3941 = vsel %vm3924, %v3908, %v3251
        %v3942 = vsel %vm3924, %v3909, %v3253
        %v3943 = vsel %vm3924, %v3910, %v3255
        %v3944 = vsel %vm3924, %v3911, %v3257
        %v3945 = vsel %vm3924, %v3912, %v3259
        %v3946 = vsel %vm3924, %v3913, %v3261
        %v3947 = vsel %vm3924, %v3914, %v3263
        %v3948 = vsel %vm3924, %v3915, %v3265
        %v3949 = vsel %vm3924, %v3916, %v3267
        %v3950 = vsel %vm3924, %v3917, %v3269
        %v3951 = vsel %vm3924, %v3918, %v3271
        %v3952 = vsel %vm3924, %v3919, %v3273
        %v3953 = vsel %vm3924, %v3920, %v3275
        %v3954 = vsel %vm3924, %v3921, %v3277
        %v3955 = vsel %vm3924, %v3922, %v3279
        %v3956 = vsel %vm3924, %v3923, %v3281
        %vm3957 = vcmask 539648
        %v3958 = vsel %vm3957, %v3219, %v3347
        %v3959 = vsel %vm3957, %v3221, %v3349
        %v3960 = vsel %vm3957, %v3223, %v3351
        %v3961 = vsel %vm3957, %v3225, %v3353
        %v3962 = vsel %vm3957, %v3227, %v3355
        %v3963 = vsel %vm3957, %v3229, %v3357
        %v3964 = vsel %vm3957, %v3231, %v3359
        %v3965 = vsel %vm3957, %v3233, %v3361
        %v3966 = vsel %vm3957, %v3235, %v3363
        %v3967 = vsel %vm3957, %v3237, %v3365
        %v3968 = vsel %vm3957, %v3239, %v3367
        %v3969 = vsel %vm3957, %v3241, %v3369
        %v3970 = vsel %vm3957, %v3243, %v3371
        %v3971 = vsel %vm3957, %v3245, %v3373
        %v3972 = vsel %vm3957, %v3247, %v3375
        %v3973 = vsel %vm3957, %v3249, %v3377
        %v3974 = vsel %vm3957, %v3251, %v3379
        %v3975 = vsel %vm3957, %v3253, %v3381
        %v3976 = vsel %vm3957, %v3255, %v3383
        %v3977 = vsel %vm3957, %v3257, %v3385
        %v3978 = vsel %vm3957, %v3259, %v3387
        %v3979 = vsel %vm3957, %v3261, %v3389
        %v3980 = vsel %vm3957, %v3263, %v3391
        %v3981 = vsel %vm3957, %v3265, %v3393
        %v3982 = vsel %vm3957, %v3267, %v3395
        %v3983 = vsel %vm3957, %v3269, %v3397
        %v3984 = vsel %vm3957, %v3271, %v3399
        %v3985 = vsel %vm3957, %v3273, %v3401
        %v3986 = vsel %vm3957, %v3275, %v3403
        %v3987 = vsel %vm3957, %v3277, %v3405
        %v3988 = vsel %vm3957, %v3279, %v3407
        %v3989 = vsel %vm3957, %v3281, %v3409
        %vm3990 = vcmask 228352
        %v3991 = vsel %vm3990, %v3347, %v3475
        %v3992 = vsel %vm3990, %v3349, %v3477
        %v3993 = vsel %vm3990, %v3351, %v3479
        %v3994 = vsel %vm3990, %v3353, %v3481
        %v3995 = vsel %vm3990, %v3355, %v3483
        %v3996 = vsel %vm3990, %v3357, %v3485
        %v3997 = vsel %vm3990, %v3359, %v3487
        %v3998 = vsel %vm3990, %v3361, %v3489
        %v3999 = vsel %vm3990, %v3363, %v3491
        %v4000 = vsel %vm3990, %v3365, %v3493
        %v4001 = vsel %vm3990, %v3367, %v3495
        %v4002 = vsel %vm3990, %v3369, %v3497
        %v4003 = vsel %vm3990, %v3371, %v3499
        %v4004 = vsel %vm3990, %v3373, %v3501
        %v4005 = vsel %vm3990, %v3375, %v3503
        %v4006 = vsel %vm3990, %v3377, %v3505
        %v4007 = vsel %vm3990, %v3379, %v3507
        %v4008 = vsel %vm3990, %v3381, %v3509
        %v4009 = vsel %vm3990, %v3383, %v3511
        %v4010 = vsel %vm3990, %v3385, %v3513
        %v4011 = vsel %vm3990, %v3387, %v3515
        %v4012 = vsel %vm3990, %v3389, %v3517
        %v4013 = vsel %vm3990, %v3391, %v3519
        %v4014 = vsel %vm3990, %v3393, %v3521
        %v4015 = vsel %vm3990, %v3395, %v3523
        %v4016 = vsel %vm3990, %v3397, %v3525
        %v4017 = vsel %vm3990, %v3399, %v3527
        %v4018 = vsel %vm3990, %v3401, %v3529
        %v4019 = vsel %vm3990, %v3403, %v3531
        %v4020 = vsel %vm3990, %v3405, %v3533
        %v4021 = vsel %vm3990, %v3407, %v3535
        %v4022 = vsel %vm3990, %v3409, %v3537
        %vm4023 = vcmask 965632
        %v4024 = vsel %vm4023, %v3991, %v3603
        %v4025 = vsel %vm4023, %v3992, %v3605
        %v4026 = vsel %vm4023, %v3993, %v3607
        %v4027 = vsel %vm4023, %v3994, %v3609
        %v4028 = vsel %vm4023, %v3995, %v3611
        %v4029 = vsel %vm4023, %v3996, %v3613
        %v4030 = vsel %vm4023, %v3997, %v3615
        %v4031 = vsel %vm4023, %v3998, %v3617
        %v4032 = vsel %vm4023, %v3999, %v3619
        %v4033 = vsel %vm4023, %v4000, %v3621
        %v4034 = vsel %vm4023, %v4001, %v3623
        %v4035 = vsel %vm4023, %v4002, %v3625
        %v4036 = vsel %vm4023, %v4003, %v3627
        %v4037 = vsel %vm4023, %v4004, %v3629
        %v4038 = vsel %vm4023, %v4005, %v3631
        %v4039 = vsel %vm4023, %v4006, %v3633
        %v4040 = vsel %vm4023, %v4007, %v3635
        %v4041 = vsel %vm4023, %v4008, %v3637
        %v4042 = vsel %vm4023, %v4009, %v3639
        %v4043 = vsel %vm4023, %v4010, %v3641
        %v4044 = vsel %vm4023, %v4011, %v3643
        %v4045 = vsel %vm4023, %v4012, %v3645
        %v4046 = vsel %vm4023, %v4013, %v3647
        %v4047 = vsel %vm4023, %v4014, %v3649
        %v4048 = vsel %vm4023, %v4015, %v3651
        %v4049 = vsel %vm4023, %v4016, %v3653
        %v4050 = vsel %vm4023, %v4017, %v3655
        %v4051 = vsel %vm4023, %v4018, %v3657
        %v4052 = vsel %vm4023, %v4019, %v3659
        %v4053 = vsel %vm4023, %v4020, %v3661
        %v4054 = vsel %vm4023, %v4021, %v3663
        %v4055 = vsel %vm4023, %v4022, %v3665
        %vm4056 = vcmask 654336
        %v4057 = vsel %vm4056, %v3603, %v3731
        %v4058 = vsel %vm4056, %v3605, %v3733
        %v4059 = vsel %vm4056, %v3607, %v3735
        %v4060 = vsel %vm4056, %v3609, %v3737
        %v4061 = vsel %vm4056, %v3611, %v3739
        %v4062 = vsel %vm4056, %v3613, %v3741
        %v4063 = vsel %vm4056, %v3615, %v3743
        %v4064 = vsel %vm4056, %v3617, %v3745
        %v4065 = vsel %vm4056, %v3619, %v3747
        %v4066 = vsel %vm4056, %v3621, %v3749
        %v4067 = vsel %vm4056, %v3623, %v3751
        %v4068 = vsel %vm4056, %v3625, %v3753
        %v4069 = vsel %vm4056, %v3627, %v3755
        %v4070 = vsel %vm4056, %v3629, %v3757
        %v4071 = vsel %vm4056, %v3631, %v3759
        %v4072 = vsel %vm4056, %v3633, %v3761
        %v4073 = vsel %vm4056, %v3635, %v3763
        %v4074 = vsel %vm4056, %v3637, %v3765
        %v4075 = vsel %vm4056, %v3639, %v3767
        %v4076 = vsel %vm4056, %v3641, %v3769
        %v4077 = vsel %vm4056, %v3643, %v3771
        %v4078 = vsel %vm4056, %v3645, %v3773
        %v4079 = vsel %vm4056, %v3647, %v3775
        %v4080 = vsel %vm4056, %v3649, %v3777
        %v4081 = vsel %vm4056, %v3651, %v3779
        %v4082 = vsel %vm4056, %v3653, %v3781
        %v4083 = vsel %vm4056, %v3655, %v3783
        %v4084 = vsel %vm4056, %v3657, %v3785
        %v4085 = vsel %vm4056, %v3659, %v3787
        %v4086 = vsel %vm4056, %v3661, %v3789
        %v4087 = vsel %vm4056, %v3663, %v3791
        %v4088 = vsel %vm4056, %v3665, %v3793
        %v4089 = vld [vmem:[%s4] sm:$0xff]
        %v4090 = vld [vmem:[%s4 + $0x8] sm:$0xff]
        %v4091 = vld [vmem:[%s4 + $0x10] sm:$0xff]
        %v4092 = vld [vmem:[%s4 + $0x18] sm:$0xff]
        %v4093 = vld [vmem:[%s4 + $0x20] sm:$0xff]
        %v4094 = vld [vmem:[%s4 + $0x28] sm:$0xff]
        %v4095 = vld [vmem:[%s4 + $0x30] sm:$0xff]
        %v4096 = vld [vmem:[%s4 + $0x38] sm:$0xff]
        %v4097 = vld [vmem:[%s4 + $0x40] sm:$0xff]
        %v4098 = vld [vmem:[%s4 + $0x48] sm:$0xff]
        %v4099 = vld [vmem:[%s4 + $0x50] sm:$0xff]
        %v4100 = vld [vmem:[%s4 + $0x58] sm:$0xff]
        %v4101 = vld [vmem:[%s4 + $0x60] sm:$0xff]
        %v4102 = vld [vmem:[%s4 + $0x68] sm:$0xff]
        %v4103 = vld [vmem:[%s4 + $0x70] sm:$0xff]
        %v4104 = vld [vmem:[%s4 + $0x78] sm:$0xff]
        %v4105 = vld [vmem:[%s4 + $0x80] sm:$0xff]
        %v4106 = vld [vmem:[%s4 + $0x88] sm:$0xff]
        %v4107 = vld [vmem:[%s4 + $0x90] sm:$0xff]
        %v4108 = vld [vmem:[%s4 + $0x98] sm:$0xff]
        %v4109 = vld [vmem:[%s4 + $0xa0] sm:$0xff]
        %v4110 = vld [vmem:[%s4 + $0xa8] sm:$0xff]
        %v4111 = vld [vmem:[%s4 + $0xb0] sm:$0xff]
        %v4112 = vld [vmem:[%s4 + $0xb8] sm:$0xff]
        %v4113 = vld [vmem:[%s4 + $0xc0] sm:$0xff]
        %v4114 = vld [vmem:[%s4 + $0xc8] sm:$0xff]
        %v4115 = vld [vmem:[%s4 + $0xd0] sm:$0xff]
        %v4116 = vld [vmem:[%s4 + $0xd8] sm:$0xff]
        %v4117 = vld [vmem:[%s4 + $0xe0] sm:$0xff]
        %v4118 = vld [vmem:[%s4 + $0xe8] sm:$0xff]
        %v4119 = vld [vmem:[%s4 + $0xf0] sm:$0xff]
        %v4120 = vld [vmem:[%s4 + $0xf8] sm:$0xff]
        %v4121 = vld [vmem:[%s4 + $0x100] sm:$0xff]
        %v4122 = vld [vmem:[%s4 + $0x108] sm:$0xff]
        %v4123 = vld [vmem:[%s4 + $0x110] sm:$0xff]
        %v4124 = vld [vmem:[%s4 + $0x118] sm:$0xff]
        %v4125 = vld [vmem:[%s4 + $0x120] sm:$0xff]
        %v4126 = vld [vmem:[%s4 + $0x128] sm:$0xff]
        %v4127 = vld [vmem:[%s4 + $0x130] sm:$0xff]
        %v4128 = vld [vmem:[%s4 + $0x138] sm:$0xff]
        %v4129 = vld [vmem:[%s4 + $0x140] sm:$0xff]
        %v4130 = vld [vmem:[%s4 + $0x148] sm:$0xff]
        %v4131 = vld [vmem:[%s4 + $0x150] sm:$0xff]
        %v4132 = vld [vmem:[%s4 + $0x158] sm:$0xff]
        %v4133 = vld [vmem:[%s4 + $0x160] sm:$0xff]
        %v4134 = vld [vmem:[%s4 + $0x168] sm:$0xff]
        %v4135 = vld [vmem:[%s4 + $0x170] sm:$0xff]
        %v4136 = vld [vmem:[%s4 + $0x178] sm:$0xff]
        %v4137 = vld [vmem:[%s4 + $0x180] sm:$0xff]
        %v4138 = vld [vmem:[%s4 + $0x188] sm:$0xff]
        %v4139 = vld [vmem:[%s4 + $0x190] sm:$0xff]
        %v4140 = vld [vmem:[%s4 + $0x198] sm:$0xff]
        %v4141 = vld [vmem:[%s4 + $0x1a0] sm:$0xff]
        %v4142 = vld [vmem:[%s4 + $0x1a8] sm:$0xff]
        %v4143 = vld [vmem:[%s4 + $0x1b0] sm:$0xff]
        %v4144 = vld [vmem:[%s4 + $0x1b8] sm:$0xff]
        %v4145 = vld [vmem:[%s4 + $0x1c0] sm:$0xff]
        %v4146 = vld [vmem:[%s4 + $0x1c8] sm:$0xff]
        %v4147 = vld [vmem:[%s4 + $0x1d0] sm:$0xff]
        %v4148 = vld [vmem:[%s4 + $0x1d8] sm:$0xff]
        %v4149 = vld [vmem:[%s4 + $0x1e0] sm:$0xff]
        %v4150 = vld [vmem:[%s4 + $0x1e8] sm:$0xff]
        %v4151 = vld [vmem:[%s4 + $0x1f0] sm:$0xff]
        %v4152 = vld [vmem:[%s4 + $0x1f8] sm:$0xff]
        %v4153 = vld [vmem:[%s4 + $0x200] sm:$0xff]
        %v4154 = vld [vmem:[%s4 + $0x208] sm:$0xff]
        %v4155 = vld [vmem:[%s4 + $0x210] sm:$0xff]
        %v4156 = vld [vmem:[%s4 + $0x218] sm:$0xff]
        %v4157 = vld [vmem:[%s4 + $0x220] sm:$0xff]
        %v4158 = vld [vmem:[%s4 + $0x228] sm:$0xff]
        %v4159 = vld [vmem:[%s4 + $0x230] sm:$0xff]
        %v4160 = vld [vmem:[%s4 + $0x238] sm:$0xff]
        %v4161 = vld [vmem:[%s4 + $0x240] sm:$0xff]
        %v4162 = vld [vmem:[%s4 + $0x248] sm:$0xff]
        %v4163 = vld [vmem:[%s4 + $0x250] sm:$0xff]
        %v4164 = vld [vmem:[%s4 + $0x258] sm:$0xff]
        %v4165 = vld [vmem:[%s4 + $0x260] sm:$0xff]
        %v4166 = vld [vmem:[%s4 + $0x268] sm:$0xff]
        %v4167 = vld [vmem:[%s4 + $0x270] sm:$0xff]
        %v4168 = vld [vmem:[%s4 + $0x278] sm:$0xff]
        %v4169 = vld [vmem:[%s4 + $0x280] sm:$0xff]
        %v4170 = vld [vmem:[%s4 + $0x288] sm:$0xff]
        %v4171 = vld [vmem:[%s4 + $0x290] sm:$0xff]
        %v4172 = vld [vmem:[%s4 + $0x298] sm:$0xff]
        %v4173 = vld [vmem:[%s4 + $0x2a0] sm:$0xff]
        %v4174 = vld [vmem:[%s4 + $0x2a8] sm:$0xff]
        %v4175 = vld [vmem:[%s4 + $0x2b0] sm:$0xff]
        %v4176 = vld [vmem:[%s4 + $0x2b8] sm:$0xff]
        %v4177 = vld [vmem:[%s4 + $0x2c0] sm:$0xff]
        %v4178 = vld [vmem:[%s4 + $0x2c8] sm:$0xff]
        %v4179 = vld [vmem:[%s4 + $0x2d0] sm:$0xff]
        %v4180 = vld [vmem:[%s4 + $0x2d8] sm:$0xff]
        %v4181 = vld [vmem:[%s4 + $0x2e0] sm:$0xff]
        %v4182 = vld [vmem:[%s4 + $0x2e8] sm:$0xff]
        %v4183 = vld [vmem:[%s4 + $0x2f0] sm:$0xff]
        %v4184 = vld [vmem:[%s4 + $0x2f8] sm:$0xff]
        %v4185 = vld [vmem:[%s4 + $0x300] sm:$0xff]
        %v4186 = vld [vmem:[%s4 + $0x308] sm:$0xff]
        %v4187 = vld [vmem:[%s4 + $0x310] sm:$0xff]
        %v4188 = vld [vmem:[%s4 + $0x318] sm:$0xff]
        %v4189 = vld [vmem:[%s4 + $0x320] sm:$0xff]
        %v4190 = vld [vmem:[%s4 + $0x328] sm:$0x3]
        %vm4191 = vcmask 343040
        %v4192 = vsel %vm4191, %v3731, 0
        %v4194 = vsel %vm4191, %v3733, 0
        %v4196 = vsel %vm4191, %v3735, 0
        %v4198 = vsel %vm4191, %v3737, 0
        %v4200 = vsel %vm4191, %v3739, 0
        %v4202 = vsel %vm4191, %v3741, 0
        %v4204 = vsel %vm4191, %v3743, 0
        %v4206 = vsel %vm4191, %v3745, 0
        %v4208 = vsel %vm4191, %v3747, 0
        %v4210 = vsel %vm4191, %v3749, 0
        %v4212 = vsel %vm4191, %v3751, 0
        %v4214 = vsel %vm4191, %v3753, 0
        %v4216 = vsel %vm4191, %v3755, 0
        %v4218 = vsel %vm4191, %v3757, 0
        %v4220 = vsel %vm4191, %v3759, 0
        %v4222 = vsel %vm4191, %v3761, 0
        %v4224 = vsel %vm4191, %v3763, 0
        %v4226 = vsel %vm4191, %v3765, 0
        %v4228 = vsel %vm4191, %v3767, 0
        %v4230 = vsel %vm4191, %v3769, 0
        %v4232 = vsel %vm4191, %v3771, 0
        %v4234 = vsel %vm4191, %v3773, 0
        %v4236 = vsel %vm4191, %v3775, 0
        %v4238 = vsel %vm4191, %v3777, 0
        %v4240 = vsel %vm4191, %v3779, 0
        %v4242 = vsel %vm4191, %v3781, 0
        %v4244 = vsel %vm4191, %v3783, 0
        %v4246 = vsel %vm4191, %v3785, 0
        %v4248 = vsel %vm4191, %v3787, 0
        %v4250 = vsel %vm4191, %v3789, 0
        %v4252 = vsel %vm4191, %v3791, 0
        %v4254 = vsel %vm4191, %v3793, 0
        %vm4256 = vcmask 1041408
        %v4258 = vsel %vm4256, %v4190, 0
        %4260 = vmatprep.subr.mxu0 0.0
        %4261 = vmatpush1.msra.mxu0 %v4089
        %4262 = vmatprep.subr.mxu0 0.0
        %4263 = vmatpush1.msra.mxu0 %v4090
        %4264 = vmatprep.subr.mxu0 0.0
        %4265 = vmatpush1.msra.mxu0 %v4091
        %4266 = vmatprep.subr.mxu0 0.0
        %4267 = vmatpush1.msra.mxu0 %v4092
        %4268 = vmatprep.subr.mxu0 0.0
        %4269 = vmatpush1.msra.mxu0 %v4093
        %4270 = vmatprep.subr.mxu0 0.0
        %4271 = vmatpush1.msra.mxu0 %v4094
        %4272 = vmatprep.subr.mxu0 0.0
        %4273 = vmatpush1.msra.mxu0 %v4095
        %4274 = vmatprep.subr.mxu0 0.0
        %4275 = vmatpush1.msra.mxu0 %v4096
        %4276 = vmatprep.subr.mxu0 0.0
        %4277 = vmatpush1.msra.mxu0 %v4097
        %4278 = vmatprep.subr.mxu0 0.0
        %4279 = vmatpush1.msra.mxu0 %v4098
        %4280 = vmatprep.subr.mxu0 0.0
        %4281 = vmatpush1.msra.mxu0 %v4099
        %4282 = vmatprep.subr.mxu0 0.0
        %4283 = vmatpush1.msra.mxu0 %v4100
        %4284 = vmatprep.subr.mxu0 0.0
        %4285 = vmatpush1.msra.mxu0 %v4101
        %4286 = vmatprep.subr.mxu0 0.0
        %4287 = vmatpush1.msra.mxu0 %v4102
        %4288 = vmatprep.subr.mxu0 0.0
        %4289 = vmatpush1.msra.mxu0 %v4103
        %4290 = vmatprep.subr.mxu0 0.0
        %4291 = vmatpush1.msra.mxu0 %v4104
        %4292 = vmatprep.subr.mxu0 0.0
        %4293 = vmatpush1.msra.mxu0 %v4105
        %4294 = vmatprep.subr.mxu0 0.0
        %4295 = vmatpush1.msra.mxu0 %v4106
        %4296 = vmatprep.subr.mxu0 0.0
        %4297 = vmatpush1.msra.mxu0 %v4107
        %4298 = vmatprep.subr.mxu0 0.0
        %4299 = vmatpush1.msra.mxu0 %v4108
        %4300 = vmatprep.subr.mxu0 0.0
        %4301 = vmatpush1.msra.mxu0 %v4109
        %4302 = vmatprep.subr.mxu0 0.0
        %4303 = vmatpush1.msra.mxu0 %v4110
        %4304 = vmatprep.subr.mxu0 0.0
        %4305 = vmatpush1.msra.mxu0 %v4111
        %4306 = vmatprep.subr.mxu0 0.0
        %4307 = vmatpush1.msra.mxu0 %v4112
        %4308 = vmatprep.subr.mxu0 0.0
        %4309 = vmatpush1.msra.mxu0 %v4113
        %4310 = vmatprep.subr.mxu0 0.0
        %4311 = vmatpush1.msra.mxu0 %v4114
        %4312 = vmatprep.subr.mxu0 0.0
        %4313 = vmatpush1.msra.mxu0 %v4115
        %4314 = vmatprep.subr.mxu0 0.0
        %4315 = vmatpush1.msra.mxu0 %v4116
        %4316 = vmatprep.subr.mxu0 0.0
        %4317 = vmatpush1.msra.mxu0 %v4117
        %4318 = vmatprep.subr.mxu0 0.0
        %4319 = vmatpush1.msra.mxu0 %v4118
        %4320 = vmatprep.subr.mxu0 0.0
        %4321 = vmatpush1.msra.mxu0 %v4119
        %4322 = vmatprep.subr.mxu0 0.0
        %4323 = vmatpush1.msra.mxu0 %v4120
        %4324 = vmatprep.mubr.f32.mxu0 %v3859
        %4325 = vmatmul.mubr.f32.gmra.mrb[0].mxu0 %v3826
        %v4326 = vpop.f32.mrb[0].mxu0
        %v4327 = vadd.f32 0.0, %v4326
        %v4328 = vpop.f32.mrb[0].mxu0
        %4329 = vmatprep.mubr.f32.mxu0 %v3860
        %4330 = vmatmul.mubr.f32.gmra.mrb[0].mxu0 %v3827
        %v4331 = vpop.f32.mrb[0].mxu0
        %v4332 = vadd.f32 0.0, %v4331
        %v4333 = vpop.f32.mrb[0].mxu0
        %4334 = vmatprep.mubr.f32.mxu0 %v3861
        %4335 = vmatmul.mubr.f32.gmra.mrb[0].mxu0 %v3828
        %v4336 = vpop.f32.mrb[0].mxu0
        %v4337 = vadd.f32 0.0, %v4336
        %v4338 = vpop.f32.mrb[0].mxu0
        %4339 = vmatprep.mubr.f32.mxu0 %v3862
        %4340 = vmatmul.mubr.f32.gmra.mrb[0].mxu0 %v3829
        %v4341 = vpop.f32.mrb[0].mxu0
        %v4342 = vadd.f32 0.0, %v4341
        %v4343 = vpop.f32.mrb[0].mxu0
        %4344 = vmatprep.mubr.f32.mxu0 %v3863
        %4345 = vmatmul.mubr.f32.gmra.mrb[0].mxu0 %v3830
        %v4346 = vpop.f32.mrb[0].mxu0
        %v4347 = vadd.f32 0.0, %v4346
        %v4348 = vpop.f32.mrb[0].mxu0
        %4349 = vmatprep.mubr.f32.mxu0 %v3864
        %4350 = vmatmul.mubr.f32.gmra.mrb[0].mxu0 %v3831
        %v4351 = vpop.f32.mrb[0].mxu0
        %v4352 = vadd.f32 0.0, %v4351
        %v4353 = vpop.f32.mrb[0].mxu0
        %4354 = vmatprep.mubr.f32.mxu0 %v3865
        %4355 = vmatmul.mubr.f32.gmra.mrb[0].mxu0 %v3832
        %v4356 = vpop.f32.mrb[0].mxu0
        %v4357 = vadd.f32 0.0, %v4356
        %v4358 = vpop.f32.mrb[0].mxu0
        %4359 = vmatprep.mubr.f32.mxu0 %v3866
        %4360 = vmatmul.mubr.f32.gmra.mrb[0].mxu0 %v3833
        %v4361 = vpop.f32.mrb[0].mxu0
        %v4362 = vadd.f32 0.0, %v4361
        %v4363 = vpop.f32.mrb[0].mxu0
        %4364 = vmatprep.mubr.f32.mxu0 %v3867
        %4365 = vmatmul.mubr.f32.gmra.mrb[0].mxu0 %v3834
        %v4366 = vpop.f32.mrb[0].mxu0
        %v4367 = vadd.f32 0.0, %v4366
        %v4368 = vpop.f32.mrb[0].mxu0
        %4369 = vmatprep.mubr.f32.mxu0 %v3868
        %4370 = vmatmul.mubr.f32.gmra.mrb[0].mxu0 %v3835
        %v4371 = vpop.f32.mrb[0].mxu0
        %v4372 = vadd.f32 0.0, %v4371
        %v4373 = vpop.f32.mrb[0].mxu0
        %4374 = vmatprep.mubr.f32.mxu0 %v3869
        %4375 = vmatmul.mubr.f32.gmra.mrb[0].mxu0 %v3836
        %v4376 = vpop.f32.mrb[0].mxu0
        %v4377 = vadd.f32 0.0, %v4376
        %v4378 = vpop.f32.mrb[0].mxu0
        %4379 = vmatprep.mubr.f32.mxu0 %v3870
        %4380 = vmatmul.mubr.f32.gmra.mrb[0].mxu0 %v3837
        %v4381 = vpop.f32.mrb[0].mxu0
        %v4382 = vadd.f32 0.0, %v4381
        %v4383 = vpop.f32.mrb[0].mxu0
        %4384 = vmatprep.mubr.f32.mxu0 %v3871
        %4385 = vmatmul.mubr.f32.gmra.mrb[0].mxu0 %v3838
        %v4386 = vpop.f32.mrb[0].mxu0
        %v4387 = vadd.f32 0.0, %v4386
        %v4388 = vpop.f32.mrb[0].mxu0
        %4389 = vmatprep.mubr.f32.mxu0 %v3872
        %4390 = vmatmul.mubr.f32.gmra.mrb[0].mxu0 %v3839
        %v4391 = vpop.f32.mrb[0].mxu0
        %v4392 = vadd.f32 0.0, %v4391
        %v4393 = vpop.f32.mrb[0].mxu0
        %4394 = vmatprep.mubr.f32.mxu0 %v3873
        %4395 = vmatmul.mubr.f32.gmra.mrb[0].mxu0 %v3840
        %v4396 = vpop.f32.mrb[0].mxu0
        %v4397 = vadd.f32 0.0, %v4396
        %v4398 = vpop.f32.mrb[0].mxu0
        %4399 = vmatprep.mubr.f32.mxu0 %v3874
        %4400 = vmatmul.mubr.f32.gmra.mrb[0].mxu0 %v3841
        %v4401 = vpop.f32.mrb[0].mxu0
        %v4402 = vadd.f32 0.0, %v4401
        %v4403 = vpop.f32.mrb[0].mxu0
        %4404 = vmatprep.mubr.f32.mxu0 %v3875
        %4405 = vmatmul.mubr.f32.gmra.mrb[0].mxu0 %v3842
        %v4406 = vpop.f32.mrb[0].mxu0
        %v4407 = vadd.f32 0.0, %v4406
        %v4408 = vpop.f32.mrb[0].mxu0
        %4409 = vmatprep.mubr.f32.mxu0 %v3876
        %4410 = vmatmul.mubr.f32.gmra.mrb[0].mxu0 %v3843
        %v4411 = vpop.f32.mrb[0].mxu0
        %v4412 = vadd.f32 0.0, %v4411
        %v4413 = vpop.f32.mrb[0].mxu0
        %4414 = vmatprep.mubr.f32.mxu0 %v3877
        %4415 = vmatmul.mubr.f32.gmra.mrb[0].mxu0 %v3844
        %v4416 = vpop.f32.mrb[0].mxu0
        %v4417 = vadd.f32 0.0, %v4416
        %v4418 = vpop.f32.mrb[0].mxu0
        %4419 = vmatprep.mubr.f32.mxu0 %v3878
        %4420 = vmatmul.mubr.f32.gmra.mrb[0].mxu0 %v3845
        %v4421 = vpop.f32.mrb[0].mxu0
        %v4422 = vadd.f32 0.0, %v4421
        %v4423 = vpop.f32.mrb[0].mxu0
        %4424 = vmatprep.mubr.f32.mxu0 %v3879
        %4425 = vmatmul.mubr.f32.gmra.mrb[0].mxu0 %v3846
        %v4426 = vpop.f32.mrb[0].mxu0
        %v4427 = vadd.f32 0.0, %v4426
        %v4428 = vpop.f32.mrb[0].mxu0
        %4429 = vmatprep.mubr.f32.mxu0 %v3880
        %4430 = vmatmul.mubr.f32.gmra.mrb[0].mxu0 %v3847
        %v4431 = vpop.f32.mrb[0].mxu0
        %v4432 = vadd.f32 0.0, %v4431
        %v4433 = vpop.f32.mrb[0].mxu0
        %4434 = vmatprep.mubr.f32.mxu0 %v3881
        %4435 = vmatmul.mubr.f32.gmra.mrb[0].mxu0 %v3848
        %v4436 = vpop.f32.mrb[0].mxu0
        %v4437 = vadd.f32 0.0, %v4436
        %v4438 = vpop.f32.mrb[0].mxu0
        %4439 = vmatprep.mubr.f32.mxu0 %v3882
        %4440 = vmatmul.mubr.f32.gmra.mrb[0].mxu0 %v3849
        %v4441 = vpop.f32.mrb[0].mxu0
        %v4442 = vadd.f32 0.0, %v4441
        %v4443 = vpop.f32.mrb[0].mxu0
        %4444 = vmatprep.mubr.f32.mxu0 %v3883
        %4445 = vmatmul.mubr.f32.gmra.mrb[0].mxu0 %v3850
        %v4446 = vpop.f32.mrb[0].mxu0
        %v4447 = vadd.f32 0.0, %v4446
        %v4448 = vpop.f32.mrb[0].mxu0
        %4449 = vmatprep.mubr.f32.mxu0 %v3884
        %4450 = vmatmul.mubr.f32.gmra.mrb[0].mxu0 %v3851
        %v4451 = vpop.f32.mrb[0].mxu0
        %v4452 = vadd.f32 0.0, %v4451
        %v4453 = vpop.f32.mrb[0].mxu0
        %4454 = vmatprep.mubr.f32.mxu0 %v3885
        %4455 = vmatmul.mubr.f32.gmra.mrb[0].mxu0 %v3852
        %v4456 = vpop.f32.mrb[0].mxu0
        %v4457 = vadd.f32 0.0, %v4456
        %v4458 = vpop.f32.mrb[0].mxu0
        %4459 = vmatprep.mubr.f32.mxu0 %v3886
        %4460 = vmatmul.mubr.f32.gmra.mrb[0].mxu0 %v3853
        %v4461 = vpop.f32.mrb[0].mxu0
        %v4462 = vadd.f32 0.0, %v4461
        %v4463 = vpop.f32.mrb[0].mxu0
        %4464 = vmatprep.mubr.f32.mxu0 %v3887
        %4465 = vmatmul.mubr.f32.gmra.mrb[0].mxu0 %v3854
        %v4466 = vpop.f32.mrb[0].mxu0
        %v4467 = vadd.f32 0.0, %v4466
        %v4468 = vpop.f32.mrb[0].mxu0
        %4469 = vmatprep.mubr.f32.mxu0 %v3888
        %4470 = vmatmul.mubr.f32.gmra.mrb[0].mxu0 %v3855
        %v4471 = vpop.f32.mrb[0].mxu0
        %v4472 = vadd.f32 0.0, %v4471
        %v4473 = vpop.f32.mrb[0].mxu0
        %4474 = vmatprep.mubr.f32.mxu0 %v3889
        %4475 = vmatmul.mubr.f32.gmra.mrb[0].mxu0 %v3856
        %v4476 = vpop.f32.mrb[0].mxu0
        %v4477 = vadd.f32 0.0, %v4476
        %v4478 = vpop.f32.mrb[0].mxu0
        %4479 = vmatprep.mubr.f32.mxu0 %v3890
        %4480 = vmatmul.mubr.f32.gmra.mrb[0].mxu0 %v3857
        %v4481 = vpop.f32.mrb[0].mxu0
        %v4482 = vadd.f32 0.0, %v4481
        %v4483 = vpop.f32.mrb[0].mxu0
        %4484 = vdwg.mxu0
        %4485 = vmatprep.subr.mxu0 0.0
        %4486 = vmatpush1.msra.mxu0 %v4121
        %4487 = vmatprep.subr.mxu0 0.0
        %4488 = vmatpush1.msra.mxu0 %v4122
        %4489 = vmatprep.subr.mxu0 0.0
        %4490 = vmatpush1.msra.mxu0 %v4123
        %4491 = vmatprep.subr.mxu0 0.0
        %4492 = vmatpush1.msra.mxu0 %v4124
        %4493 = vmatprep.subr.mxu0 0.0
        %4494 = vmatpush1.msra.mxu0 %v4125
        %4495 = vmatprep.subr.mxu0 0.0
        %4496 = vmatpush1.msra.mxu0 %v4126
        %4497 = vmatprep.subr.mxu0 0.0
        %4498 = vmatpush1.msra.mxu0 %v4127
        %4499 = vmatprep.subr.mxu0 0.0
        %4500 = vmatpush1.msra.mxu0 %v4128
        %4501 = vmatprep.subr.mxu0 0.0
        %4502 = vmatpush1.msra.mxu0 %v4129
        %4503 = vmatprep.subr.mxu0 0.0
        %4504 = vmatpush1.msra.mxu0 %v4130
        %4505 = vmatprep.subr.mxu0 0.0
        %4506 = vmatpush1.msra.mxu0 %v4131
        %4507 = vmatprep.subr.mxu0 0.0
        %4508 = vmatpush1.msra.mxu0 %v4132
        %4509 = vmatprep.subr.mxu0 0.0
        %4510 = vmatpush1.msra.mxu0 %v4133
        %4511 = vmatprep.subr.mxu0 0.0
        %4512 = vmatpush1.msra.mxu0 %v4134
        %4513 = vmatprep.subr.mxu0 0.0
        %4514 = vmatpush1.msra.mxu0 %v4135
        %4515 = vmatprep.subr.mxu0 0.0
        %4516 = vmatpush1.msra.mxu0 %v4136
        %4517 = vmatprep.subr.mxu0 0.0
        %4518 = vmatpush1.msra.mxu0 %v4137
        %4519 = vmatprep.subr.mxu0 0.0
        %4520 = vmatpush1.msra.mxu0 %v4138
        %4521 = vmatprep.subr.mxu0 0.0
        %4522 = vmatpush1.msra.mxu0 %v4139
        %4523 = vmatprep.subr.mxu0 0.0
        %4524 = vmatpush1.msra.mxu0 %v4140
        %4525 = vmatprep.subr.mxu0 0.0
        %4526 = vmatpush1.msra.mxu0 %v4141
        %4527 = vmatprep.subr.mxu0 0.0
        %4528 = vmatpush1.msra.mxu0 %v4142
        %4529 = vmatprep.subr.mxu0 0.0
        %4530 = vmatpush1.msra.mxu0 %v4143
        %4531 = vmatprep.subr.mxu0 0.0
        %4532 = vmatpush1.msra.mxu0 %v4144
        %4533 = vmatprep.subr.mxu0 0.0
        %4534 = vmatpush1.msra.mxu0 %v4145
        %4535 = vmatprep.subr.mxu0 0.0
        %4536 = vmatpush1.msra.mxu0 %v4146
        %4537 = vmatprep.subr.mxu0 0.0
        %4538 = vmatpush1.msra.mxu0 %v4147
        %4539 = vmatprep.subr.mxu0 0.0
        %4540 = vmatpush1.msra.mxu0 %v4148
        %4541 = vmatprep.subr.mxu0 0.0
        %4542 = vmatpush1.msra.mxu0 %v4149
        %4543 = vmatprep.subr.mxu0 0.0
        %4544 = vmatpush1.msra.mxu0 %v4150
        %4545 = vmatprep.subr.mxu0 0.0
        %4546 = vmatpush1.msra.mxu0 %v4151
        %4547 = vmatprep.subr.mxu0 0.0
        %4548 = vmatpush1.msra.mxu0 %v4152
        %4549 = vmatprep.mubr.f32.mxu0 %v3958
        %4550 = vmatmul.mubr.f32.gmra.mrb[0].mxu0 %v3925
        %v4551 = vpop.f32.mrb[0].mxu0
        %v4552 = vadd.f32 %v4327, %v4551
        %v4553 = vpop.f32.mrb[0].mxu0
        %4554 = vmatprep.mubr.f32.mxu0 %v3959
        %4555 = vmatmul.mubr.f32.gmra.mrb[0].mxu0 %v3926
        %v4556 = vpop.f32.mrb[0].mxu0
        %v4557 = vadd.f32 %v4332, %v4556
        %v4558 = vpop.f32.mrb[0].mxu0
        %4559 = vmatprep.mubr.f32.mxu0 %v3960
        %4560 = vmatmul.mubr.f32.gmra.mrb[0].mxu0 %v3927
        %v4561 = vpop.f32.mrb[0].mxu0
        %v4562 = vadd.f32 %v4337, %v4561
        %v4563 = vpop.f32.mrb[0].mxu0
        %4564 = vmatprep.mubr.f32.mxu0 %v3961
        %4565 = vmatmul.mubr.f32.gmra.mrb[0].mxu0 %v3928
        %v4566 = vpop.f32.mrb[0].mxu0
        %v4567 = vadd.f32 %v4342, %v4566
        %v4568 = vpop.f32.mrb[0].mxu0
        %4569 = vmatprep.mubr.f32.mxu0 %v3962
        %4570 = vmatmul.mubr.f32.gmra.mrb[0].mxu0 %v3929
        %v4571 = vpop.f32.mrb[0].mxu0
        %v4572 = vadd.f32 %v4347, %v4571
        %v4573 = vpop.f32.mrb[0].mxu0
        %4574 = vmatprep.mubr.f32.mxu0 %v3963
        %4575 = vmatmul.mubr.f32.gmra.mrb[0].mxu0 %v3930
        %v4576 = vpop.f32.mrb[0].mxu0
        %v4577 = vadd.f32 %v4352, %v4576
        %v4578 = vpop.f32.mrb[0].mxu0
        %4579 = vmatprep.mubr.f32.mxu0 %v3964
        %4580 = vmatmul.mubr.f32.gmra.mrb[0].mxu0 %v3931
        %v4581 = vpop.f32.mrb[0].mxu0
        %v4582 = vadd.f32 %v4357, %v4581
        %v4583 = vpop.f32.mrb[0].mxu0
        %4584 = vmatprep.mubr.f32.mxu0 %v3965
        %4585 = vmatmul.mubr.f32.gmra.mrb[0].mxu0 %v3932
        %v4586 = vpop.f32.mrb[0].mxu0
        %v4587 = vadd.f32 %v4362, %v4586
        %v4588 = vpop.f32.mrb[0].mxu0
        %4589 = vmatprep.mubr.f32.mxu0 %v3966
        %4590 = vmatmul.mubr.f32.gmra.mrb[0].mxu0 %v3933
        %v4591 = vpop.f32.mrb[0].mxu0
        %v4592 = vadd.f32 %v4367, %v4591
        %v4593 = vpop.f32.mrb[0].mxu0
        %4594 = vmatprep.mubr.f32.mxu0 %v3967
        %4595 = vmatmul.mubr.f32.gmra.mrb[0].mxu0 %v3934
        %v4596 = vpop.f32.mrb[0].mxu0
        %v4597 = vadd.f32 %v4372, %v4596
        %v4598 = vpop.f32.mrb[0].mxu0
        %4599 = vmatprep.mubr.f32.mxu0 %v3968
        %4600 = vmatmul.mubr.f32.gmra.mrb[0].mxu0 %v3935
        %v4601 = vpop.f32.mrb[0].mxu0
        %v4602 = vadd.f32 %v4377, %v4601
        %v4603 = vpop.f32.mrb[0].mxu0
        %4604 = vmatprep.mubr.f32.mxu0 %v3969
        %4605 = vmatmul.mubr.f32.gmra.mrb[0].mxu0 %v3936
        %v4606 = vpop.f32.mrb[0].mxu0
        %v4607 = vadd.f32 %v4382, %v4606
        %v4608 = vpop.f32.mrb[0].mxu0
        %4609 = vmatprep.mubr.f32.mxu0 %v3970
        %4610 = vmatmul.mubr.f32.gmra.mrb[0].mxu0 %v3937
        %v4611 = vpop.f32.mrb[0].mxu0
        %v4612 = vadd.f32 %v4387, %v4611
        %v4613 = vpop.f32.mrb[0].mxu0
        %4614 = vmatprep.mubr.f32.mxu0 %v3971
        %4615 = vmatmul.mubr.f32.gmra.mrb[0].mxu0 %v3938
        %v4616 = vpop.f32.mrb[0].mxu0
        %v4617 = vadd.f32 %v4392, %v4616
        %v4618 = vpop.f32.mrb[0].mxu0
        %4619 = vmatprep.mubr.f32.mxu0 %v3972
        %4620 = vmatmul.mubr.f32.gmra.mrb[0].mxu0 %v3939
        %v4621 = vpop.f32.mrb[0].mxu0
        %v4622 = vadd.f32 %v4397, %v4621
        %v4623 = vpop.f32.mrb[0].mxu0
        %4624 = vmatprep.mubr.f32.mxu0 %v3973
        %4625 = vmatmul.mubr.f32.gmra.mrb[0].mxu0 %v3940
        %v4626 = vpop.f32.mrb[0].mxu0
        %v4627 = vadd.f32 %v4402, %v4626
        %v4628 = vpop.f32.mrb[0].mxu0
        %4629 = vmatprep.mubr.f32.mxu0 %v3974
        %4630 = vmatmul.mubr.f32.gmra.mrb[0].mxu0 %v3941
        %v4631 = vpop.f32.mrb[0].mxu0
        %v4632 = vadd.f32 %v4407, %v4631
        %v4633 = vpop.f32.mrb[0].mxu0
        %4634 = vmatprep.mubr.f32.mxu0 %v3975
        %4635 = vmatmul.mubr.f32.gmra.mrb[0].mxu0 %v3942
        %v4636 = vpop.f32.mrb[0].mxu0
        %v4637 = vadd.f32 %v4412, %v4636
        %v4638 = vpop.f32.mrb[0].mxu0
        %4639 = vmatprep.mubr.f32.mxu0 %v3976
        %4640 = vmatmul.mubr.f32.gmra.mrb[0].mxu0 %v3943
        %v4641 = vpop.f32.mrb[0].mxu0
        %v4642 = vadd.f32 %v4417, %v4641
        %v4643 = vpop.f32.mrb[0].mxu0
        %4644 = vmatprep.mubr.f32.mxu0 %v3977
        %4645 = vmatmul.mubr.f32.gmra.mrb[0].mxu0 %v3944
        %v4646 = vpop.f32.mrb[0].mxu0
        %v4647 = vadd.f32 %v4422, %v4646
        %v4648 = vpop.f32.mrb[0].mxu0
        %4649 = vmatprep.mubr.f32.mxu0 %v3978
        %4650 = vmatmul.mubr.f32.gmra.mrb[0].mxu0 %v3945
        %v4651 = vpop.f32.mrb[0].mxu0
        %v4652 = vadd.f32 %v4427, %v4651
        %v4653 = vpop.f32.mrb[0].mxu0
        %4654 = vmatprep.mubr.f32.mxu0 %v3979
        %4655 = vmatmul.mubr.f32.gmra.mrb[0].mxu0 %v3946
        %v4656 = vpop.f32.mrb[0].mxu0
        %v4657 = vadd.f32 %v4432, %v4656
        %v4658 = vpop.f32.mrb[0].mxu0
        %4659 = vmatprep.mubr.f32.mxu0 %v3980
        %4660 = vmatmul.mubr.f32.gmra.mrb[0].mxu0 %v3947
        %v4661 = vpop.f32.mrb[0].mxu0
        %v4662 = vadd.f32 %v4437, %v4661
        %v4663 = vpop.f32.mrb[0].mxu0
        %4664 = vmatprep.mubr.f32.mxu0 %v3981
        %4665 = vmatmul.mubr.f32.gmra.mrb[0].mxu0 %v3948
        %v4666 = vpop.f32.mrb[0].mxu0
        %v4667 = vadd.f32 %v4442, %v4666
        %v4668 = vpop.f32.mrb[0].mxu0
        %4669 = vmatprep.mubr.f32.mxu0 %v3982
        %4670 = vmatmul.mubr.f32.gmra.mrb[0].mxu0 %v3949
        %v4671 = vpop.f32.mrb[0].mxu0
        %v4672 = vadd.f32 %v4447, %v4671
        %v4673 = vpop.f32.mrb[0].mxu0
        %4674 = vmatprep.mubr.f32.mxu0 %v3983
        %4675 = vmatmul.mubr.f32.gmra.mrb[0].mxu0 %v3950
        %v4676 = vpop.f32.mrb[0].mxu0
        %v4677 = vadd.f32 %v4452, %v4676
        %v4678 = vpop.f32.mrb[0].mxu0
        %4679 = vmatprep.mubr.f32.mxu0 %v3984
        %4680 = vmatmul.mubr.f32.gmra.mrb[0].mxu0 %v3951
        %v4681 = vpop.f32.mrb[0].mxu0
        %v4682 = vadd.f32 %v4457, %v4681
        %v4683 = vpop.f32.mrb[0].mxu0
        %4684 = vmatprep.mubr.f32.mxu0 %v3985
        %4685 = vmatmul.mubr.f32.gmra.mrb[0].mxu0 %v3952
        %v4686 = vpop.f32.mrb[0].mxu0
        %v4687 = vadd.f32 %v4462, %v4686
        %v4688 = vpop.f32.mrb[0].mxu0
        %4689 = vmatprep.mubr.f32.mxu0 %v3986
        %4690 = vmatmul.mubr.f32.gmra.mrb[0].mxu0 %v3953
        %v4691 = vpop.f32.mrb[0].mxu0
        %v4692 = vadd.f32 %v4467, %v4691
        %v4693 = vpop.f32.mrb[0].mxu0
        %4694 = vmatprep.mubr.f32.mxu0 %v3987
        %4695 = vmatmul.mubr.f32.gmra.mrb[0].mxu0 %v3954
        %v4696 = vpop.f32.mrb[0].mxu0
        %v4697 = vadd.f32 %v4472, %v4696
        %v4698 = vpop.f32.mrb[0].mxu0
        %4699 = vmatprep.mubr.f32.mxu0 %v3988
        %4700 = vmatmul.mubr.f32.gmra.mrb[0].mxu0 %v3955
        %v4701 = vpop.f32.mrb[0].mxu0
        %v4702 = vadd.f32 %v4477, %v4701
        %v4703 = vpop.f32.mrb[0].mxu0
        %4704 = vmatprep.mubr.f32.mxu0 %v3989
        %4705 = vmatmul.mubr.f32.gmra.mrb[0].mxu0 %v3956
        %v4706 = vpop.f32.mrb[0].mxu0
        %v4707 = vadd.f32 %v4482, %v4706
        %v4708 = vpop.f32.mrb[0].mxu0
        %4709 = vdwg.mxu0
        %4710 = vmatprep.subr.mxu0 0.0
        %4711 = vmatpush1.msra.mxu0 %v4153
        %4712 = vmatprep.subr.mxu0 0.0
        %4713 = vmatpush1.msra.mxu0 %v4154
        %4714 = vmatprep.subr.mxu0 0.0
        %4715 = vmatpush1.msra.mxu0 %v4155
        %4716 = vmatprep.subr.mxu0 0.0
        %4717 = vmatpush1.msra.mxu0 %v4156
        %4718 = vmatprep.subr.mxu0 0.0
        %4719 = vmatpush1.msra.mxu0 %v4157
        %4720 = vmatprep.subr.mxu0 0.0
        %4721 = vmatpush1.msra.mxu0 %v4158
        %4722 = vmatprep.subr.mxu0 0.0
        %4723 = vmatpush1.msra.mxu0 %v4159
        %4724 = vmatprep.subr.mxu0 0.0
        %4725 = vmatpush1.msra.mxu0 %v4160
        %4726 = vmatprep.subr.mxu0 0.0
        %4727 = vmatpush1.msra.mxu0 %v4161
        %4728 = vmatprep.subr.mxu0 0.0
        %4729 = vmatpush1.msra.mxu0 %v4162
        %4730 = vmatprep.subr.mxu0 0.0
        %4731 = vmatpush1.msra.mxu0 %v4163
        %4732 = vmatprep.subr.mxu0 0.0
        %4733 = vmatpush1.msra.mxu0 %v4164
        %4734 = vmatprep.subr.mxu0 0.0
        %4735 = vmatpush1.msra.mxu0 %v4165
        %4736 = vmatprep.subr.mxu0 0.0
        %4737 = vmatpush1.msra.mxu0 %v4166
        %4738 = vmatprep.subr.mxu0 0.0
        %4739 = vmatpush1.msra.mxu0 %v4167
        %4740 = vmatprep.subr.mxu0 0.0
        %4741 = vmatpush1.msra.mxu0 %v4168
        %4742 = vmatprep.subr.mxu0 0.0
        %4743 = vmatpush1.msra.mxu0 %v4169
        %4744 = vmatprep.subr.mxu0 0.0
        %4745 = vmatpush1.msra.mxu0 %v4170
        %4746 = vmatprep.subr.mxu0 0.0
        %4747 = vmatpush1.msra.mxu0 %v4171
        %4748 = vmatprep.subr.mxu0 0.0
        %4749 = vmatpush1.msra.mxu0 %v4172
        %4750 = vmatprep.subr.mxu0 0.0
        %4751 = vmatpush1.msra.mxu0 %v4173
        %4752 = vmatprep.subr.mxu0 0.0
        %4753 = vmatpush1.msra.mxu0 %v4174
        %4754 = vmatprep.subr.mxu0 0.0
        %4755 = vmatpush1.msra.mxu0 %v4175
        %4756 = vmatprep.subr.mxu0 0.0
        %4757 = vmatpush1.msra.mxu0 %v4176
        %4758 = vmatprep.subr.mxu0 0.0
        %4759 = vmatpush1.msra.mxu0 %v4177
        %4760 = vmatprep.subr.mxu0 0.0
        %4761 = vmatpush1.msra.mxu0 %v4178
        %4762 = vmatprep.subr.mxu0 0.0
        %4763 = vmatpush1.msra.mxu0 %v4179
        %4764 = vmatprep.subr.mxu0 0.0
        %4765 = vmatpush1.msra.mxu0 %v4180
        %4766 = vmatprep.subr.mxu0 0.0
        %4767 = vmatpush1.msra.mxu0 %v4181
        %4768 = vmatprep.subr.mxu0 0.0
        %4769 = vmatpush1.msra.mxu0 %v4182
        %4770 = vmatprep.subr.mxu0 0.0
        %4771 = vmatpush1.msra.mxu0 %v4183
        %4772 = vmatprep.subr.mxu0 0.0
        %4773 = vmatpush1.msra.mxu0 %v4184
        %4774 = vmatprep.mubr.f32.mxu0 %v4057
        %4775 = vmatmul.mubr.f32.gmra.mrb[0].mxu0 %v4024
        %v4776 = vpop.f32.mrb[0].mxu0
        %v4777 = vadd.f32 %v4552, %v4776
        %v4778 = vpop.f32.mrb[0].mxu0
        %4779 = vmatprep.mubr.f32.mxu0 %v4058
        %4780 = vmatmul.mubr.f32.gmra.mrb[0].mxu0 %v4025
        %v4781 = vpop.f32.mrb[0].mxu0
        %v4782 = vadd.f32 %v4557, %v4781
        %v4783 = vpop.f32.mrb[0].mxu0
        %4784 = vmatprep.mubr.f32.mxu0 %v4059
        %4785 = vmatmul.mubr.f32.gmra.mrb[0].mxu0 %v4026
        %v4786 = vpop.f32.mrb[0].mxu0
        %v4787 = vadd.f32 %v4562, %v4786
        %v4788 = vpop.f32.mrb[0].mxu0
        %4789 = vmatprep.mubr.f32.mxu0 %v4060
        %4790 = vmatmul.mubr.f32.gmra.mrb[0].mxu0 %v4027
        %v4791 = vpop.f32.mrb[0].mxu0
        %v4792 = vadd.f32 %v4567, %v4791
        %v4793 = vpop.f32.mrb[0].mxu0
        %4794 = vmatprep.mubr.f32.mxu0 %v4061
        %4795 = vmatmul.mubr.f32.gmra.mrb[0].mxu0 %v4028
        %v4796 = vpop.f32.mrb[0].mxu0
        %v4797 = vadd.f32 %v4572, %v4796
        %v4798 = vpop.f32.mrb[0].mxu0
        %4799 = vmatprep.mubr.f32.mxu0 %v4062
        %4800 = vmatmul.mubr.f32.gmra.mrb[0].mxu0 %v4029
        %v4801 = vpop.f32.mrb[0].mxu0
        %v4802 = vadd.f32 %v4577, %v4801
        %v4803 = vpop.f32.mrb[0].mxu0
        %4804 = vmatprep.mubr.f32.mxu0 %v4063
        %4805 = vmatmul.mubr.f32.gmra.mrb[0].mxu0 %v4030
        %v4806 = vpop.f32.mrb[0].mxu0
        %v4807 = vadd.f32 %v4582, %v4806
        %v4808 = vpop.f32.mrb[0].mxu0
        %4809 = vmatprep.mubr.f32.mxu0 %v4064
        %4810 = vmatmul.mubr.f32.gmra.mrb[0].mxu0 %v4031
        %v4811 = vpop.f32.mrb[0].mxu0
        %v4812 = vadd.f32 %v4587, %v4811
        %v4813 = vpop.f32.mrb[0].mxu0
        %4814 = vmatprep.mubr.f32.mxu0 %v4065
        %4815 = vmatmul.mubr.f32.gmra.mrb[0].mxu0 %v4032
        %v4816 = vpop.f32.mrb[0].mxu0
        %v4817 = vadd.f32 %v4592, %v4816
        %v4818 = vpop.f32.mrb[0].mxu0
        %4819 = vmatprep.mubr.f32.mxu0 %v4066
        %4820 = vmatmul.mubr.f32.gmra.mrb[0].mxu0 %v4033
        %v4821 = vpop.f32.mrb[0].mxu0
        %v4822 = vadd.f32 %v4597, %v4821
        %v4823 = vpop.f32.mrb[0].mxu0
        %4824 = vmatprep.mubr.f32.mxu0 %v4067
        %4825 = vmatmul.mubr.f32.gmra.mrb[0].mxu0 %v4034
        %v4826 = vpop.f32.mrb[0].mxu0
        %v4827 = vadd.f32 %v4602, %v4826
        %v4828 = vpop.f32.mrb[0].mxu0
        %4829 = vmatprep.mubr.f32.mxu0 %v4068
        %4830 = vmatmul.mubr.f32.gmra.mrb[0].mxu0 %v4035
        %v4831 = vpop.f32.mrb[0].mxu0
        %v4832 = vadd.f32 %v4607, %v4831
        %v4833 = vpop.f32.mrb[0].mxu0
        %4834 = vmatprep.mubr.f32.mxu0 %v4069
        %4835 = vmatmul.mubr.f32.gmra.mrb[0].mxu0 %v4036
        %v4836 = vpop.f32.mrb[0].mxu0
        %v4837 = vadd.f32 %v4612, %v4836
        %v4838 = vpop.f32.mrb[0].mxu0
        %4839 = vmatprep.mubr.f32.mxu0 %v4070
        %4840 = vmatmul.mubr.f32.gmra.mrb[0].mxu0 %v4037
        %v4841 = vpop.f32.mrb[0].mxu0
        %v4842 = vadd.f32 %v4617, %v4841
        %v4843 = vpop.f32.mrb[0].mxu0
        %4844 = vmatprep.mubr.f32.mxu0 %v4071
        %4845 = vmatmul.mubr.f32.gmra.mrb[0].mxu0 %v4038
        %v4846 = vpop.f32.mrb[0].mxu0
        %v4847 = vadd.f32 %v4622, %v4846
        %v4848 = vpop.f32.mrb[0].mxu0
        %4849 = vmatprep.mubr.f32.mxu0 %v4072
        %4850 = vmatmul.mubr.f32.gmra.mrb[0].mxu0 %v4039
        %v4851 = vpop.f32.mrb[0].mxu0
        %v4852 = vadd.f32 %v4627, %v4851
        %v4853 = vpop.f32.mrb[0].mxu0
        %4854 = vmatprep.mubr.f32.mxu0 %v4073
        %4855 = vmatmul.mubr.f32.gmra.mrb[0].mxu0 %v4040
        %v4856 = vpop.f32.mrb[0].mxu0
        %v4857 = vadd.f32 %v4632, %v4856
        %v4858 = vpop.f32.mrb[0].mxu0
        %4859 = vmatprep.mubr.f32.mxu0 %v4074
        %4860 = vmatmul.mubr.f32.gmra.mrb[0].mxu0 %v4041
        %v4861 = vpop.f32.mrb[0].mxu0
        %v4862 = vadd.f32 %v4637, %v4861
        %v4863 = vpop.f32.mrb[0].mxu0
        %4864 = vmatprep.mubr.f32.mxu0 %v4075
        %4865 = vmatmul.mubr.f32.gmra.mrb[0].mxu0 %v4042
        %v4866 = vpop.f32.mrb[0].mxu0
        %v4867 = vadd.f32 %v4642, %v4866
        %v4868 = vpop.f32.mrb[0].mxu0
        %4869 = vmatprep.mubr.f32.mxu0 %v4076
        %4870 = vmatmul.mubr.f32.gmra.mrb[0].mxu0 %v4043
        %v4871 = vpop.f32.mrb[0].mxu0
        %v4872 = vadd.f32 %v4647, %v4871
        %v4873 = vpop.f32.mrb[0].mxu0
        %4874 = vmatprep.mubr.f32.mxu0 %v4077
        %4875 = vmatmul.mubr.f32.gmra.mrb[0].mxu0 %v4044
        %v4876 = vpop.f32.mrb[0].mxu0
        %v4877 = vadd.f32 %v4652, %v4876
        %v4878 = vpop.f32.mrb[0].mxu0
        %4879 = vmatprep.mubr.f32.mxu0 %v4078
        %4880 = vmatmul.mubr.f32.gmra.mrb[0].mxu0 %v4045
        %v4881 = vpop.f32.mrb[0].mxu0
        %v4882 = vadd.f32 %v4657, %v4881
        %v4883 = vpop.f32.mrb[0].mxu0
        %4884 = vmatprep.mubr.f32.mxu0 %v4079
        %4885 = vmatmul.mubr.f32.gmra.mrb[0].mxu0 %v4046
        %v4886 = vpop.f32.mrb[0].mxu0
        %v4887 = vadd.f32 %v4662, %v4886
        %v4888 = vpop.f32.mrb[0].mxu0
        %4889 = vmatprep.mubr.f32.mxu0 %v4080
        %4890 = vmatmul.mubr.f32.gmra.mrb[0].mxu0 %v4047
        %v4891 = vpop.f32.mrb[0].mxu0
        %v4892 = vadd.f32 %v4667, %v4891
        %v4893 = vpop.f32.mrb[0].mxu0
        %4894 = vmatprep.mubr.f32.mxu0 %v4081
        %4895 = vmatmul.mubr.f32.gmra.mrb[0].mxu0 %v4048
        %v4896 = vpop.f32.mrb[0].mxu0
        %v4897 = vadd.f32 %v4672, %v4896
        %v4898 = vpop.f32.mrb[0].mxu0
        %4899 = vmatprep.mubr.f32.mxu0 %v4082
        %4900 = vmatmul.mubr.f32.gmra.mrb[0].mxu0 %v4049
        %v4901 = vpop.f32.mrb[0].mxu0
        %v4902 = vadd.f32 %v4677, %v4901
        %v4903 = vpop.f32.mrb[0].mxu0
        %4904 = vmatprep.mubr.f32.mxu0 %v4083
        %4905 = vmatmul.mubr.f32.gmra.mrb[0].mxu0 %v4050
        %v4906 = vpop.f32.mrb[0].mxu0
        %v4907 = vadd.f32 %v4682, %v4906
        %v4908 = vpop.f32.mrb[0].mxu0
        %4909 = vmatprep.mubr.f32.mxu0 %v4084
        %4910 = vmatmul.mubr.f32.gmra.mrb[0].mxu0 %v4051
        %v4911 = vpop.f32.mrb[0].mxu0
        %v4912 = vadd.f32 %v4687, %v4911
        %v4913 = vpop.f32.mrb[0].mxu0
        %4914 = vmatprep.mubr.f32.mxu0 %v4085
        %4915 = vmatmul.mubr.f32.gmra.mrb[0].mxu0 %v4052
        %v4916 = vpop.f32.mrb[0].mxu0
        %v4917 = vadd.f32 %v4692, %v4916
        %v4918 = vpop.f32.mrb[0].mxu0
        %4919 = vmatprep.mubr.f32.mxu0 %v4086
        %4920 = vmatmul.mubr.f32.gmra.mrb[0].mxu0 %v4053
        %v4921 = vpop.f32.mrb[0].mxu0
        %v4922 = vadd.f32 %v4697, %v4921
        %v4923 = vpop.f32.mrb[0].mxu0
        %4924 = vmatprep.mubr.f32.mxu0 %v4087
        %4925 = vmatmul.mubr.f32.gmra.mrb[0].mxu0 %v4054
        %v4926 = vpop.f32.mrb[0].mxu0
        %v4927 = vadd.f32 %v4702, %v4926
        %v4928 = vpop.f32.mrb[0].mxu0
        %4929 = vmatprep.mubr.f32.mxu0 %v4088
        %4930 = vmatmul.mubr.f32.gmra.mrb[0].mxu0 %v4055
        %v4931 = vpop.f32.mrb[0].mxu0
        %v4932 = vadd.f32 %v4707, %v4931
        %v4933 = vpop.f32.mrb[0].mxu0
        %4934 = vdwg.mxu0
        %4935 = vmatprep.subr.mxu0 0.0
        %4936 = vmatpush1.msra.mxu0 %v4185
        %4937 = vmatprep.subr.mxu0 0.0
        %4938 = vmatpush1.msra.mxu0 %v4186
        %4939 = vmatprep.subr.mxu0 0.0
        %4940 = vmatpush1.msra.mxu0 %v4187
        %4941 = vmatprep.subr.mxu0 0.0
        %4942 = vmatpush1.msra.mxu0 %v4188
        %4943 = vmatprep.subr.mxu0 0.0
        %4944 = vmatpush1.msra.mxu0 %v4189
        %4945 = vmatprep.subr.mxu0 0.0
        %4946 = vmatpush1.msra.mxu0 %v4258
        %4947 = vmatprep.subr.mxu0 0.0
        %4948 = vmatpush1.msra.mxu0 0.0
        %4949 = vmatprep.subr.mxu0 0.0
        %4950 = vmatpush1.msra.mxu0 0.0
        %4951 = vmatprep.subr.mxu0 0.0
        %4952 = vmatpush1.msra.mxu0 0.0
        %4953 = vmatprep.subr.mxu0 0.0
        %4954 = vmatpush1.msra.mxu0 0.0
        %4955 = vmatprep.subr.mxu0 0.0
        %4956 = vmatpush1.msra.mxu0 0.0
        %4957 = vmatprep.subr.mxu0 0.0
        %4958 = vmatpush1.msra.mxu0 0.0
        %4959 = vmatprep.subr.mxu0 0.0
        %4960 = vmatpush1.msra.mxu0 0.0
        %4961 = vmatprep.subr.mxu0 0.0
        %4962 = vmatpush1.msra.mxu0 0.0
        %4963 = vmatprep.subr.mxu0 0.0
        %4964 = vmatpush1.msra.mxu0 0.0
        %4965 = vmatprep.subr.mxu0 0.0
        %4966 = vmatpush1.msra.mxu0 0.0
        %4967 = vmatprep.subr.mxu0 0.0
        %4968 = vmatpush1.msra.mxu0 0.0
        %4969 = vmatprep.subr.mxu0 0.0
        %4970 = vmatpush1.msra.mxu0 0.0
        %4971 = vmatprep.subr.mxu0 0.0
        %4972 = vmatpush1.msra.mxu0 0.0
        %4973 = vmatprep.subr.mxu0 0.0
        %4974 = vmatpush1.msra.mxu0 0.0
        %4975 = vmatprep.subr.mxu0 0.0
        %4976 = vmatpush1.msra.mxu0 0.0
        %4977 = vmatprep.subr.mxu0 0.0
        %4978 = vmatpush1.msra.mxu0 0.0
        %4979 = vmatprep.subr.mxu0 0.0
        %4980 = vmatpush1.msra.mxu0 0.0
        %4981 = vmatprep.subr.mxu0 0.0
        %4982 = vmatpush1.msra.mxu0 0.0
        %4983 = vmatprep.subr.mxu0 0.0
        %4984 = vmatpush1.msra.mxu0 0.0
        %4985 = vmatprep.subr.mxu0 0.0
        %4986 = vmatpush1.msra.mxu0 0.0
        %4987 = vmatprep.subr.mxu0 0.0
        %4988 = vmatpush1.msra.mxu0 0.0
        %4989 = vmatprep.subr.mxu0 0.0
        %4990 = vmatpush1.msra.mxu0 0.0
        %4991 = vmatprep.subr.mxu0 0.0
        %4992 = vmatpush1.msra.mxu0 0.0
        %4993 = vmatprep.subr.mxu0 0.0
        %4994 = vmatpush1.msra.mxu0 0.0
        %4995 = vmatprep.subr.mxu0 0.0
        %4996 = vmatpush1.msra.mxu0 0.0
        %4997 = vmatprep.subr.mxu0 0.0
        %4998 = vmatpush1.msra.mxu0 0.0
        %4999 = vmatprep.mubr.f32.mxu0 0.0
        %5000 = vmatmul.mubr.f32.gmra.mrb[0].mxu0 %v4192
        %v5001 = vpop.f32.mrb[0].mxu0
        %v5002 = vadd.f32 %v4777, %v5001
        %v5003 = vpop.f32.mrb[0].mxu0
        %5004 = vmatprep.mubr.f32.mxu0 0.0
        %5005 = vmatmul.mubr.f32.gmra.mrb[0].mxu0 %v4194
        %v5006 = vpop.f32.mrb[0].mxu0
        %v5007 = vadd.f32 %v4782, %v5006
        %v5008 = vpop.f32.mrb[0].mxu0
        %5009 = vmatprep.mubr.f32.mxu0 0.0
        %5010 = vmatmul.mubr.f32.gmra.mrb[0].mxu0 %v4196
        %v5011 = vpop.f32.mrb[0].mxu0
        %v5012 = vadd.f32 %v4787, %v5011
        %v5013 = vpop.f32.mrb[0].mxu0
        %5014 = vmatprep.mubr.f32.mxu0 0.0
        %5015 = vmatmul.mubr.f32.gmra.mrb[0].mxu0 %v4198
        %v5016 = vpop.f32.mrb[0].mxu0
        %v5017 = vadd.f32 %v4792, %v5016
        %v5018 = vpop.f32.mrb[0].mxu0
        %5019 = vmatprep.mubr.f32.mxu0 0.0
        %5020 = vmatmul.mubr.f32.gmra.mrb[0].mxu0 %v4200
        %v5021 = vpop.f32.mrb[0].mxu0
        %v5022 = vadd.f32 %v4797, %v5021
        %v5023 = vpop.f32.mrb[0].mxu0
        %5024 = vmatprep.mubr.f32.mxu0 0.0
        %5025 = vmatmul.mubr.f32.gmra.mrb[0].mxu0 %v4202
        %v5026 = vpop.f32.mrb[0].mxu0
        %v5027 = vadd.f32 %v4802, %v5026
        %v5028 = vpop.f32.mrb[0].mxu0
        %5029 = vmatprep.mubr.f32.mxu0 0.0
        %5030 = vmatmul.mubr.f32.gmra.mrb[0].mxu0 %v4204
        %v5031 = vpop.f32.mrb[0].mxu0
        %v5032 = vadd.f32 %v4807, %v5031
        %v5033 = vpop.f32.mrb[0].mxu0
        %5034 = vmatprep.mubr.f32.mxu0 0.0
        %5035 = vmatmul.mubr.f32.gmra.mrb[0].mxu0 %v4206
        %v5036 = vpop.f32.mrb[0].mxu0
        %v5037 = vadd.f32 %v4812, %v5036
        %v5038 = vpop.f32.mrb[0].mxu0
        %5039 = vmatprep.mubr.f32.mxu0 0.0
        %5040 = vmatmul.mubr.f32.gmra.mrb[0].mxu0 %v4208
        %v5041 = vpop.f32.mrb[0].mxu0
        %v5042 = vadd.f32 %v4817, %v5041
        %v5043 = vpop.f32.mrb[0].mxu0
        %5044 = vmatprep.mubr.f32.mxu0 0.0
        %5045 = vmatmul.mubr.f32.gmra.mrb[0].mxu0 %v4210
        %v5046 = vpop.f32.mrb[0].mxu0
        %v5047 = vadd.f32 %v4822, %v5046
        %v5048 = vpop.f32.mrb[0].mxu0
        %5049 = vmatprep.mubr.f32.mxu0 0.0
        %5050 = vmatmul.mubr.f32.gmra.mrb[0].mxu0 %v4212
        %v5051 = vpop.f32.mrb[0].mxu0
        %v5052 = vadd.f32 %v4827, %v5051
        %v5053 = vpop.f32.mrb[0].mxu0
        %5054 = vmatprep.mubr.f32.mxu0 0.0
        %5055 = vmatmul.mubr.f32.gmra.mrb[0].mxu0 %v4214
        %v5056 = vpop.f32.mrb[0].mxu0
        %v5057 = vadd.f32 %v4832, %v5056
        %v5058 = vpop.f32.mrb[0].mxu0
        %5059 = vmatprep.mubr.f32.mxu0 0.0
        %5060 = vmatmul.mubr.f32.gmra.mrb[0].mxu0 %v4216
        %v5061 = vpop.f32.mrb[0].mxu0
        %v5062 = vadd.f32 %v4837, %v5061
        %v5063 = vpop.f32.mrb[0].mxu0
        %5064 = vmatprep.mubr.f32.mxu0 0.0
        %5065 = vmatmul.mubr.f32.gmra.mrb[0].mxu0 %v4218
        %v5066 = vpop.f32.mrb[0].mxu0
        %v5067 = vadd.f32 %v4842, %v5066
        %v5068 = vpop.f32.mrb[0].mxu0
        %5069 = vmatprep.mubr.f32.mxu0 0.0
        %5070 = vmatmul.mubr.f32.gmra.mrb[0].mxu0 %v4220
        %v5071 = vpop.f32.mrb[0].mxu0
        %v5072 = vadd.f32 %v4847, %v5071
        %v5073 = vpop.f32.mrb[0].mxu0
        %5074 = vmatprep.mubr.f32.mxu0 0.0
        %5075 = vmatmul.mubr.f32.gmra.mrb[0].mxu0 %v4222
        %v5076 = vpop.f32.mrb[0].mxu0
        %v5077 = vadd.f32 %v4852, %v5076
        %v5078 = vpop.f32.mrb[0].mxu0
        %5079 = vmatprep.mubr.f32.mxu0 0.0
        %5080 = vmatmul.mubr.f32.gmra.mrb[0].mxu0 %v4224
        %v5081 = vpop.f32.mrb[0].mxu0
        %v5082 = vadd.f32 %v4857, %v5081
        %v5083 = vpop.f32.mrb[0].mxu0
        %5084 = vmatprep.mubr.f32.mxu0 0.0
        %5085 = vmatmul.mubr.f32.gmra.mrb[0].mxu0 %v4226
        %v5086 = vpop.f32.mrb[0].mxu0
        %v5087 = vadd.f32 %v4862, %v5086
        %v5088 = vpop.f32.mrb[0].mxu0
        %5089 = vmatprep.mubr.f32.mxu0 0.0
        %5090 = vmatmul.mubr.f32.gmra.mrb[0].mxu0 %v4228
        %v5091 = vpop.f32.mrb[0].mxu0
        %v5092 = vadd.f32 %v4867, %v5091
        %v5093 = vpop.f32.mrb[0].mxu0
        %5094 = vmatprep.mubr.f32.mxu0 0.0
        %5095 = vmatmul.mubr.f32.gmra.mrb[0].mxu0 %v4230
        %v5096 = vpop.f32.mrb[0].mxu0
        %v5097 = vadd.f32 %v4872, %v5096
        %v5098 = vpop.f32.mrb[0].mxu0
        %5099 = vmatprep.mubr.f32.mxu0 0.0
        %5100 = vmatmul.mubr.f32.gmra.mrb[0].mxu0 %v4232
        %v5101 = vpop.f32.mrb[0].mxu0
        %v5102 = vadd.f32 %v4877, %v5101
        %v5103 = vpop.f32.mrb[0].mxu0
        %5104 = vmatprep.mubr.f32.mxu0 0.0
        %5105 = vmatmul.mubr.f32.gmra.mrb[0].mxu0 %v4234
        %v5106 = vpop.f32.mrb[0].mxu0
        %v5107 = vadd.f32 %v4882, %v5106
        %v5108 = vpop.f32.mrb[0].mxu0
        %5109 = vmatprep.mubr.f32.mxu0 0.0
        %5110 = vmatmul.mubr.f32.gmra.mrb[0].mxu0 %v4236
        %v5111 = vpop.f32.mrb[0].mxu0
        %v5112 = vadd.f32 %v4887, %v5111
        %v5113 = vpop.f32.mrb[0].mxu0
        %5114 = vmatprep.mubr.f32.mxu0 0.0
        %5115 = vmatmul.mubr.f32.gmra.mrb[0].mxu0 %v4238
        %v5116 = vpop.f32.mrb[0].mxu0
        %v5117 = vadd.f32 %v4892, %v5116
        %v5118 = vpop.f32.mrb[0].mxu0
        %5119 = vmatprep.mubr.f32.mxu0 0.0
        %5120 = vmatmul.mubr.f32.gmra.mrb[0].mxu0 %v4240
        %v5121 = vpop.f32.mrb[0].mxu0
        %v5122 = vadd.f32 %v4897, %v5121
        %v5123 = vpop.f32.mrb[0].mxu0
        %5124 = vmatprep.mubr.f32.mxu0 0.0
        %5125 = vmatmul.mubr.f32.gmra.mrb[0].mxu0 %v4242
        %v5126 = vpop.f32.mrb[0].mxu0
        %v5127 = vadd.f32 %v4902, %v5126
        %v5128 = vpop.f32.mrb[0].mxu0
        %5129 = vmatprep.mubr.f32.mxu0 0.0
        %5130 = vmatmul.mubr.f32.gmra.mrb[0].mxu0 %v4244
        %v5131 = vpop.f32.mrb[0].mxu0
        %v5132 = vadd.f32 %v4907, %v5131
        %v5133 = vpop.f32.mrb[0].mxu0
        %5134 = vmatprep.mubr.f32.mxu0 0.0
        %5135 = vmatmul.mubr.f32.gmra.mrb[0].mxu0 %v4246
        %v5136 = vpop.f32.mrb[0].mxu0
        %v5137 = vadd.f32 %v4912, %v5136
        %v5138 = vpop.f32.mrb[0].mxu0
        %5139 = vmatprep.mubr.f32.mxu0 0.0
        %5140 = vmatmul.mubr.f32.gmra.mrb[0].mxu0 %v4248
        %v5141 = vpop.f32.mrb[0].mxu0
        %v5142 = vadd.f32 %v4917, %v5141
        %v5143 = vpop.f32.mrb[0].mxu0
        %5144 = vmatprep.mubr.f32.mxu0 0.0
        %5145 = vmatmul.mubr.f32.gmra.mrb[0].mxu0 %v4250
        %v5146 = vpop.f32.mrb[0].mxu0
        %v5147 = vadd.f32 %v4922, %v5146
        %v5148 = vpop.f32.mrb[0].mxu0
        %5149 = vmatprep.mubr.f32.mxu0 0.0
        %5150 = vmatmul.mubr.f32.gmra.mrb[0].mxu0 %v4252
        %v5151 = vpop.f32.mrb[0].mxu0
        %v5152 = vadd.f32 %v4927, %v5151
        %v5153 = vpop.f32.mrb[0].mxu0
        %5154 = vmatprep.mubr.f32.mxu0 0.0
        %5155 = vmatmul.mubr.f32.gmra.mrb[0].mxu0 %v4254
        %v5156 = vpop.f32.mrb[0].mxu0
        %v5157 = vadd.f32 %v4932, %v5156
        %v5158 = vpop.f32.mrb[0].mxu0
        %5159 = vdwg.mxu0
        %v5160 = vld [vmem:[%s5] sm:$0x1]
        %v5162 = vlaneseq
        %v5163 = vshrl.u32 %v5162, 7
        %v5164 = vsub.s32 0, %v5163
        %v5165 = vrot.slane %v5160, %v5164
        %v5167 = vmul.f32 %v5002, %v5165
        %v5168 = vmul.f32 %v5007, %v5165
        %v5169 = vmul.f32 %v5012, %v5165
        %v5170 = vmul.f32 %v5017, %v5165
        %v5171 = vmul.f32 %v5022, %v5165
        %v5172 = vmul.f32 %v5027, %v5165
        %v5173 = vmul.f32 %v5032, %v5165
        %v5174 = vmul.f32 %v5037, %v5165
        %v5175 = vmul.f32 %v5042, %v5165
        %v5176 = vmul.f32 %v5047, %v5165
        %v5177 = vmul.f32 %v5052, %v5165
        %v5178 = vmul.f32 %v5057, %v5165
        %v5179 = vmul.f32 %v5062, %v5165
        %v5180 = vmul.f32 %v5067, %v5165
        %v5181 = vmul.f32 %v5072, %v5165
        %v5182 = vmul.f32 %v5077, %v5165
        %v5183 = vmul.f32 %v5082, %v5165
        %v5184 = vmul.f32 %v5087, %v5165
        %v5185 = vmul.f32 %v5092, %v5165
        %v5186 = vmul.f32 %v5097, %v5165
        %v5187 = vmul.f32 %v5102, %v5165
        %v5188 = vmul.f32 %v5107, %v5165
        %v5189 = vmul.f32 %v5112, %v5165
        %v5190 = vmul.f32 %v5117, %v5165
        %v5191 = vmul.f32 %v5122, %v5165
        %v5192 = vmul.f32 %v5127, %v5165
        %v5193 = vmul.f32 %v5132, %v5165
        %v5194 = vmul.f32 %v5137, %v5165
        %v5195 = vmul.f32 %v5142, %v5165
        %v5196 = vmul.f32 %v5147, %v5165
        %v5197 = vmul.f32 %v5152, %v5165
        %v5198 = vmul.f32 %v5157, %v5165
        %v5199 = vld [vmem:[%s6] sm:$0x1]
        %v5201 = vlaneseq
        %v5202 = vshrl.u32 %v5201, 7
        %v5203 = vsub.s32 0, %v5202
        %v5204 = vrot.slane %v5199, %v5203
        %v5206 = vadd.f32 %v5167, %v5204
        %v5207 = vadd.f32 %v5168, %v5204
        %v5208 = vadd.f32 %v5169, %v5204
        %v5209 = vadd.f32 %v5170, %v5204
        %v5210 = vadd.f32 %v5171, %v5204
        %v5211 = vadd.f32 %v5172, %v5204
        %v5212 = vadd.f32 %v5173, %v5204
        %v5213 = vadd.f32 %v5174, %v5204
        %v5214 = vadd.f32 %v5175, %v5204
        %v5215 = vadd.f32 %v5176, %v5204
        %v5216 = vadd.f32 %v5177, %v5204
        %v5217 = vadd.f32 %v5178, %v5204
        %v5218 = vadd.f32 %v5179, %v5204
        %v5219 = vadd.f32 %v5180, %v5204
        %v5220 = vadd.f32 %v5181, %v5204
        %v5221 = vadd.f32 %v5182, %v5204
        %v5222 = vadd.f32 %v5183, %v5204
        %v5223 = vadd.f32 %v5184, %v5204
        %v5224 = vadd.f32 %v5185, %v5204
        %v5225 = vadd.f32 %v5186, %v5204
        %v5226 = vadd.f32 %v5187, %v5204
        %v5227 = vadd.f32 %v5188, %v5204
        %v5228 = vadd.f32 %v5189, %v5204
        %v5229 = vadd.f32 %v5190, %v5204
        %v5230 = vadd.f32 %v5191, %v5204
        %v5231 = vadd.f32 %v5192, %v5204
        %v5232 = vadd.f32 %v5193, %v5204
        %v5233 = vadd.f32 %v5194, %v5204
        %v5234 = vadd.f32 %v5195, %v5204
        %v5235 = vadd.f32 %v5196, %v5204
        %v5236 = vadd.f32 %v5197, %v5204
        %v5237 = vadd.f32 %v5198, %v5204
        %v5238 = vmax.f32 %v5206, 0.0
        %v5239 = vmax.f32 %v5207, 0.0
        %v5240 = vmax.f32 %v5208, 0.0
        %v5241 = vmax.f32 %v5209, 0.0
        %v5242 = vmax.f32 %v5210, 0.0
        %v5243 = vmax.f32 %v5211, 0.0
        %v5244 = vmax.f32 %v5212, 0.0
        %v5245 = vmax.f32 %v5213, 0.0
        %v5246 = vmax.f32 %v5214, 0.0
        %v5247 = vmax.f32 %v5215, 0.0
        %v5248 = vmax.f32 %v5216, 0.0
        %v5249 = vmax.f32 %v5217, 0.0
        %v5250 = vmax.f32 %v5218, 0.0
        %v5251 = vmax.f32 %v5219, 0.0
        %v5252 = vmax.f32 %v5220, 0.0
        %v5253 = vmax.f32 %v5221, 0.0
        %v5254 = vmax.f32 %v5222, 0.0
        %v5255 = vmax.f32 %v5223, 0.0
        %v5256 = vmax.f32 %v5224, 0.0
        %v5257 = vmax.f32 %v5225, 0.0
        %v5258 = vmax.f32 %v5226, 0.0
        %v5259 = vmax.f32 %v5227, 0.0
        %v5260 = vmax.f32 %v5228, 0.0
        %v5261 = vmax.f32 %v5229, 0.0
        %v5262 = vmax.f32 %v5230, 0.0
        %v5263 = vmax.f32 %v5231, 0.0
        %v5264 = vmax.f32 %v5232, 0.0
        %v5265 = vmax.f32 %v5233, 0.0
        %v5266 = vmax.f32 %v5234, 0.0
        %v5267 = vmax.f32 %v5235, 0.0
        %v5268 = vmax.f32 %v5236, 0.0
        %v5269 = vmax.f32 %v5237, 0.0
        %vm5270 = vcmask 261120
        %5271 = vst.msk [vmem:[%s271] sm:$0xff] %vm5270, %v5238
        %5272 = vst.msk [vmem:[%s271 + $0x8] sm:$0xff] %vm5270, %v5239
        %5273 = vst.msk [vmem:[%s271 + $0x10] sm:$0xff] %vm5270, %v5240
        %5274 = vst.msk [vmem:[%s271 + $0x18] sm:$0xff] %vm5270, %v5241
        %5275 = vst.msk [vmem:[%s271 + $0x20] sm:$0xff] %vm5270, %v5242
        %5276 = vst.msk [vmem:[%s271 + $0x28] sm:$0xff] %vm5270, %v5243
        %5277 = vst.msk [vmem:[%s271 + $0x30] sm:$0xff] %vm5270, %v5244
        %5278 = vst.msk [vmem:[%s271 + $0x38] sm:$0xff] %vm5270, %v5245
        %5279 = vst.msk [vmem:[%s271 + $0x40] sm:$0xff] %vm5270, %v5246
        %5280 = vst.msk [vmem:[%s271 + $0x48] sm:$0xff] %vm5270, %v5247
        %5281 = vst.msk [vmem:[%s271 + $0x50] sm:$0xff] %vm5270, %v5248
        %5282 = vst.msk [vmem:[%s271 + $0x58] sm:$0xff] %vm5270, %v5249
        %5283 = vst.msk [vmem:[%s271 + $0x60] sm:$0xff] %vm5270, %v5250
        %5284 = vst.msk [vmem:[%s271 + $0x68] sm:$0xff] %vm5270, %v5251
        %5285 = vst.msk [vmem:[%s271 + $0x70] sm:$0xff] %vm5270, %v5252
        %5286 = vst.msk [vmem:[%s271 + $0x78] sm:$0xff] %vm5270, %v5253
        %5287 = vst.msk [vmem:[%s271 + $0x80] sm:$0xff] %vm5270, %v5254
        %5288 = vst.msk [vmem:[%s271 + $0x88] sm:$0xff] %vm5270, %v5255
        %5289 = vst.msk [vmem:[%s271 + $0x90] sm:$0xff] %vm5270, %v5256
        %5290 = vst.msk [vmem:[%s271 + $0x98] sm:$0xff] %vm5270, %v5257
        %5291 = vst.msk [vmem:[%s271 + $0xa0] sm:$0xff] %vm5270, %v5258
        %5292 = vst.msk [vmem:[%s271 + $0xa8] sm:$0xff] %vm5270, %v5259
        %5293 = vst.msk [vmem:[%s271 + $0xb0] sm:$0xff] %vm5270, %v5260
        %5294 = vst.msk [vmem:[%s271 + $0xb8] sm:$0xff] %vm5270, %v5261
        %5295 = vst.msk [vmem:[%s271 + $0xc0] sm:$0xff] %vm5270, %v5262
        %5296 = vst.msk [vmem:[%s271 + $0xc8] sm:$0xff] %vm5270, %v5263
        %5297 = vst.msk [vmem:[%s271 + $0xd0] sm:$0xff] %vm5270, %v5264
        %5298 = vst.msk [vmem:[%s271 + $0xd8] sm:$0xff] %vm5270, %v5265
        %5299 = vst.msk [vmem:[%s271 + $0xe0] sm:$0xff] %vm5270, %v5266
        %5300 = vst.msk [vmem:[%s271 + $0xe8] sm:$0xff] %vm5270, %v5267
        %5301 = vst.msk [vmem:[%s271 + $0xf0] sm:$0xff] %vm5270, %v5268
        %5302 = vst.msk [vmem:[%s271 + $0xf8] sm:$0xff] %vm5270, %v5269
        %s5303 = sand.u32 %s181, 1
        %s5304 = scalar_lea.sflag [#allocation5], %s5303
        %s5305 = sand.u32 %s181, 1
        %s5306 = smul.addr %s5305, 256
        %s5307 = scalar_lea.vmem [#allocation4], %s5306
        // Predicated region
        $region49: #{tpu_custom_call.1} parent=47 // pred_check
          %p5308 = pneg %p191
        $region50: #{tpu_custom_call.1} parent=47 // pred_check_branch
          %5310 = sbr.rel (%p5308) target = $region52
        $region51: #{tpu_custom_call.1} parent=47 // pred_region
          %s5312 = ssub.s32 4096, 4096
          %5313 = vsyncadd %s5304, %s5312
          %s5314 = smul.addr %s21, 32
          %s5315 = smul.addr %s5314, 128
          %s5316 = scalar_lea.hbm %s7, %s5315
          %s5317 = sshll.u32 %s5307, 4
          %s5318 = int_to_ptr.vmem [resolvable:$true] %s5317
          %5323 = dma.vmem_to_hbm [thread:$0]  %s5318, 4096, %s5316, %s5304, 128, 128, 8
        $region52: #{tpu_custom_call.1} parent=47 // pred_fallthru
          _
      $region48: #{tpu_custom_call.1} parent=5 // pred_fallthru
        _
      %p5324 = scmp.le.s32.totalorder 2, %s16
      // Predicated region
      $region53: #{tpu_custom_call.1} parent=5 // pred_check
        %p5325 = pneg %p5324
      $region54: #{tpu_custom_call.1} parent=5 // pred_check_branch
        %5327 = sbr.rel (%p5325) target = $region56
      $region55: #{tpu_custom_call.1} parent=5 // pred_region
        %s5328 = ssub.s32 %s16, 2
        // Predicated region
        $region57: #{tpu_custom_call.1} parent=55 // pred_check
          %p5329 = pneg %p197
        $region58: #{tpu_custom_call.1} parent=55 // pred_check_branch
          %5331 = sbr.rel (%p5329) target = $region60
        $region59: #{tpu_custom_call.1} parent=55 // pred_region
          %s5332 = sand.u32 %s182, 1
          %s5333 = scalar_lea.sflag [#allocation5], %s5332
          %s5334 = sand.u32 %s182, 1
          %s5335 = smul.addr %s5334, 256
          %s5336 = scalar_lea.vmem [#allocation4], %s5335
          %5337 = dma.done %s5333, 4096
        $region60: #{tpu_custom_call.1} parent=55 // pred_fallthru
          _
      $region56: #{tpu_custom_call.1} parent=5 // pred_fallthru
        _
    $region6: #{tpu_custom_call.1} parent=1 // loop_footer
      %s20 = sadd.s32 1, %s16
    $region7: #{tpu_custom_call.1} parent=1 // loop_footer_branch
      %15 = sbr.rel target = $region3
    $region8: #{tpu_custom_call.1} parent=1 // loop_exit
      _
    %5338 = vsyncpa [#allocation5], 1
    %s5339 = scalar_lea.sflag [#allocation5], 1
    %5340 = vsyncpa %s5339, 1

</llo_original>
